<compile_context>
chip_gen: v6e
topology: v6e:2x2x1
jax: 0.10.0
libtpu: 0.0.40
codegen_flags: <defaults>
</compile_context>

<pallas_src>
import functools

import jax
import jax.numpy as jnp
from jax.experimental import pallas as pl
from jax.experimental.pallas import tpu as pltpu


# ---------------------------------------------------------------------------
# Fused decoder-layer kernel (one grid step == one batch element)
# ---------------------------------------------------------------------------
def _decoder_layer_kernel(
        tgt_ref, mem_ref, head_mask_ref,
        w_qkv_s_ref, b_qkv_s_ref, wo_s_ref, bo_s_ref, g1_ref, be1_ref,
        w_qkv_c_ref, b_qkv_c_ref, wo_c_ref, bo_c_ref, g2_ref, be2_ref,
        w1_ref, b1_ref, w2_ref, b2_ref, g3_ref, be3_ref,
        out_ref, *, nhead, eps):
    x = tgt_ref[0].astype(jnp.float32)      # (T, E)
    mem = mem_ref[0].astype(jnp.float32)    # (S, E)

    def project(src, w_ref, b_ref, j):
        # w_ref: (3, E, E) packed [q, k, v] (already transposed, q pre-scaled)
        return (jnp.dot(src, w_ref[j], preferred_element_type=jnp.float32)
                + b_ref[j])

    def mha(q, k, v, wo_ref, bo_ref):
        """Multi-head attention without in-kernel transposes or lane slicing.

        Head h is selected by zeroing the other heads' feature columns of K
        and V, so the score matmul contracts the full E dimension on the MXU
        and the per-head outputs land directly in their own columns.
        """
        ov = jnp.zeros_like(q)                               # (T, E) f32
        for h in range(nhead):
            m = head_mask_ref[h]                             # (1, E)
            k_h = k * m
            v_h = v * m
            # scores: contract the last axis of both operands (no k.T).
            s = jax.lax.dot_general(
                q, k_h, (((1,), (1,)), ((), ())),
                preferred_element_type=jnp.float32)          # (T, S)
            s = s - jnp.max(s, axis=-1, keepdims=True)
            p = jnp.exp(s)
            denom = jnp.sum(p, axis=-1, keepdims=True)
            r = pl.reciprocal(denom, approx=True)            # EUP seed
            r = r * (2.0 - denom * r)                        # one Newton step
            ov = ov + jnp.dot(p * r, v_h,
                              preferred_element_type=jnp.float32)
        return (jnp.dot(ov, wo_ref[...], preferred_element_type=jnp.float32)
                + bo_ref[...])

    def add_ln(x_in, y, g_ref, be_ref):
        z = x_in + y                                         # f32
        mu = jnp.mean(z, axis=-1, keepdims=True)
        var = jnp.mean(jnp.square(z - mu), axis=-1, keepdims=True)
        return (z - mu) * jax.lax.rsqrt(var + eps) * g_ref[...] + be_ref[...]

    # ---- 1) self attention + residual + LayerNorm1 ------------------------
    q = project(x, w_qkv_s_ref, b_qkv_s_ref, 0)
    k = project(x, w_qkv_s_ref, b_qkv_s_ref, 1)
    v = project(x, w_qkv_s_ref, b_qkv_s_ref, 2)
    x = add_ln(x, mha(q, k, v, wo_s_ref, bo_s_ref), g1_ref, be1_ref)

    # ---- 2) cross attention + residual + LayerNorm2 -----------------------
    q = project(x, w_qkv_c_ref, b_qkv_c_ref, 0)
    k = project(mem, w_qkv_c_ref, b_qkv_c_ref, 1)
    v = project(mem, w_qkv_c_ref, b_qkv_c_ref, 2)
    x = add_ln(x, mha(q, k, v, wo_c_ref, bo_c_ref), g2_ref, be2_ref)

    # ---- 3) feed-forward (linear1 -> relu -> linear2) + residual + LN3 ----
    hidden = jnp.dot(x, w1_ref[...],
                     preferred_element_type=jnp.float32) + b1_ref[...]
    hidden = jnp.maximum(hidden, 0.0)
    ff = jnp.dot(hidden, w2_ref[...],
                 preferred_element_type=jnp.float32) + b2_ref[...]
    x = add_ln(x, ff, g3_ref, be3_ref)

    out_ref[0] = x.astype(out_ref.dtype)


# ---------------------------------------------------------------------------
# Parameter prep (one-time re-layout of torch-convention parameters)
# ---------------------------------------------------------------------------
_KP_ORDER = ("head_mask",
             "w_qkv_s", "b_qkv_s", "wo_s", "bo_s", "g1", "be1",
             "w_qkv_c", "b_qkv_c", "wo_c", "bo_c", "g2", "be2",
             "w1", "b1", "w2", "b2", "g3", "be3")


def prepare_decoder_params(params, nhead):
    """Transpose weights, fold 1/sqrt(head_dim) into Q, pack q/k/v, build masks."""
    e = params["self_attn"]["out_proj_w"].shape[0]
    hd = e // nhead
    scale = float(hd) ** (-0.5)

    def attn(p):
        wi, bi = p["in_proj_w"], p["in_proj_b"]            # (3E, E), (3E,)
        wq_t = wi[:e].T * scale                            # scaling folded in
        wk_t = wi[e:2 * e].T
        wv_t = wi[2 * e:].T
        bq, bk, bv = bi[:e] * scale, bi[e:2 * e], bi[2 * e:]
        w_qkv = jnp.stack([wq_t, wk_t, wv_t], axis=0)              # (3, E, E)
        b_qkv = jnp.stack([bq, bk, bv], axis=0).reshape(3, 1, e)   # (3, 1, E)
        return (w_qkv, b_qkv, p["out_proj_w"].T,
                p["out_proj_b"].reshape(1, e))

    w_qkv_s, b_qkv_s, wo_s, bo_s = attn(params["self_attn"])
    w_qkv_c, b_qkv_c, wo_c, bo_c = attn(params["cross_attn"])

    head_ids = jnp.arange(e, dtype=jnp.int32) // hd
    head_mask = (head_ids[None, :] ==
                 jnp.arange(nhead, dtype=jnp.int32)[:, None])
    head_mask = head_mask.astype(jnp.float32).reshape(nhead, 1, e)

    return {
        "head_mask": head_mask,
        "w_qkv_s": w_qkv_s, "b_qkv_s": b_qkv_s, "wo_s": wo_s, "bo_s": bo_s,
        "g1": params["ln1_w"].reshape(1, e), "be1": params["ln1_b"].reshape(1, e),
        "w_qkv_c": w_qkv_c, "b_qkv_c": b_qkv_c, "wo_c": wo_c, "bo_c": bo_c,
        "g2": params["ln2_w"].reshape(1, e), "be2": params["ln2_b"].reshape(1, e),
        "w1": params["lin1_w"].T, "b1": params["lin1_b"].reshape(1, -1),
        "w2": params["lin2_w"].T, "b2": params["lin2_b"].reshape(1, e),
        "g3": params["ln3_w"].reshape(1, e), "be3": params["ln3_b"].reshape(1, e),
    }


# ---------------------------------------------------------------------------
# Wrapper: single fused pallas_call over the batch
# ---------------------------------------------------------------------------
def transformer_decoder_layer(tgt, memory, kernel_params, nhead, eps=1e-5):
    """tgt: (T, B, E), memory: (S, B, E) -> (T, B, E)."""
    t, b, e = tgt.shape
    s = memory.shape[0]

    tgt_bm = jnp.transpose(tgt, (1, 0, 2))      # (B, T, E) batch-major
    mem_bm = jnp.transpose(memory, (1, 0, 2))   # (B, S, E)

    weights = [kernel_params[name] for name in _KP_ORDER]

    def resident(arr):
        # Full-array block whose index never changes -> DMA'd once, stays in VMEM.
        zeros = (0,) * arr.ndim
        return pl.BlockSpec(arr.shape, lambda i: zeros)

    kernel = functools.partial(_decoder_layer_kernel, nhead=nhead, eps=eps)

    out_bm = pl.pallas_call(
        kernel,
        out_shape=jax.ShapeDtypeStruct((b, t, e), tgt.dtype),
        grid=(b,),
        in_specs=[pl.BlockSpec((1, t, e), lambda i: (i, 0, 0)),
                  pl.BlockSpec((1, s, e), lambda i: (i, 0, 0))]
                 + [resident(w) for w in weights],
        out_specs=pl.BlockSpec((1, t, e), lambda i: (i, 0, 0)),
        compiler_params=pltpu.CompilerParams(
            dimension_semantics=("parallel",)),
    )(tgt_bm, mem_bm, *weights)

    return jnp.transpose(out_bm, (1, 0, 2))


# ---------------------------------------------------------------------------
# Deterministic parameter init (torch-convention shapes)
# ---------------------------------------------------------------------------
def _xavier(key, shape):
    fan_out, fan_in = shape
    a = (6.0 / (fan_in + fan_out)) ** 0.5
    return jax.random.uniform(key, shape, jnp.float32, -a, a)


def init_params(key, d_model, dim_feedforward):
    ks = jax.random.split(key, 8)

    def attn_params(k1, k2):
        return {
            "in_proj_w": _xavier(k1, (3 * d_model, d_model)),
            "in_proj_b": jnp.zeros((3 * d_model,), jnp.float32),
            "out_proj_w": _xavier(k2, (d_model, d_model)),
            "out_proj_b": jnp.zeros((d_model,), jnp.float32),
        }

    return {
        "self_attn": attn_params(ks[0], ks[1]),
        "cross_attn": attn_params(ks[2], ks[3]),
        "lin1_w": _xavier(ks[4], (dim_feedforward, d_model)),
        "lin1_b": jax.random.uniform(ks[5], (dim_feedforward,), jnp.float32, -0.1, 0.1),
        "lin2_w": _xavier(ks[6], (d_model, dim_feedforward)),
        "lin2_b": jax.random.uniform(ks[7], (d_model,), jnp.float32, -0.1, 0.1),
        "ln1_w": jnp.ones((d_model,), jnp.float32),
        "ln1_b": jnp.zeros((d_model,), jnp.float32),
        "ln2_w": jnp.ones((d_model,), jnp.float32),
        "ln2_b": jnp.zeros((d_model,), jnp.float32),
        "ln3_w": jnp.ones((d_model,), jnp.float32),
        "ln3_b": jnp.zeros((d_model,), jnp.float32),
    }


# ---------------------------------------------------------------------------
# Pure-JAX reference (for correctness check)
# ---------------------------------------------------------------------------
def _mha_ref(query, key, value, p, nhead):
    t, b, e = query.shape
    s = key.shape[0]
    hd = e // nhead
    scaling = float(hd) ** (-0.5)
    wi, bi, wo, bo = p["in_proj_w"], p["in_proj_b"], p["out_proj_w"], p["out_proj_b"]
    q = query @ wi[:e].T + bi[:e]
    k = key @ wi[e:2 * e].T + bi[e:2 * e]
    v = value @ wi[2 * e:].T + bi[2 * e:]
    q = (q * scaling).reshape(t, b * nhead, hd).transpose(1, 0, 2)
    k = k.reshape(s, b * nhead, hd).transpose(1, 0, 2)
    v = v.reshape(s, b * nhead, hd).transpose(1, 0, 2)
    sc = jnp.einsum("bth,bsh->bts", q, k)
    pw = jax.nn.softmax(sc, axis=-1)
    o = jnp.einsum("bts,bsh->bth", pw, v)
    o = o.transpose(1, 0, 2).reshape(t, b, e)
    return o @ wo.T + bo


def _ln_ref(x, g, b, eps):
    m = jnp.mean(x, axis=-1, keepdims=True)
    v = jnp.mean((x - m) ** 2, axis=-1, keepdims=True)
    return (x - m) * jax.lax.rsqrt(v + eps) * g + b


def decoder_layer_ref(tgt, memory, params, nhead, eps=1e-5):
    tgt2 = _mha_ref(tgt, tgt, tgt, params["self_attn"], nhead)
    tgt = _ln_ref(tgt + tgt2, params["ln1_w"], params["ln1_b"], eps)
    tgt2 = _mha_ref(tgt, memory, memory, params["cross_attn"], nhead)
    tgt = _ln_ref(tgt + tgt2, params["ln2_w"], params["ln2_b"], eps)
    h = jnp.maximum(tgt @ params["lin1_w"].T + params["lin1_b"], 0.0)
    tgt2 = h @ params["lin2_w"].T + params["lin2_b"]
    tgt = _ln_ref(tgt + tgt2, params["ln3_w"], params["ln3_b"], eps)
    return tgt


# ---------------------------------------------------------------------------
if __name__ == "__main__":
    d_model, nhead, dim_feedforward = 32, 4, 64
    T, S, B = 8, 10, 2          # tgt seq, memory seq, batch

    root = jax.random.PRNGKey(0)
    k_tgt, k_mem, k_par = jax.random.split(root, 3)
    tgt = jax.random.normal(k_tgt, (T, B, d_model), jnp.float32)
    memory = jax.random.normal(k_mem, (S, B, d_model), jnp.float32)
    params = init_params(k_par, d_model, dim_feedforward)
    kernel_params = prepare_decoder_params(params, nhead)   # one-time re-layout

    out = transformer_decoder_layer(tgt, memory, kernel_params, nhead)
    out = jax.block_until_ready(out)

    ref = decoder_layer_ref(tgt, memory, params, nhead)
    assert out.shape == (T, B, d_model)
    assert jnp.allclose(out, ref, atol=2e-3, rtol=2e-3), "mismatch vs reference"

    print("KERNEL_OK")
</pallas_src>

<mosaic_0001>
module attributes {stable_mosaic.version = 11 : i64} {
  func.func @_decoder_layer_kernel(%arg0: i32, %arg1: memref<1x8x32xf32, #tpu.memory_space<vmem>>, %arg2: memref<1x10x32xf32, #tpu.memory_space<vmem>>, %arg3: memref<4x1x32xf32, #tpu.memory_space<vmem>>, %arg4: memref<3x32x32xf32, #tpu.memory_space<vmem>>, %arg5: memref<3x1x32xf32, #tpu.memory_space<vmem>>, %arg6: memref<32x32xf32, #tpu.memory_space<vmem>>, %arg7: memref<1x32xf32, #tpu.memory_space<vmem>>, %arg8: memref<1x32xf32, #tpu.memory_space<vmem>>, %arg9: memref<1x32xf32, #tpu.memory_space<vmem>>, %arg10: memref<3x32x32xf32, #tpu.memory_space<vmem>>, %arg11: memref<3x1x32xf32, #tpu.memory_space<vmem>>, %arg12: memref<32x32xf32, #tpu.memory_space<vmem>>, %arg13: memref<1x32xf32, #tpu.memory_space<vmem>>, %arg14: memref<1x32xf32, #tpu.memory_space<vmem>>, %arg15: memref<1x32xf32, #tpu.memory_space<vmem>>, %arg16: memref<32x64xf32, #tpu.memory_space<vmem>>, %arg17: memref<1x64xf32, #tpu.memory_space<vmem>>, %arg18: memref<64x32xf32, #tpu.memory_space<vmem>>, %arg19: memref<1x32xf32, #tpu.memory_space<vmem>>, %arg20: memref<1x32xf32, #tpu.memory_space<vmem>>, %arg21: memref<1x32xf32, #tpu.memory_space<vmem>>, %arg22: memref<1x8x32xf32, #tpu.memory_space<vmem>>) attributes {dimension_semantics = [#tpu.dimension_semantics<parallel>], iteration_bounds = array<i64: 2>, scalar_prefetch = 0 : i64, scratch_operands = 0 : i64, tpu.core_type = #tpu.core_type<tc>, window_params = [{transform_indices = @transform_0, window_bounds = array<i64: 1, 8, 32>}, {transform_indices = @transform_1, window_bounds = array<i64: 1, 10, 32>}, {pipeline_mode = #tpu.pipeline_mode<synchronous>, transform_indices = @transform_2, window_bounds = array<i64: 4, 1, 32>}, {pipeline_mode = #tpu.pipeline_mode<synchronous>, transform_indices = @transform_3, window_bounds = array<i64: 3, 32, 32>}, {pipeline_mode = #tpu.pipeline_mode<synchronous>, transform_indices = @transform_4, window_bounds = array<i64: 3, 1, 32>}, {pipeline_mode = #tpu.pipeline_mode<synchronous>, transform_indices = @transform_5, window_bounds = array<i64: 32, 32>}, {pipeline_mode = #tpu.pipeline_mode<synchronous>, transform_indices = @transform_6, window_bounds = array<i64: 1, 32>}, {pipeline_mode = #tpu.pipeline_mode<synchronous>, transform_indices = @transform_7, window_bounds = array<i64: 1, 32>}, {pipeline_mode = #tpu.pipeline_mode<synchronous>, transform_indices = @transform_8, window_bounds = array<i64: 1, 32>}, {pipeline_mode = #tpu.pipeline_mode<synchronous>, transform_indices = @transform_9, window_bounds = array<i64: 3, 32, 32>}, {pipeline_mode = #tpu.pipeline_mode<synchronous>, transform_indices = @transform_10, window_bounds = array<i64: 3, 1, 32>}, {pipeline_mode = #tpu.pipeline_mode<synchronous>, transform_indices = @transform_11, window_bounds = array<i64: 32, 32>}, {pipeline_mode = #tpu.pipeline_mode<synchronous>, transform_indices = @transform_12, window_bounds = array<i64: 1, 32>}, {pipeline_mode = #tpu.pipeline_mode<synchronous>, transform_indices = @transform_13, window_bounds = array<i64: 1, 32>}, {pipeline_mode = #tpu.pipeline_mode<synchronous>, transform_indices = @transform_14, window_bounds = array<i64: 1, 32>}, {pipeline_mode = #tpu.pipeline_mode<synchronous>, transform_indices = @transform_15, window_bounds = array<i64: 32, 64>}, {pipeline_mode = #tpu.pipeline_mode<synchronous>, transform_indices = @transform_16, window_bounds = array<i64: 1, 64>}, {pipeline_mode = #tpu.pipeline_mode<synchronous>, transform_indices = @transform_17, window_bounds = array<i64: 64, 32>}, {pipeline_mode = #tpu.pipeline_mode<synchronous>, transform_indices = @transform_18, window_bounds = array<i64: 1, 32>}, {pipeline_mode = #tpu.pipeline_mode<synchronous>, transform_indices = @transform_19, window_bounds = array<i64: 1, 32>}, {pipeline_mode = #tpu.pipeline_mode<synchronous>, transform_indices = @transform_20, window_bounds = array<i64: 1, 32>}, {transform_indices = @transform_21, window_bounds = array<i64: 1, 8, 32>}]} {
    %c0 = arith.constant 0 : index
    %c0_0 = arith.constant 0 : index
    %c0_1 = arith.constant 0 : index
    %0 = vector.load %arg1[%c0, %c0_0, %c0_1] : memref<1x8x32xf32, #tpu.memory_space<vmem>>, vector<1x8x32xf32>
    %1 = vector.shape_cast %0 : vector<1x8x32xf32> to vector<8x32xf32>
    %c0_2 = arith.constant 0 : index
    %c0_3 = arith.constant 0 : index
    %c0_4 = arith.constant 0 : index
    %2 = vector.load %arg2[%c0_2, %c0_3, %c0_4] : memref<1x10x32xf32, #tpu.memory_space<vmem>>, vector<1x10x32xf32>
    %3 = vector.shape_cast %2 : vector<1x10x32xf32> to vector<10x32xf32>
    %c0_5 = arith.constant 0 : index
    %c0_6 = arith.constant 0 : index
    %c0_7 = arith.constant 0 : index
    %4 = vector.load %arg4[%c0_5, %c0_6, %c0_7] : memref<3x32x32xf32, #tpu.memory_space<vmem>>, vector<1x32x32xf32>
    %5 = vector.shape_cast %4 : vector<1x32x32xf32> to vector<32x32xf32>
    %cst = arith.constant dense<0.000000e+00> : vector<8x32xf32>
    %6 = tpu.matmul %1, %5, %cst {dimension_numbers = #tpu.dot_dimension_numbers<[1], [0], [0], [1], [0, 0, 1, 1], [], []>} : vector<8x32xf32>, vector<32x32xf32>, vector<8x32xf32> -> vector<8x32xf32>
    %c0_8 = arith.constant 0 : index
    %c0_9 = arith.constant 0 : index
    %c0_10 = arith.constant 0 : index
    %7 = vector.load %arg5[%c0_8, %c0_9, %c0_10] : memref<3x1x32xf32, #tpu.memory_space<vmem>>, vector<1x1x32xf32>
    %8 = vector.shape_cast %7 : vector<1x1x32xf32> to vector<1x32xf32>
    %9 = vector.broadcast %8 : vector<1x32xf32> to vector<8x32xf32>
    %10 = arith.addf %6, %9 : vector<8x32xf32>
    %c1 = arith.constant 1 : index
    %c0_11 = arith.constant 0 : index
    %c0_12 = arith.constant 0 : index
    %11 = vector.load %arg4[%c1, %c0_11, %c0_12] : memref<3x32x32xf32, #tpu.memory_space<vmem>>, vector<1x32x32xf32>
    %12 = vector.shape_cast %11 : vector<1x32x32xf32> to vector<32x32xf32>
    %cst_13 = arith.constant dense<0.000000e+00> : vector<8x32xf32>
    %13 = tpu.matmul %1, %12, %cst_13 {dimension_numbers = #tpu.dot_dimension_numbers<[1], [0], [0], [1], [0, 0, 1, 1], [], []>} : vector<8x32xf32>, vector<32x32xf32>, vector<8x32xf32> -> vector<8x32xf32>
    %c1_14 = arith.constant 1 : index
    %c0_15 = arith.constant 0 : index
    %c0_16 = arith.constant 0 : index
    %14 = vector.load %arg5[%c1_14, %c0_15, %c0_16] : memref<3x1x32xf32, #tpu.memory_space<vmem>>, vector<1x1x32xf32>
    %15 = vector.shape_cast %14 : vector<1x1x32xf32> to vector<1x32xf32>
    %16 = vector.broadcast %15 : vector<1x32xf32> to vector<8x32xf32>
    %17 = arith.addf %13, %16 : vector<8x32xf32>
    %c2 = arith.constant 2 : index
    %c0_17 = arith.constant 0 : index
    %c0_18 = arith.constant 0 : index
    %18 = vector.load %arg4[%c2, %c0_17, %c0_18] : memref<3x32x32xf32, #tpu.memory_space<vmem>>, vector<1x32x32xf32>
    %19 = vector.shape_cast %18 : vector<1x32x32xf32> to vector<32x32xf32>
    %cst_19 = arith.constant dense<0.000000e+00> : vector<8x32xf32>
    %20 = tpu.matmul %1, %19, %cst_19 {dimension_numbers = #tpu.dot_dimension_numbers<[1], [0], [0], [1], [0, 0, 1, 1], [], []>} : vector<8x32xf32>, vector<32x32xf32>, vector<8x32xf32> -> vector<8x32xf32>
    %c2_20 = arith.constant 2 : index
    %c0_21 = arith.constant 0 : index
    %c0_22 = arith.constant 0 : index
    %21 = vector.load %arg5[%c2_20, %c0_21, %c0_22] : memref<3x1x32xf32, #tpu.memory_space<vmem>>, vector<1x1x32xf32>
    %22 = vector.shape_cast %21 : vector<1x1x32xf32> to vector<1x32xf32>
    %23 = vector.broadcast %22 : vector<1x32xf32> to vector<8x32xf32>
    %24 = arith.addf %20, %23 : vector<8x32xf32>
    %cst_23 = arith.constant 0.000000e+00 : f32
    %25 = vector.broadcast %cst_23 : f32 to vector<8x32xf32>
    %c0_24 = arith.constant 0 : index
    %c0_25 = arith.constant 0 : index
    %c0_26 = arith.constant 0 : index
    %26 = vector.load %arg3[%c0_24, %c0_25, %c0_26] : memref<4x1x32xf32, #tpu.memory_space<vmem>>, vector<1x1x32xf32>
    %27 = vector.shape_cast %26 : vector<1x1x32xf32> to vector<1x32xf32>
    %28 = vector.broadcast %27 : vector<1x32xf32> to vector<8x32xf32>
    %29 = arith.mulf %17, %28 : vector<8x32xf32>
    %30 = vector.broadcast %27 : vector<1x32xf32> to vector<8x32xf32>
    %31 = arith.mulf %24, %30 : vector<8x32xf32>
    %cst_27 = arith.constant dense<0.000000e+00> : vector<8x8xf32>
    %32 = tpu.matmul %10, %29, %cst_27 {dimension_numbers = #tpu.dot_dimension_numbers<[1], [1], [0], [0], [0, 0, 1, 0], [], []>} : vector<8x32xf32>, vector<8x32xf32>, vector<8x8xf32> -> vector<8x8xf32>
    %cst_28 = arith.constant dense<0xFF800000> : vector<8xf32>
    %33 = vector.multi_reduction <maximumf>, %32, %cst_28 [1] : vector<8x8xf32> to vector<8xf32>
    %34 = vector.shape_cast %33 : vector<8xf32> to vector<8x1xf32>
    %35 = vector.broadcast %34 : vector<8x1xf32> to vector<8x8xf32>
    %36 = arith.subf %32, %35 : vector<8x8xf32>
    %37 = math.exp %36 : vector<8x8xf32>
    %cst_29 = arith.constant dense<0.000000e+00> : vector<8xf32>
    %38 = vector.multi_reduction <add>, %37, %cst_29 [1] : vector<8x8xf32> to vector<8xf32>
    %39 = vector.shape_cast %38 : vector<8xf32> to vector<8x1xf32>
    %40 = tpu.reciprocal %39 {approx = true} : vector<8x1xf32> -> vector<8x1xf32>
    %41 = arith.mulf %39, %40 : vector<8x1xf32>
    %cst_30 = arith.constant 2.000000e+00 : f32
    %42 = vector.broadcast %cst_30 : f32 to vector<8x1xf32>
    %43 = arith.subf %42, %41 : vector<8x1xf32>
    %44 = arith.mulf %40, %43 : vector<8x1xf32>
    %45 = vector.broadcast %44 : vector<8x1xf32> to vector<8x8xf32>
    %46 = arith.mulf %37, %45 : vector<8x8xf32>
    %cst_31 = arith.constant dense<0.000000e+00> : vector<8x32xf32>
    %47 = tpu.matmul %46, %31, %cst_31 {dimension_numbers = #tpu.dot_dimension_numbers<[1], [0], [0], [1], [0, 0, 1, 1], [], []>} : vector<8x8xf32>, vector<8x32xf32>, vector<8x32xf32> -> vector<8x32xf32>
    %48 = arith.addf %25, %47 : vector<8x32xf32>
    %c1_32 = arith.constant 1 : index
    %c0_33 = arith.constant 0 : index
    %c0_34 = arith.constant 0 : index
    %49 = vector.load %arg3[%c1_32, %c0_33, %c0_34] : memref<4x1x32xf32, #tpu.memory_space<vmem>>, vector<1x1x32xf32>
    %50 = vector.shape_cast %49 : vector<1x1x32xf32> to vector<1x32xf32>
    %51 = vector.broadcast %50 : vector<1x32xf32> to vector<8x32xf32>
    %52 = arith.mulf %17, %51 : vector<8x32xf32>
    %53 = vector.broadcast %50 : vector<1x32xf32> to vector<8x32xf32>
    %54 = arith.mulf %24, %53 : vector<8x32xf32>
    %cst_35 = arith.constant dense<0.000000e+00> : vector<8x8xf32>
    %55 = tpu.matmul %10, %52, %cst_35 {dimension_numbers = #tpu.dot_dimension_numbers<[1], [1], [0], [0], [0, 0, 1, 0], [], []>} : vector<8x32xf32>, vector<8x32xf32>, vector<8x8xf32> -> vector<8x8xf32>
    %cst_36 = arith.constant dense<0xFF800000> : vector<8xf32>
    %56 = vector.multi_reduction <maximumf>, %55, %cst_36 [1] : vector<8x8xf32> to vector<8xf32>
    %57 = vector.shape_cast %56 : vector<8xf32> to vector<8x1xf32>
    %58 = vector.broadcast %57 : vector<8x1xf32> to vector<8x8xf32>
    %59 = arith.subf %55, %58 : vector<8x8xf32>
    %60 = math.exp %59 : vector<8x8xf32>
    %cst_37 = arith.constant dense<0.000000e+00> : vector<8xf32>
    %61 = vector.multi_reduction <add>, %60, %cst_37 [1] : vector<8x8xf32> to vector<8xf32>
    %62 = vector.shape_cast %61 : vector<8xf32> to vector<8x1xf32>
    %63 = tpu.reciprocal %62 {approx = true} : vector<8x1xf32> -> vector<8x1xf32>
    %64 = arith.mulf %62, %63 : vector<8x1xf32>
    %cst_38 = arith.constant 2.000000e+00 : f32
    %65 = vector.broadcast %cst_38 : f32 to vector<8x1xf32>
    %66 = arith.subf %65, %64 : vector<8x1xf32>
    %67 = arith.mulf %63, %66 : vector<8x1xf32>
    %68 = vector.broadcast %67 : vector<8x1xf32> to vector<8x8xf32>
    %69 = arith.mulf %60, %68 : vector<8x8xf32>
    %cst_39 = arith.constant dense<0.000000e+00> : vector<8x32xf32>
    %70 = tpu.matmul %69, %54, %cst_39 {dimension_numbers = #tpu.dot_dimension_numbers<[1], [0], [0], [1], [0, 0, 1, 1], [], []>} : vector<8x8xf32>, vector<8x32xf32>, vector<8x32xf32> -> vector<8x32xf32>
    %71 = arith.addf %48, %70 : vector<8x32xf32>
    %c2_40 = arith.constant 2 : index
    %c0_41 = arith.constant 0 : index
    %c0_42 = arith.constant 0 : index
    %72 = vector.load %arg3[%c2_40, %c0_41, %c0_42] : memref<4x1x32xf32, #tpu.memory_space<vmem>>, vector<1x1x32xf32>
    %73 = vector.shape_cast %72 : vector<1x1x32xf32> to vector<1x32xf32>
    %74 = vector.broadcast %73 : vector<1x32xf32> to vector<8x32xf32>
    %75 = arith.mulf %17, %74 : vector<8x32xf32>
    %76 = vector.broadcast %73 : vector<1x32xf32> to vector<8x32xf32>
    %77 = arith.mulf %24, %76 : vector<8x32xf32>
    %cst_43 = arith.constant dense<0.000000e+00> : vector<8x8xf32>
    %78 = tpu.matmul %10, %75, %cst_43 {dimension_numbers = #tpu.dot_dimension_numbers<[1], [1], [0], [0], [0, 0, 1, 0], [], []>} : vector<8x32xf32>, vector<8x32xf32>, vector<8x8xf32> -> vector<8x8xf32>
    %cst_44 = arith.constant dense<0xFF800000> : vector<8xf32>
    %79 = vector.multi_reduction <maximumf>, %78, %cst_44 [1] : vector<8x8xf32> to vector<8xf32>
    %80 = vector.shape_cast %79 : vector<8xf32> to vector<8x1xf32>
    %81 = vector.broadcast %80 : vector<8x1xf32> to vector<8x8xf32>
    %82 = arith.subf %78, %81 : vector<8x8xf32>
    %83 = math.exp %82 : vector<8x8xf32>
    %cst_45 = arith.constant dense<0.000000e+00> : vector<8xf32>
    %84 = vector.multi_reduction <add>, %83, %cst_45 [1] : vector<8x8xf32> to vector<8xf32>
    %85 = vector.shape_cast %84 : vector<8xf32> to vector<8x1xf32>
    %86 = tpu.reciprocal %85 {approx = true} : vector<8x1xf32> -> vector<8x1xf32>
    %87 = arith.mulf %85, %86 : vector<8x1xf32>
    %cst_46 = arith.constant 2.000000e+00 : f32
    %88 = vector.broadcast %cst_46 : f32 to vector<8x1xf32>
    %89 = arith.subf %88, %87 : vector<8x1xf32>
    %90 = arith.mulf %86, %89 : vector<8x1xf32>
    %91 = vector.broadcast %90 : vector<8x1xf32> to vector<8x8xf32>
    %92 = arith.mulf %83, %91 : vector<8x8xf32>
    %cst_47 = arith.constant dense<0.000000e+00> : vector<8x32xf32>
    %93 = tpu.matmul %92, %77, %cst_47 {dimension_numbers = #tpu.dot_dimension_numbers<[1], [0], [0], [1], [0, 0, 1, 1], [], []>} : vector<8x8xf32>, vector<8x32xf32>, vector<8x32xf32> -> vector<8x32xf32>
    %94 = arith.addf %71, %93 : vector<8x32xf32>
    %c3 = arith.constant 3 : index
    %c0_48 = arith.constant 0 : index
    %c0_49 = arith.constant 0 : index
    %95 = vector.load %arg3[%c3, %c0_48, %c0_49] : memref<4x1x32xf32, #tpu.memory_space<vmem>>, vector<1x1x32xf32>
    %96 = vector.shape_cast %95 : vector<1x1x32xf32> to vector<1x32xf32>
    %97 = vector.broadcast %96 : vector<1x32xf32> to vector<8x32xf32>
    %98 = arith.mulf %17, %97 : vector<8x32xf32>
    %99 = vector.broadcast %96 : vector<1x32xf32> to vector<8x32xf32>
    %100 = arith.mulf %24, %99 : vector<8x32xf32>
    %cst_50 = arith.constant dense<0.000000e+00> : vector<8x8xf32>
    %101 = tpu.matmul %10, %98, %cst_50 {dimension_numbers = #tpu.dot_dimension_numbers<[1], [1], [0], [0], [0, 0, 1, 0], [], []>} : vector<8x32xf32>, vector<8x32xf32>, vector<8x8xf32> -> vector<8x8xf32>
    %cst_51 = arith.constant dense<0xFF800000> : vector<8xf32>
    %102 = vector.multi_reduction <maximumf>, %101, %cst_51 [1] : vector<8x8xf32> to vector<8xf32>
    %103 = vector.shape_cast %102 : vector<8xf32> to vector<8x1xf32>
    %104 = vector.broadcast %103 : vector<8x1xf32> to vector<8x8xf32>
    %105 = arith.subf %101, %104 : vector<8x8xf32>
    %106 = math.exp %105 : vector<8x8xf32>
    %cst_52 = arith.constant dense<0.000000e+00> : vector<8xf32>
    %107 = vector.multi_reduction <add>, %106, %cst_52 [1] : vector<8x8xf32> to vector<8xf32>
    %108 = vector.shape_cast %107 : vector<8xf32> to vector<8x1xf32>
    %109 = tpu.reciprocal %108 {approx = true} : vector<8x1xf32> -> vector<8x1xf32>
    %110 = arith.mulf %108, %109 : vector<8x1xf32>
    %cst_53 = arith.constant 2.000000e+00 : f32
    %111 = vector.broadcast %cst_53 : f32 to vector<8x1xf32>
    %112 = arith.subf %111, %110 : vector<8x1xf32>
    %113 = arith.mulf %109, %112 : vector<8x1xf32>
    %114 = vector.broadcast %113 : vector<8x1xf32> to vector<8x8xf32>
    %115 = arith.mulf %106, %114 : vector<8x8xf32>
    %cst_54 = arith.constant dense<0.000000e+00> : vector<8x32xf32>
    %116 = tpu.matmul %115, %100, %cst_54 {dimension_numbers = #tpu.dot_dimension_numbers<[1], [0], [0], [1], [0, 0, 1, 1], [], []>} : vector<8x8xf32>, vector<8x32xf32>, vector<8x32xf32> -> vector<8x32xf32>
    %117 = arith.addf %94, %116 : vector<8x32xf32>
    %c0_55 = arith.constant 0 : index
    %c0_56 = arith.constant 0 : index
    %118 = vector.load %arg6[%c0_55, %c0_56] : memref<32x32xf32, #tpu.memory_space<vmem>>, vector<32x32xf32>
    %cst_57 = arith.constant dense<0.000000e+00> : vector<8x32xf32>
    %119 = tpu.matmul %117, %118, %cst_57 {dimension_numbers = #tpu.dot_dimension_numbers<[1], [0], [0], [1], [0, 0, 1, 1], [], []>} : vector<8x32xf32>, vector<32x32xf32>, vector<8x32xf32> -> vector<8x32xf32>
    %c0_58 = arith.constant 0 : index
    %c0_59 = arith.constant 0 : index
    %120 = vector.load %arg7[%c0_58, %c0_59] : memref<1x32xf32, #tpu.memory_space<vmem>>, vector<1x32xf32>
    %121 = vector.broadcast %120 : vector<1x32xf32> to vector<8x32xf32>
    %122 = arith.addf %119, %121 : vector<8x32xf32>
    %123 = arith.addf %1, %122 : vector<8x32xf32>
    %cst_60 = arith.constant dense<0.000000e+00> : vector<8xf32>
    %124 = vector.multi_reduction <add>, %123, %cst_60 [1] : vector<8x32xf32> to vector<8xf32>
    %125 = vector.shape_cast %124 : vector<8xf32> to vector<8x1xf32>
    %cst_61 = arith.constant 3.200000e+01 : f32
    %126 = vector.broadcast %cst_61 : f32 to vector<8x1xf32>
    %127 = arith.divf %125, %126 : vector<8x1xf32>
    %128 = vector.broadcast %127 : vector<8x1xf32> to vector<8x32xf32>
    %129 = arith.subf %123, %128 : vector<8x32xf32>
    %130 = arith.mulf %129, %129 : vector<8x32xf32>
    %cst_62 = arith.constant dense<0.000000e+00> : vector<8xf32>
    %131 = vector.multi_reduction <add>, %130, %cst_62 [1] : vector<8x32xf32> to vector<8xf32>
    %132 = vector.shape_cast %131 : vector<8xf32> to vector<8x1xf32>
    %cst_63 = arith.constant 3.200000e+01 : f32
    %133 = vector.broadcast %cst_63 : f32 to vector<8x1xf32>
    %134 = arith.divf %132, %133 : vector<8x1xf32>
    %135 = vector.broadcast %127 : vector<8x1xf32> to vector<8x32xf32>
    %136 = arith.subf %123, %135 : vector<8x32xf32>
    %cst_64 = arith.constant 9.99999974E-6 : f32
    %137 = vector.broadcast %cst_64 : f32 to vector<8x1xf32>
    %138 = arith.addf %134, %137 : vector<8x1xf32>
    %139 = math.rsqrt %138 : vector<8x1xf32>
    %140 = vector.broadcast %139 : vector<8x1xf32> to vector<8x32xf32>
    %141 = arith.mulf %136, %140 : vector<8x32xf32>
    %c0_65 = arith.constant 0 : index
    %c0_66 = arith.constant 0 : index
    %142 = vector.load %arg8[%c0_65, %c0_66] : memref<1x32xf32, #tpu.memory_space<vmem>>, vector<1x32xf32>
    %143 = vector.broadcast %142 : vector<1x32xf32> to vector<8x32xf32>
    %144 = arith.mulf %141, %143 : vector<8x32xf32>
    %c0_67 = arith.constant 0 : index
    %c0_68 = arith.constant 0 : index
    %145 = vector.load %arg9[%c0_67, %c0_68] : memref<1x32xf32, #tpu.memory_space<vmem>>, vector<1x32xf32>
    %146 = vector.broadcast %145 : vector<1x32xf32> to vector<8x32xf32>
    %147 = arith.addf %144, %146 : vector<8x32xf32>
    %c0_69 = arith.constant 0 : index
    %c0_70 = arith.constant 0 : index
    %c0_71 = arith.constant 0 : index
    %148 = vector.load %arg10[%c0_69, %c0_70, %c0_71] : memref<3x32x32xf32, #tpu.memory_space<vmem>>, vector<1x32x32xf32>
    %149 = vector.shape_cast %148 : vector<1x32x32xf32> to vector<32x32xf32>
    %cst_72 = arith.constant dense<0.000000e+00> : vector<8x32xf32>
    %150 = tpu.matmul %147, %149, %cst_72 {dimension_numbers = #tpu.dot_dimension_numbers<[1], [0], [0], [1], [0, 0, 1, 1], [], []>} : vector<8x32xf32>, vector<32x32xf32>, vector<8x32xf32> -> vector<8x32xf32>
    %c0_73 = arith.constant 0 : index
    %c0_74 = arith.constant 0 : index
    %c0_75 = arith.constant 0 : index
    %151 = vector.load %arg11[%c0_73, %c0_74, %c0_75] : memref<3x1x32xf32, #tpu.memory_space<vmem>>, vector<1x1x32xf32>
    %152 = vector.shape_cast %151 : vector<1x1x32xf32> to vector<1x32xf32>
    %153 = vector.broadcast %152 : vector<1x32xf32> to vector<8x32xf32>
    %154 = arith.addf %150, %153 : vector<8x32xf32>
    %c1_76 = arith.constant 1 : index
    %c0_77 = arith.constant 0 : index
    %c0_78 = arith.constant 0 : index
    %155 = vector.load %arg10[%c1_76, %c0_77, %c0_78] : memref<3x32x32xf32, #tpu.memory_space<vmem>>, vector<1x32x32xf32>
    %156 = vector.shape_cast %155 : vector<1x32x32xf32> to vector<32x32xf32>
    %cst_79 = arith.constant dense<0.000000e+00> : vector<10x32xf32>
    %157 = tpu.matmul %3, %156, %cst_79 {dimension_numbers = #tpu.dot_dimension_numbers<[1], [0], [0], [1], [0, 0, 1, 1], [], []>} : vector<10x32xf32>, vector<32x32xf32>, vector<10x32xf32> -> vector<10x32xf32>
    %c1_80 = arith.constant 1 : index
    %c0_81 = arith.constant 0 : index
    %c0_82 = arith.constant 0 : index
    %158 = vector.load %arg11[%c1_80, %c0_81, %c0_82] : memref<3x1x32xf32, #tpu.memory_space<vmem>>, vector<1x1x32xf32>
    %159 = vector.shape_cast %158 : vector<1x1x32xf32> to vector<1x32xf32>
    %160 = vector.broadcast %159 : vector<1x32xf32> to vector<10x32xf32>
    %161 = arith.addf %157, %160 : vector<10x32xf32>
    %c2_83 = arith.constant 2 : index
    %c0_84 = arith.constant 0 : index
    %c0_85 = arith.constant 0 : index
    %162 = vector.load %arg10[%c2_83, %c0_84, %c0_85] : memref<3x32x32xf32, #tpu.memory_space<vmem>>, vector<1x32x32xf32>
    %163 = vector.shape_cast %162 : vector<1x32x32xf32> to vector<32x32xf32>
    %cst_86 = arith.constant dense<0.000000e+00> : vector<10x32xf32>
    %164 = tpu.matmul %3, %163, %cst_86 {dimension_numbers = #tpu.dot_dimension_numbers<[1], [0], [0], [1], [0, 0, 1, 1], [], []>} : vector<10x32xf32>, vector<32x32xf32>, vector<10x32xf32> -> vector<10x32xf32>
    %c2_87 = arith.constant 2 : index
    %c0_88 = arith.constant 0 : index
    %c0_89 = arith.constant 0 : index
    %165 = vector.load %arg11[%c2_87, %c0_88, %c0_89] : memref<3x1x32xf32, #tpu.memory_space<vmem>>, vector<1x1x32xf32>
    %166 = vector.shape_cast %165 : vector<1x1x32xf32> to vector<1x32xf32>
    %167 = vector.broadcast %166 : vector<1x32xf32> to vector<10x32xf32>
    %168 = arith.addf %164, %167 : vector<10x32xf32>
    %cst_90 = arith.constant 0.000000e+00 : f32
    %169 = vector.broadcast %cst_90 : f32 to vector<8x32xf32>
    %c0_91 = arith.constant 0 : index
    %c0_92 = arith.constant 0 : index
    %c0_93 = arith.constant 0 : index
    %170 = vector.load %arg3[%c0_91, %c0_92, %c0_93] : memref<4x1x32xf32, #tpu.memory_space<vmem>>, vector<1x1x32xf32>
    %171 = vector.shape_cast %170 : vector<1x1x32xf32> to vector<1x32xf32>
    %172 = vector.broadcast %171 : vector<1x32xf32> to vector<10x32xf32>
    %173 = arith.mulf %161, %172 : vector<10x32xf32>
    %174 = vector.broadcast %171 : vector<1x32xf32> to vector<10x32xf32>
    %175 = arith.mulf %168, %174 : vector<10x32xf32>
    %cst_94 = arith.constant dense<0.000000e+00> : vector<8x10xf32>
    %176 = tpu.matmul %154, %173, %cst_94 {dimension_numbers = #tpu.dot_dimension_numbers<[1], [1], [0], [0], [0, 0, 1, 0], [], []>} : vector<8x32xf32>, vector<10x32xf32>, vector<8x10xf32> -> vector<8x10xf32>
    %cst_95 = arith.constant dense<0xFF800000> : vector<8xf32>
    %177 = vector.multi_reduction <maximumf>, %176, %cst_95 [1] : vector<8x10xf32> to vector<8xf32>
    %178 = vector.shape_cast %177 : vector<8xf32> to vector<8x1xf32>
    %179 = vector.broadcast %178 : vector<8x1xf32> to vector<8x10xf32>
    %180 = arith.subf %176, %179 : vector<8x10xf32>
    %181 = math.exp %180 : vector<8x10xf32>
    %cst_96 = arith.constant dense<0.000000e+00> : vector<8xf32>
    %182 = vector.multi_reduction <add>, %181, %cst_96 [1] : vector<8x10xf32> to vector<8xf32>
    %183 = vector.shape_cast %182 : vector<8xf32> to vector<8x1xf32>
    %184 = tpu.reciprocal %183 {approx = true} : vector<8x1xf32> -> vector<8x1xf32>
    %185 = arith.mulf %183, %184 : vector<8x1xf32>
    %cst_97 = arith.constant 2.000000e+00 : f32
    %186 = vector.broadcast %cst_97 : f32 to vector<8x1xf32>
    %187 = arith.subf %186, %185 : vector<8x1xf32>
    %188 = arith.mulf %184, %187 : vector<8x1xf32>
    %189 = vector.broadcast %188 : vector<8x1xf32> to vector<8x10xf32>
    %190 = arith.mulf %181, %189 : vector<8x10xf32>
    %cst_98 = arith.constant dense<0.000000e+00> : vector<8x32xf32>
    %191 = tpu.matmul %190, %175, %cst_98 {dimension_numbers = #tpu.dot_dimension_numbers<[1], [0], [0], [1], [0, 0, 1, 1], [], []>} : vector<8x10xf32>, vector<10x32xf32>, vector<8x32xf32> -> vector<8x32xf32>
    %192 = arith.addf %169, %191 : vector<8x32xf32>
    %c1_99 = arith.constant 1 : index
    %c0_100 = arith.constant 0 : index
    %c0_101 = arith.constant 0 : index
    %193 = vector.load %arg3[%c1_99, %c0_100, %c0_101] : memref<4x1x32xf32, #tpu.memory_space<vmem>>, vector<1x1x32xf32>
    %194 = vector.shape_cast %193 : vector<1x1x32xf32> to vector<1x32xf32>
    %195 = vector.broadcast %194 : vector<1x32xf32> to vector<10x32xf32>
    %196 = arith.mulf %161, %195 : vector<10x32xf32>
    %197 = vector.broadcast %194 : vector<1x32xf32> to vector<10x32xf32>
    %198 = arith.mulf %168, %197 : vector<10x32xf32>
    %cst_102 = arith.constant dense<0.000000e+00> : vector<8x10xf32>
    %199 = tpu.matmul %154, %196, %cst_102 {dimension_numbers = #tpu.dot_dimension_numbers<[1], [1], [0], [0], [0, 0, 1, 0], [], []>} : vector<8x32xf32>, vector<10x32xf32>, vector<8x10xf32> -> vector<8x10xf32>
    %cst_103 = arith.constant dense<0xFF800000> : vector<8xf32>
    %200 = vector.multi_reduction <maximumf>, %199, %cst_103 [1] : vector<8x10xf32> to vector<8xf32>
    %201 = vector.shape_cast %200 : vector<8xf32> to vector<8x1xf32>
    %202 = vector.broadcast %201 : vector<8x1xf32> to vector<8x10xf32>
    %203 = arith.subf %199, %202 : vector<8x10xf32>
    %204 = math.exp %203 : vector<8x10xf32>
    %cst_104 = arith.constant dense<0.000000e+00> : vector<8xf32>
    %205 = vector.multi_reduction <add>, %204, %cst_104 [1] : vector<8x10xf32> to vector<8xf32>
    %206 = vector.shape_cast %205 : vector<8xf32> to vector<8x1xf32>
    %207 = tpu.reciprocal %206 {approx = true} : vector<8x1xf32> -> vector<8x1xf32>
    %208 = arith.mulf %206, %207 : vector<8x1xf32>
    %cst_105 = arith.constant 2.000000e+00 : f32
    %209 = vector.broadcast %cst_105 : f32 to vector<8x1xf32>
    %210 = arith.subf %209, %208 : vector<8x1xf32>
    %211 = arith.mulf %207, %210 : vector<8x1xf32>
    %212 = vector.broadcast %211 : vector<8x1xf32> to vector<8x10xf32>
    %213 = arith.mulf %204, %212 : vector<8x10xf32>
    %cst_106 = arith.constant dense<0.000000e+00> : vector<8x32xf32>
    %214 = tpu.matmul %213, %198, %cst_106 {dimension_numbers = #tpu.dot_dimension_numbers<[1], [0], [0], [1], [0, 0, 1, 1], [], []>} : vector<8x10xf32>, vector<10x32xf32>, vector<8x32xf32> -> vector<8x32xf32>
    %215 = arith.addf %192, %214 : vector<8x32xf32>
    %c2_107 = arith.constant 2 : index
    %c0_108 = arith.constant 0 : index
    %c0_109 = arith.constant 0 : index
    %216 = vector.load %arg3[%c2_107, %c0_108, %c0_109] : memref<4x1x32xf32, #tpu.memory_space<vmem>>, vector<1x1x32xf32>
    %217 = vector.shape_cast %216 : vector<1x1x32xf32> to vector<1x32xf32>
    %218 = vector.broadcast %217 : vector<1x32xf32> to vector<10x32xf32>
    %219 = arith.mulf %161, %218 : vector<10x32xf32>
    %220 = vector.broadcast %217 : vector<1x32xf32> to vector<10x32xf32>
    %221 = arith.mulf %168, %220 : vector<10x32xf32>
    %cst_110 = arith.constant dense<0.000000e+00> : vector<8x10xf32>
    %222 = tpu.matmul %154, %219, %cst_110 {dimension_numbers = #tpu.dot_dimension_numbers<[1], [1], [0], [0], [0, 0, 1, 0], [], []>} : vector<8x32xf32>, vector<10x32xf32>, vector<8x10xf32> -> vector<8x10xf32>
    %cst_111 = arith.constant dense<0xFF800000> : vector<8xf32>
    %223 = vector.multi_reduction <maximumf>, %222, %cst_111 [1] : vector<8x10xf32> to vector<8xf32>
    %224 = vector.shape_cast %223 : vector<8xf32> to vector<8x1xf32>
    %225 = vector.broadcast %224 : vector<8x1xf32> to vector<8x10xf32>
    %226 = arith.subf %222, %225 : vector<8x10xf32>
    %227 = math.exp %226 : vector<8x10xf32>
    %cst_112 = arith.constant dense<0.000000e+00> : vector<8xf32>
    %228 = vector.multi_reduction <add>, %227, %cst_112 [1] : vector<8x10xf32> to vector<8xf32>
    %229 = vector.shape_cast %228 : vector<8xf32> to vector<8x1xf32>
    %230 = tpu.reciprocal %229 {approx = true} : vector<8x1xf32> -> vector<8x1xf32>
    %231 = arith.mulf %229, %230 : vector<8x1xf32>
    %cst_113 = arith.constant 2.000000e+00 : f32
    %232 = vector.broadcast %cst_113 : f32 to vector<8x1xf32>
    %233 = arith.subf %232, %231 : vector<8x1xf32>
    %234 = arith.mulf %230, %233 : vector<8x1xf32>
    %235 = vector.broadcast %234 : vector<8x1xf32> to vector<8x10xf32>
    %236 = arith.mulf %227, %235 : vector<8x10xf32>
    %cst_114 = arith.constant dense<0.000000e+00> : vector<8x32xf32>
    %237 = tpu.matmul %236, %221, %cst_114 {dimension_numbers = #tpu.dot_dimension_numbers<[1], [0], [0], [1], [0, 0, 1, 1], [], []>} : vector<8x10xf32>, vector<10x32xf32>, vector<8x32xf32> -> vector<8x32xf32>
    %238 = arith.addf %215, %237 : vector<8x32xf32>
    %c3_115 = arith.constant 3 : index
    %c0_116 = arith.constant 0 : index
    %c0_117 = arith.constant 0 : index
    %239 = vector.load %arg3[%c3_115, %c0_116, %c0_117] : memref<4x1x32xf32, #tpu.memory_space<vmem>>, vector<1x1x32xf32>
    %240 = vector.shape_cast %239 : vector<1x1x32xf32> to vector<1x32xf32>
    %241 = vector.broadcast %240 : vector<1x32xf32> to vector<10x32xf32>
    %242 = arith.mulf %161, %241 : vector<10x32xf32>
    %243 = vector.broadcast %240 : vector<1x32xf32> to vector<10x32xf32>
    %244 = arith.mulf %168, %243 : vector<10x32xf32>
    %cst_118 = arith.constant dense<0.000000e+00> : vector<8x10xf32>
    %245 = tpu.matmul %154, %242, %cst_118 {dimension_numbers = #tpu.dot_dimension_numbers<[1], [1], [0], [0], [0, 0, 1, 0], [], []>} : vector<8x32xf32>, vector<10x32xf32>, vector<8x10xf32> -> vector<8x10xf32>
    %cst_119 = arith.constant dense<0xFF800000> : vector<8xf32>
    %246 = vector.multi_reduction <maximumf>, %245, %cst_119 [1] : vector<8x10xf32> to vector<8xf32>
    %247 = vector.shape_cast %246 : vector<8xf32> to vector<8x1xf32>
    %248 = vector.broadcast %247 : vector<8x1xf32> to vector<8x10xf32>
    %249 = arith.subf %245, %248 : vector<8x10xf32>
    %250 = math.exp %249 : vector<8x10xf32>
    %cst_120 = arith.constant dense<0.000000e+00> : vector<8xf32>
    %251 = vector.multi_reduction <add>, %250, %cst_120 [1] : vector<8x10xf32> to vector<8xf32>
    %252 = vector.shape_cast %251 : vector<8xf32> to vector<8x1xf32>
    %253 = tpu.reciprocal %252 {approx = true} : vector<8x1xf32> -> vector<8x1xf32>
    %254 = arith.mulf %252, %253 : vector<8x1xf32>
    %cst_121 = arith.constant 2.000000e+00 : f32
    %255 = vector.broadcast %cst_121 : f32 to vector<8x1xf32>
    %256 = arith.subf %255, %254 : vector<8x1xf32>
    %257 = arith.mulf %253, %256 : vector<8x1xf32>
    %258 = vector.broadcast %257 : vector<8x1xf32> to vector<8x10xf32>
    %259 = arith.mulf %250, %258 : vector<8x10xf32>
    %cst_122 = arith.constant dense<0.000000e+00> : vector<8x32xf32>
    %260 = tpu.matmul %259, %244, %cst_122 {dimension_numbers = #tpu.dot_dimension_numbers<[1], [0], [0], [1], [0, 0, 1, 1], [], []>} : vector<8x10xf32>, vector<10x32xf32>, vector<8x32xf32> -> vector<8x32xf32>
    %261 = arith.addf %238, %260 : vector<8x32xf32>
    %c0_123 = arith.constant 0 : index
    %c0_124 = arith.constant 0 : index
    %262 = vector.load %arg12[%c0_123, %c0_124] : memref<32x32xf32, #tpu.memory_space<vmem>>, vector<32x32xf32>
    %cst_125 = arith.constant dense<0.000000e+00> : vector<8x32xf32>
    %263 = tpu.matmul %261, %262, %cst_125 {dimension_numbers = #tpu.dot_dimension_numbers<[1], [0], [0], [1], [0, 0, 1, 1], [], []>} : vector<8x32xf32>, vector<32x32xf32>, vector<8x32xf32> -> vector<8x32xf32>
    %c0_126 = arith.constant 0 : index
    %c0_127 = arith.constant 0 : index
    %264 = vector.load %arg13[%c0_126, %c0_127] : memref<1x32xf32, #tpu.memory_space<vmem>>, vector<1x32xf32>
    %265 = vector.broadcast %264 : vector<1x32xf32> to vector<8x32xf32>
    %266 = arith.addf %263, %265 : vector<8x32xf32>
    %267 = arith.addf %147, %266 : vector<8x32xf32>
    %cst_128 = arith.constant dense<0.000000e+00> : vector<8xf32>
    %268 = vector.multi_reduction <add>, %267, %cst_128 [1] : vector<8x32xf32> to vector<8xf32>
    %269 = vector.shape_cast %268 : vector<8xf32> to vector<8x1xf32>
    %cst_129 = arith.constant 3.200000e+01 : f32
    %270 = vector.broadcast %cst_129 : f32 to vector<8x1xf32>
    %271 = arith.divf %269, %270 : vector<8x1xf32>
    %272 = vector.broadcast %271 : vector<8x1xf32> to vector<8x32xf32>
    %273 = arith.subf %267, %272 : vector<8x32xf32>
    %274 = arith.mulf %273, %273 : vector<8x32xf32>
    %cst_130 = arith.constant dense<0.000000e+00> : vector<8xf32>
    %275 = vector.multi_reduction <add>, %274, %cst_130 [1] : vector<8x32xf32> to vector<8xf32>
    %276 = vector.shape_cast %275 : vector<8xf32> to vector<8x1xf32>
    %cst_131 = arith.constant 3.200000e+01 : f32
    %277 = vector.broadcast %cst_131 : f32 to vector<8x1xf32>
    %278 = arith.divf %276, %277 : vector<8x1xf32>
    %279 = vector.broadcast %271 : vector<8x1xf32> to vector<8x32xf32>
    %280 = arith.subf %267, %279 : vector<8x32xf32>
    %cst_132 = arith.constant 9.99999974E-6 : f32
    %281 = vector.broadcast %cst_132 : f32 to vector<8x1xf32>
    %282 = arith.addf %278, %281 : vector<8x1xf32>
    %283 = math.rsqrt %282 : vector<8x1xf32>
    %284 = vector.broadcast %283 : vector<8x1xf32> to vector<8x32xf32>
    %285 = arith.mulf %280, %284 : vector<8x32xf32>
    %c0_133 = arith.constant 0 : index
    %c0_134 = arith.constant 0 : index
    %286 = vector.load %arg14[%c0_133, %c0_134] : memref<1x32xf32, #tpu.memory_space<vmem>>, vector<1x32xf32>
    %287 = vector.broadcast %286 : vector<1x32xf32> to vector<8x32xf32>
    %288 = arith.mulf %285, %287 : vector<8x32xf32>
    %c0_135 = arith.constant 0 : index
    %c0_136 = arith.constant 0 : index
    %289 = vector.load %arg15[%c0_135, %c0_136] : memref<1x32xf32, #tpu.memory_space<vmem>>, vector<1x32xf32>
    %290 = vector.broadcast %289 : vector<1x32xf32> to vector<8x32xf32>
    %291 = arith.addf %288, %290 : vector<8x32xf32>
    %c0_137 = arith.constant 0 : index
    %c0_138 = arith.constant 0 : index
    %292 = vector.load %arg16[%c0_137, %c0_138] : memref<32x64xf32, #tpu.memory_space<vmem>>, vector<32x64xf32>
    %cst_139 = arith.constant dense<0.000000e+00> : vector<8x64xf32>
    %293 = tpu.matmul %291, %292, %cst_139 {dimension_numbers = #tpu.dot_dimension_numbers<[1], [0], [0], [1], [0, 0, 1, 1], [], []>} : vector<8x32xf32>, vector<32x64xf32>, vector<8x64xf32> -> vector<8x64xf32>
    %c0_140 = arith.constant 0 : index
    %c0_141 = arith.constant 0 : index
    %294 = vector.load %arg17[%c0_140, %c0_141] : memref<1x64xf32, #tpu.memory_space<vmem>>, vector<1x64xf32>
    %295 = vector.broadcast %294 : vector<1x64xf32> to vector<8x64xf32>
    %296 = arith.addf %293, %295 : vector<8x64xf32>
    %cst_142 = arith.constant 0.000000e+00 : f32
    %297 = vector.broadcast %cst_142 : f32 to vector<8x64xf32>
    %298 = arith.maximumf %296, %297 : vector<8x64xf32>
    %c0_143 = arith.constant 0 : index
    %c0_144 = arith.constant 0 : index
    %299 = vector.load %arg18[%c0_143, %c0_144] : memref<64x32xf32, #tpu.memory_space<vmem>>, vector<64x32xf32>
    %cst_145 = arith.constant dense<0.000000e+00> : vector<8x32xf32>
    %300 = tpu.matmul %298, %299, %cst_145 {dimension_numbers = #tpu.dot_dimension_numbers<[1], [0], [0], [1], [0, 0, 1, 1], [], []>} : vector<8x64xf32>, vector<64x32xf32>, vector<8x32xf32> -> vector<8x32xf32>
    %c0_146 = arith.constant 0 : index
    %c0_147 = arith.constant 0 : index
    %301 = vector.load %arg19[%c0_146, %c0_147] : memref<1x32xf32, #tpu.memory_space<vmem>>, vector<1x32xf32>
    %302 = vector.broadcast %301 : vector<1x32xf32> to vector<8x32xf32>
    %303 = arith.addf %300, %302 : vector<8x32xf32>
    %304 = arith.addf %291, %303 : vector<8x32xf32>
    %cst_148 = arith.constant dense<0.000000e+00> : vector<8xf32>
    %305 = vector.multi_reduction <add>, %304, %cst_148 [1] : vector<8x32xf32> to vector<8xf32>
    %306 = vector.shape_cast %305 : vector<8xf32> to vector<8x1xf32>
    %cst_149 = arith.constant 3.200000e+01 : f32
    %307 = vector.broadcast %cst_149 : f32 to vector<8x1xf32>
    %308 = arith.divf %306, %307 : vector<8x1xf32>
    %309 = vector.broadcast %308 : vector<8x1xf32> to vector<8x32xf32>
    %310 = arith.subf %304, %309 : vector<8x32xf32>
    %311 = arith.mulf %310, %310 : vector<8x32xf32>
    %cst_150 = arith.constant dense<0.000000e+00> : vector<8xf32>
    %312 = vector.multi_reduction <add>, %311, %cst_150 [1] : vector<8x32xf32> to vector<8xf32>
    %313 = vector.shape_cast %312 : vector<8xf32> to vector<8x1xf32>
    %cst_151 = arith.constant 3.200000e+01 : f32
    %314 = vector.broadcast %cst_151 : f32 to vector<8x1xf32>
    %315 = arith.divf %313, %314 : vector<8x1xf32>
    %316 = vector.broadcast %308 : vector<8x1xf32> to vector<8x32xf32>
    %317 = arith.subf %304, %316 : vector<8x32xf32>
    %cst_152 = arith.constant 9.99999974E-6 : f32
    %318 = vector.broadcast %cst_152 : f32 to vector<8x1xf32>
    %319 = arith.addf %315, %318 : vector<8x1xf32>
    %320 = math.rsqrt %319 : vector<8x1xf32>
    %321 = vector.broadcast %320 : vector<8x1xf32> to vector<8x32xf32>
    %322 = arith.mulf %317, %321 : vector<8x32xf32>
    %c0_153 = arith.constant 0 : index
    %c0_154 = arith.constant 0 : index
    %323 = vector.load %arg20[%c0_153, %c0_154] : memref<1x32xf32, #tpu.memory_space<vmem>>, vector<1x32xf32>
    %324 = vector.broadcast %323 : vector<1x32xf32> to vector<8x32xf32>
    %325 = arith.mulf %322, %324 : vector<8x32xf32>
    %c0_155 = arith.constant 0 : index
    %c0_156 = arith.constant 0 : index
    %326 = vector.load %arg21[%c0_155, %c0_156] : memref<1x32xf32, #tpu.memory_space<vmem>>, vector<1x32xf32>
    %327 = vector.broadcast %326 : vector<1x32xf32> to vector<8x32xf32>
    %328 = arith.addf %325, %327 : vector<8x32xf32>
    %c0_157 = arith.constant 0 : index
    %c0_158 = arith.constant 0 : index
    %c0_159 = arith.constant 0 : index
    %329 = vector.load %arg22[%c0_157, %c0_158, %c0_159] : memref<1x8x32xf32, #tpu.memory_space<vmem>>, vector<1x8x32xf32>
    %330 = vector.shape_cast %329 : vector<1x8x32xf32> to vector<8x32xf32>
    %331 = vector.shape_cast %328 : vector<8x32xf32> to vector<1x8x32xf32>
    tpu.vector_store %arg22[%c0_157, %c0_158, %c0_159], %331 {strides = array<i32>} : memref<1x8x32xf32, #tpu.memory_space<vmem>>, vector<1x8x32xf32>,
    return
  }
  func.func @transform_0(%arg0: i32) -> (i32, i32, i32) {
    %c0_i32 = arith.constant 0 : i32
    %c0_i32_0 = arith.constant 0 : i32
    %c0_i32_1 = arith.constant 0 : i32
    return %arg0, %c0_i32, %c0_i32_0 : i32, i32, i32
  }
  func.func @transform_1(%arg0: i32) -> (i32, i32, i32) {
    %c0_i32 = arith.constant 0 : i32
    %c0_i32_0 = arith.constant 0 : i32
    %c0_i32_1 = arith.constant 0 : i32
    return %arg0, %c0_i32, %c0_i32_0 : i32, i32, i32
  }
  func.func @transform_2(%arg0: i32) -> (i32, i32, i32) {
    %c0_i32 = arith.constant 0 : i32
    %c0_i32_0 = arith.constant 0 : i32
    %c0_i32_1 = arith.constant 0 : i32
    %c0_i32_2 = arith.constant 0 : i32
    return %c0_i32, %c0_i32_0, %c0_i32_1 : i32, i32, i32
  }
  func.func @transform_3(%arg0: i32) -> (i32, i32, i32) {
    %c0_i32 = arith.constant 0 : i32
    %c0_i32_0 = arith.constant 0 : i32
    %c0_i32_1 = arith.constant 0 : i32
    %c0_i32_2 = arith.constant 0 : i32
    return %c0_i32, %c0_i32_0, %c0_i32_1 : i32, i32, i32
  }
  func.func @transform_4(%arg0: i32) -> (i32, i32, i32) {
    %c0_i32 = arith.constant 0 : i32
    %c0_i32_0 = arith.constant 0 : i32
    %c0_i32_1 = arith.constant 0 : i32
    %c0_i32_2 = arith.constant 0 : i32
    return %c0_i32, %c0_i32_0, %c0_i32_1 : i32, i32, i32
  }
  func.func @transform_5(%arg0: i32) -> (i32, i32) {
    %c0_i32 = arith.constant 0 : i32
    %c0_i32_0 = arith.constant 0 : i32
    %c0_i32_1 = arith.constant 0 : i32
    return %c0_i32, %c0_i32_0 : i32, i32
  }
  func.func @transform_6(%arg0: i32) -> (i32, i32) {
    %c0_i32 = arith.constant 0 : i32
    %c0_i32_0 = arith.constant 0 : i32
    %c0_i32_1 = arith.constant 0 : i32
    return %c0_i32, %c0_i32_0 : i32, i32
  }
  func.func @transform_7(%arg0: i32) -> (i32, i32) {
    %c0_i32 = arith.constant 0 : i32
    %c0_i32_0 = arith.constant 0 : i32
    %c0_i32_1 = arith.constant 0 : i32
    return %c0_i32, %c0_i32_0 : i32, i32
  }
  func.func @transform_8(%arg0: i32) -> (i32, i32) {
    %c0_i32 = arith.constant 0 : i32
    %c0_i32_0 = arith.constant 0 : i32
    %c0_i32_1 = arith.constant 0 : i32
    return %c0_i32, %c0_i32_0 : i32, i32
  }
  func.func @transform_9(%arg0: i32) -> (i32, i32, i32) {
    %c0_i32 = arith.constant 0 : i32
    %c0_i32_0 = arith.constant 0 : i32
    %c0_i32_1 = arith.constant 0 : i32
    %c0_i32_2 = arith.constant 0 : i32
    return %c0_i32, %c0_i32_0, %c0_i32_1 : i32, i32, i32
  }
  func.func @transform_10(%arg0: i32) -> (i32, i32, i32) {
    %c0_i32 = arith.constant 0 : i32
    %c0_i32_0 = arith.constant 0 : i32
    %c0_i32_1 = arith.constant 0 : i32
    %c0_i32_2 = arith.constant 0 : i32
    return %c0_i32, %c0_i32_0, %c0_i32_1 : i32, i32, i32
  }
  func.func @transform_11(%arg0: i32) -> (i32, i32) {
    %c0_i32 = arith.constant 0 : i32
    %c0_i32_0 = arith.constant 0 : i32
    %c0_i32_1 = arith.constant 0 : i32
    return %c0_i32, %c0_i32_0 : i32, i32
  }
  func.func @transform_12(%arg0: i32) -> (i32, i32) {
    %c0_i32 = arith.constant 0 : i32
    %c0_i32_0 = arith.constant 0 : i32
    %c0_i32_1 = arith.constant 0 : i32
    return %c0_i32, %c0_i32_0 : i32, i32
  }
  func.func @transform_13(%arg0: i32) -> (i32, i32) {
    %c0_i32 = arith.constant 0 : i32
    %c0_i32_0 = arith.constant 0 : i32
    %c0_i32_1 = arith.constant 0 : i32
    return %c0_i32, %c0_i32_0 : i32, i32
  }
  func.func @transform_14(%arg0: i32) -> (i32, i32) {
    %c0_i32 = arith.constant 0 : i32
    %c0_i32_0 = arith.constant 0 : i32
    %c0_i32_1 = arith.constant 0 : i32
    return %c0_i32, %c0_i32_0 : i32, i32
  }
  func.func @transform_15(%arg0: i32) -> (i32, i32) {
    %c0_i32 = arith.constant 0 : i32
    %c0_i32_0 = arith.constant 0 : i32
    %c0_i32_1 = arith.constant 0 : i32
    return %c0_i32, %c0_i32_0 : i32, i32
  }
  func.func @transform_16(%arg0: i32) -> (i32, i32) {
    %c0_i32 = arith.constant 0 : i32
    %c0_i32_0 = arith.constant 0 : i32
    %c0_i32_1 = arith.constant 0 : i32
    return %c0_i32, %c0_i32_0 : i32, i32
  }
  func.func @transform_17(%arg0: i32) -> (i32, i32) {
    %c0_i32 = arith.constant 0 : i32
    %c0_i32_0 = arith.constant 0 : i32
    %c0_i32_1 = arith.constant 0 : i32
    return %c0_i32, %c0_i32_0 : i32, i32
  }
  func.func @transform_18(%arg0: i32) -> (i32, i32) {
    %c0_i32 = arith.constant 0 : i32
    %c0_i32_0 = arith.constant 0 : i32
    %c0_i32_1 = arith.constant 0 : i32
    return %c0_i32, %c0_i32_0 : i32, i32
  }
  func.func @transform_19(%arg0: i32) -> (i32, i32) {
    %c0_i32 = arith.constant 0 : i32
    %c0_i32_0 = arith.constant 0 : i32
    %c0_i32_1 = arith.constant 0 : i32
    return %c0_i32, %c0_i32_0 : i32, i32
  }
  func.func @transform_20(%arg0: i32) -> (i32, i32) {
    %c0_i32 = arith.constant 0 : i32
    %c0_i32_0 = arith.constant 0 : i32
    %c0_i32_1 = arith.constant 0 : i32
    return %c0_i32, %c0_i32_0 : i32, i32
  }
  func.func @transform_21(%arg0: i32) -> (i32, i32, i32) {
    %c0_i32 = arith.constant 0 : i32
    %c0_i32_0 = arith.constant 0 : i32
    %c0_i32_1 = arith.constant 0 : i32
    return %arg0, %c0_i32, %c0_i32_0 : i32, i32, i32
  }
}

</mosaic_0001>

<llo_original>
// kernel: tpu_custom_call.1
$region0: #{tpu_custom_call.1}
  #allocation0 [shape = 'u32[]', space=smem, size = 0x4, offset = 0x4, fixed_abs, tag = 'smem constant byte address 0x4 - core index']
  #allocation1 [shape = 'u32[144,128]{1,0:T(1,128)}', space=vmem, size = 0x12000, scoped, tag = 'internal scratch']
  %s0 = inlined_call_operand.hbm [shape: f32[2,8,32], index: 0, kind: input, shape index: {}]
  %s1 = inlined_call_operand.vmem [shape: f32[2,10,32], index: 1, kind: input, shape index: {}]
  %s2 = inlined_call_operand.hbm [shape: f32[4,1,32], index: 2, kind: input, shape index: {}]
  %s3 = inlined_call_operand.vmem [shape: f32[3,32,32], index: 3, kind: input, shape index: {}]
  %s4 = inlined_call_operand.hbm [shape: f32[3,1,32], index: 4, kind: input, shape index: {}]
  %s5 = inlined_call_operand.vmem [shape: f32[32,32], index: 5, kind: input, shape index: {}]
  %s6 = inlined_call_operand.hbm [shape: f32[1,32], index: 6, kind: input, shape index: {}]
  %s7 = inlined_call_operand.hbm [shape: f32[1,32], index: 7, kind: input, shape index: {}]
  %s8 = inlined_call_operand.vmem [shape: f32[1,32], index: 8, kind: input, shape index: {}]
  %s9 = inlined_call_operand.hbm [shape: f32[3,32,32], index: 9, kind: input, shape index: {}]
  %s10 = inlined_call_operand.vmem [shape: f32[3,1,32], index: 10, kind: input, shape index: {}]
  %s11 = inlined_call_operand.vmem [shape: f32[32,32], index: 11, kind: input, shape index: {}]
  %s12 = inlined_call_operand.vmem [shape: f32[1,32], index: 12, kind: input, shape index: {}]
  %s13 = inlined_call_operand.vmem [shape: f32[1,32], index: 13, kind: input, shape index: {}]
  %s14 = inlined_call_operand.vmem [shape: f32[1,32], index: 14, kind: input, shape index: {}]
  %s15 = inlined_call_operand.hbm [shape: f32[32,64], index: 15, kind: input, shape index: {}]
  %s16 = inlined_call_operand.vmem [shape: f32[1,64], index: 16, kind: input, shape index: {}]
  %s17 = inlined_call_operand.vmem [shape: f32[64,32], index: 17, kind: input, shape index: {}]
  %s18 = inlined_call_operand.vmem [shape: f32[1,32], index: 18, kind: input, shape index: {}]
  %s19 = inlined_call_operand.vmem [shape: f32[1,32], index: 19, kind: input, shape index: {}]
  %s20 = inlined_call_operand.vmem [shape: f32[1,32], index: 20, kind: input, shape index: {}]
  %s21 = inlined_call_operand.hbm [shape: f32[2,8,32], index: 21, kind: output, shape index: {}]
  %s22 = sld [smem:[#allocation0]]
  $region145: #{tpu_custom_call.1} parent=0
    _
  %s24 = ssub.s32 1, %s22
  %s25 = scalar_select 0, %s24, %s22
  $region1: #{tpu_custom_call.1} parent=0
    #allocation2 [shape = 'u8[8192]{0}', space=vmem, size = 0x2000, scoped, tag = 'input window, operand 0']
    #allocation3 [shape = 's32[2]{0}', space=sflag, size = 0x8, scoped, tag = 'scoped memory for tpu_custom_call.1']
    #allocation4 [shape = 's32[2]{0}', space=sflag, size = 0x8, scoped, tag = 'scoped memory for tpu_custom_call.1']
    #allocation5 [shape = 'u8[2048]{0}', space=vmem, size = 0x800, scoped, tag = 'input window, operand 2, single buffered']
    #allocation6 [shape = 's32[1]{0}', space=sflag, size = 0x4, scoped, tag = 'scoped memory for tpu_custom_call.1']
    #allocation7 [shape = 'u8[1536]{0}', space=vmem, size = 0x800, scoped, tag = 'input window, operand 4, single buffered']
    #allocation8 [shape = 'u8[512]{0}', space=vmem, size = 0x400, scoped, tag = 'input window, operand 6, single buffered']
    #allocation9 [shape = 's32[1]{0}', space=sflag, size = 0x4, scoped, tag = 'scoped memory for tpu_custom_call.1']
    #allocation10 [shape = 'u8[512]{0}', space=vmem, size = 0x400, scoped, tag = 'input window, operand 7, single buffered']
    #allocation11 [shape = 'u8[49152]{0}', space=vmem, size = 0xc000, scoped, tag = 'input window, operand 9, single buffered']
    #allocation12 [shape = 's32[1]{0}', space=sflag, size = 0x4, scoped, tag = 'scoped memory for tpu_custom_call.1']
    #allocation13 [shape = 'u8[16384]{0}', space=vmem, size = 0x4000, scoped, tag = 'input window, operand 15, single buffered']
    #allocation14 [shape = 'u8[8192]{0}', space=vmem, size = 0x2000, scoped, tag = 'output window, operand 0']
    %26 = vsyncpa [#allocation3], 0
    %s27 = scalar_lea.sflag [#allocation3], 1
    %28 = vsyncpa %s27, 0
    %29 = vsyncpa [#allocation6], 0
    %30 = vsyncpa [#allocation9], 0
    %31 = vsyncpa [#allocation12], 0
    %32 = vsyncpa [#allocation4], 0
    %s33 = scalar_lea.sflag [#allocation4], 1
    %34 = vsyncpa %s33, 0
    loop: start=0, step=1, limit=4
    $region2: #{tpu_custom_call.1} parent=1 // loop_pre_header
      _
    $region3: #{tpu_custom_call.1} parent=1 // loop_header
      %s36 = sphi 0, %s40
      %p37 = scmp.ge.s32.totalorder %s36, 4
      %s46 = sphi 0, %s48
      %s49 = sphi 0, %s46
      %s50 = sphi 0, %s49
      %s66 = sphi 0, %s50
      %s72 = sphi 0, %s74
      %s75 = sphi 0, %s72
      %s76 = sphi 0, %s75
      %s92 = sphi 0, %s76
      %s96 = sphi 0, %s96
      %s98 = sphi 0, %s96
      %s99 = sphi 0, %s98
      %s113 = sphi 0, %s99
      %s117 = sphi 0, %s117
      %s119 = sphi 0, %s117
      %s120 = sphi 0, %s119
      %s134 = sphi 0, %s120
      %s138 = sphi 0, %s138
      %s140 = sphi 0, %s138
      %s141 = sphi 0, %s140
      %s155 = sphi 0, %s141
      %s159 = sphi 0, %s159
      %s161 = sphi 0, %s159
      %s162 = sphi 0, %s161
      %s176 = sphi 0, %s162
      %s180 = sphi 0, %s180
      %s182 = sphi 0, %s180
      %s183 = sphi 0, %s182
      %s197 = sphi 0, %s183
      %s201 = sphi 0, %s201
      %s203 = sphi 0, %s201
      %s204 = sphi 0, %s203
      %s218 = sphi 0, %s204
      %s222 = sphi 0, %s222
      %s224 = sphi 0, %s222
      %s225 = sphi 0, %s224
      %s239 = sphi 0, %s225
      %s243 = sphi 0, %s243
      %s245 = sphi 0, %s243
      %s246 = sphi 0, %s245
      %s260 = sphi 0, %s246
      %s264 = sphi 0, %s264
      %s266 = sphi 0, %s264
      %s267 = sphi 0, %s266
      %s281 = sphi 0, %s267
      %s285 = sphi 0, %s285
      %s287 = sphi 0, %s285
      %s288 = sphi 0, %s287
      %s302 = sphi 0, %s288
      %s306 = sphi 0, %s306
      %s308 = sphi 0, %s306
      %s309 = sphi 0, %s308
      %s323 = sphi 0, %s309
      %s327 = sphi 0, %s327
      %s329 = sphi 0, %s327
      %s330 = sphi 0, %s329
      %s344 = sphi 0, %s330
      %s348 = sphi 0, %s348
      %s350 = sphi 0, %s348
      %s351 = sphi 0, %s350
      %s365 = sphi 0, %s351
      %s369 = sphi 0, %s369
      %s371 = sphi 0, %s369
      %s372 = sphi 0, %s371
      %s386 = sphi 0, %s372
      %s390 = sphi 0, %s390
      %s392 = sphi 0, %s390
      %s393 = sphi 0, %s392
      %s407 = sphi 0, %s393
      %s411 = sphi 0, %s411
      %s413 = sphi 0, %s411
      %s414 = sphi 0, %s413
      %s428 = sphi 0, %s414
      %s432 = sphi 0, %s432
      %s434 = sphi 0, %s432
      %s435 = sphi 0, %s434
      %s449 = sphi 0, %s435
      %s453 = sphi 0, %s453
      %s455 = sphi 0, %s453
      %s456 = sphi 0, %s455
      %s470 = sphi 0, %s456
      %s474 = sphi 0, %s474
      %s476 = sphi 0, %s474
      %s477 = sphi 0, %s476
      %s491 = sphi 0, %s477
      %s497 = sphi 0, %s499
      %s500 = sphi 0, %s497
      %s501 = sphi 0, %s500
      %s517 = sphi 0, %s501
    $region4: #{tpu_custom_call.1} parent=1 // loop_header_branch
      %39 = sbr.rel (%p37) target = $region8
    $region5: #{tpu_custom_call.1} parent=1 // loop_body
      %s41 = ssub.s32 %s36, 1
      %s42 = ssub.s32 %s36, 2
      %s43 = sadd.s32 %s36, 1
      %s44 = ssub.s32 %s36, %s43
      %p45 = scmp.eq.s32.totalorder %s44, 0
      %s47 = sadd.s32 %s46, 1
      %s48 = scalar_select %p45, %s46, %s47
      %p51 = pneg %p45
      %p52 = scmp.eq.s32.totalorder %s36, 1
      %p53 = por %p51, %p52
      %p54 = scmp.ne.s32.totalorder %s46, %s49
      %p55 = scmp.eq.s32.totalorder %s36, 0
      %p56 = por %p54, %p55
      %p57 = scmp.ne.s32.totalorder %s46, %s49
      %p58 = scmp.eq.s32.totalorder %s41, 1
      %p59 = por %p57, %p58
      %p60 = scmp.ne.s32.totalorder %s49, %s50
      %p61 = scmp.eq.s32.totalorder %s41, 0
      %p62 = por %p60, %p61
      %p63 = scmp.ne.s32.totalorder %s49, %s50
      %p64 = scmp.eq.s32.totalorder %s42, 1
      %p65 = por %p63, %p64
      %p67 = scmp.ne.s32.totalorder %s50, %s66
      %p68 = scmp.eq.s32.totalorder %s42, 0
      %p69 = por %p67, %p68
      %s70 = ssub.s32 %s36, %s43
      %p71 = scmp.eq.s32.totalorder %s70, 0
      %s73 = sadd.s32 %s72, 1
      %s74 = scalar_select %p71, %s72, %s73
      %p77 = pneg %p71
      %p78 = scmp.eq.s32.totalorder %s36, 1
      %p79 = por %p77, %p78
      %p80 = scmp.ne.s32.totalorder %s72, %s75
      %p81 = scmp.eq.s32.totalorder %s36, 0
      %p82 = por %p80, %p81
      %p83 = scmp.ne.s32.totalorder %s72, %s75
      %p84 = scmp.eq.s32.totalorder %s41, 1
      %p85 = por %p83, %p84
      %p86 = scmp.ne.s32.totalorder %s75, %s76
      %p87 = scmp.eq.s32.totalorder %s41, 0
      %p88 = por %p86, %p87
      %p89 = scmp.ne.s32.totalorder %s75, %s76
      %p90 = scmp.eq.s32.totalorder %s42, 1
      %p91 = por %p89, %p90
      %p93 = scmp.ne.s32.totalorder %s76, %s92
      %p94 = scmp.eq.s32.totalorder %s42, 0
      %p95 = por %p93, %p94
      %s97 = sadd.s32 %s96, 1
      %p100 = scmp.eq.s32.totalorder %s36, 1
      %p101 = scmp.ne.s32.totalorder %s96, %s98
      %p102 = scmp.eq.s32.totalorder %s36, 0
      %p103 = por %p101, %p102
      %p104 = scmp.ne.s32.totalorder %s96, %s98
      %p105 = scmp.eq.s32.totalorder %s41, 1
      %p106 = por %p104, %p105
      %p107 = scmp.ne.s32.totalorder %s98, %s99
      %p108 = scmp.eq.s32.totalorder %s41, 0
      %p109 = por %p107, %p108
      %p110 = scmp.ne.s32.totalorder %s98, %s99
      %p111 = scmp.eq.s32.totalorder %s42, 1
      %p112 = por %p110, %p111
      %p114 = scmp.ne.s32.totalorder %s99, %s113
      %p115 = scmp.eq.s32.totalorder %s42, 0
      %p116 = por %p114, %p115
      %s118 = sadd.s32 %s117, 1
      %p121 = scmp.eq.s32.totalorder %s36, 1
      %p122 = scmp.ne.s32.totalorder %s117, %s119
      %p123 = scmp.eq.s32.totalorder %s36, 0
      %p124 = por %p122, %p123
      %p125 = scmp.ne.s32.totalorder %s117, %s119
      %p126 = scmp.eq.s32.totalorder %s41, 1
      %p127 = por %p125, %p126
      %p128 = scmp.ne.s32.totalorder %s119, %s120
      %p129 = scmp.eq.s32.totalorder %s41, 0
      %p130 = por %p128, %p129
      %p131 = scmp.ne.s32.totalorder %s119, %s120
      %p132 = scmp.eq.s32.totalorder %s42, 1
      %p133 = por %p131, %p132
      %p135 = scmp.ne.s32.totalorder %s120, %s134
      %p136 = scmp.eq.s32.totalorder %s42, 0
      %p137 = por %p135, %p136
      %s139 = sadd.s32 %s138, 1
      %p142 = scmp.eq.s32.totalorder %s36, 1
      %p143 = scmp.ne.s32.totalorder %s138, %s140
      %p144 = scmp.eq.s32.totalorder %s36, 0
      %p145 = por %p143, %p144
      %p146 = scmp.ne.s32.totalorder %s138, %s140
      %p147 = scmp.eq.s32.totalorder %s41, 1
      %p148 = por %p146, %p147
      %p149 = scmp.ne.s32.totalorder %s140, %s141
      %p150 = scmp.eq.s32.totalorder %s41, 0
      %p151 = por %p149, %p150
      %p152 = scmp.ne.s32.totalorder %s140, %s141
      %p153 = scmp.eq.s32.totalorder %s42, 1
      %p154 = por %p152, %p153
      %p156 = scmp.ne.s32.totalorder %s141, %s155
      %p157 = scmp.eq.s32.totalorder %s42, 0
      %p158 = por %p156, %p157
      %s160 = sadd.s32 %s159, 1
      %p163 = scmp.eq.s32.totalorder %s36, 1
      %p164 = scmp.ne.s32.totalorder %s159, %s161
      %p165 = scmp.eq.s32.totalorder %s36, 0
      %p166 = por %p164, %p165
      %p167 = scmp.ne.s32.totalorder %s159, %s161
      %p168 = scmp.eq.s32.totalorder %s41, 1
      %p169 = por %p167, %p168
      %p170 = scmp.ne.s32.totalorder %s161, %s162
      %p171 = scmp.eq.s32.totalorder %s41, 0
      %p172 = por %p170, %p171
      %p173 = scmp.ne.s32.totalorder %s161, %s162
      %p174 = scmp.eq.s32.totalorder %s42, 1
      %p175 = por %p173, %p174
      %p177 = scmp.ne.s32.totalorder %s162, %s176
      %p178 = scmp.eq.s32.totalorder %s42, 0
      %p179 = por %p177, %p178
      %s181 = sadd.s32 %s180, 1
      %p184 = scmp.eq.s32.totalorder %s36, 1
      %p185 = scmp.ne.s32.totalorder %s180, %s182
      %p186 = scmp.eq.s32.totalorder %s36, 0
      %p187 = por %p185, %p186
      %p188 = scmp.ne.s32.totalorder %s180, %s182
      %p189 = scmp.eq.s32.totalorder %s41, 1
      %p190 = por %p188, %p189
      %p191 = scmp.ne.s32.totalorder %s182, %s183
      %p192 = scmp.eq.s32.totalorder %s41, 0
      %p193 = por %p191, %p192
      %p194 = scmp.ne.s32.totalorder %s182, %s183
      %p195 = scmp.eq.s32.totalorder %s42, 1
      %p196 = por %p194, %p195
      %p198 = scmp.ne.s32.totalorder %s183, %s197
      %p199 = scmp.eq.s32.totalorder %s42, 0
      %p200 = por %p198, %p199
      %s202 = sadd.s32 %s201, 1
      %p205 = scmp.eq.s32.totalorder %s36, 1
      %p206 = scmp.ne.s32.totalorder %s201, %s203
      %p207 = scmp.eq.s32.totalorder %s36, 0
      %p208 = por %p206, %p207
      %p209 = scmp.ne.s32.totalorder %s201, %s203
      %p210 = scmp.eq.s32.totalorder %s41, 1
      %p211 = por %p209, %p210
      %p212 = scmp.ne.s32.totalorder %s203, %s204
      %p213 = scmp.eq.s32.totalorder %s41, 0
      %p214 = por %p212, %p213
      %p215 = scmp.ne.s32.totalorder %s203, %s204
      %p216 = scmp.eq.s32.totalorder %s42, 1
      %p217 = por %p215, %p216
      %p219 = scmp.ne.s32.totalorder %s204, %s218
      %p220 = scmp.eq.s32.totalorder %s42, 0
      %p221 = por %p219, %p220
      %s223 = sadd.s32 %s222, 1
      %p226 = scmp.eq.s32.totalorder %s36, 1
      %p227 = scmp.ne.s32.totalorder %s222, %s224
      %p228 = scmp.eq.s32.totalorder %s36, 0
      %p229 = por %p227, %p228
      %p230 = scmp.ne.s32.totalorder %s222, %s224
      %p231 = scmp.eq.s32.totalorder %s41, 1
      %p232 = por %p230, %p231
      %p233 = scmp.ne.s32.totalorder %s224, %s225
      %p234 = scmp.eq.s32.totalorder %s41, 0
      %p235 = por %p233, %p234
      %p236 = scmp.ne.s32.totalorder %s224, %s225
      %p237 = scmp.eq.s32.totalorder %s42, 1
      %p238 = por %p236, %p237
      %p240 = scmp.ne.s32.totalorder %s225, %s239
      %p241 = scmp.eq.s32.totalorder %s42, 0
      %p242 = por %p240, %p241
      %s244 = sadd.s32 %s243, 1
      %p247 = scmp.eq.s32.totalorder %s36, 1
      %p248 = scmp.ne.s32.totalorder %s243, %s245
      %p249 = scmp.eq.s32.totalorder %s36, 0
      %p250 = por %p248, %p249
      %p251 = scmp.ne.s32.totalorder %s243, %s245
      %p252 = scmp.eq.s32.totalorder %s41, 1
      %p253 = por %p251, %p252
      %p254 = scmp.ne.s32.totalorder %s245, %s246
      %p255 = scmp.eq.s32.totalorder %s41, 0
      %p256 = por %p254, %p255
      %p257 = scmp.ne.s32.totalorder %s245, %s246
      %p258 = scmp.eq.s32.totalorder %s42, 1
      %p259 = por %p257, %p258
      %p261 = scmp.ne.s32.totalorder %s246, %s260
      %p262 = scmp.eq.s32.totalorder %s42, 0
      %p263 = por %p261, %p262
      %s265 = sadd.s32 %s264, 1
      %p268 = scmp.eq.s32.totalorder %s36, 1
      %p269 = scmp.ne.s32.totalorder %s264, %s266
      %p270 = scmp.eq.s32.totalorder %s36, 0
      %p271 = por %p269, %p270
      %p272 = scmp.ne.s32.totalorder %s264, %s266
      %p273 = scmp.eq.s32.totalorder %s41, 1
      %p274 = por %p272, %p273
      %p275 = scmp.ne.s32.totalorder %s266, %s267
      %p276 = scmp.eq.s32.totalorder %s41, 0
      %p277 = por %p275, %p276
      %p278 = scmp.ne.s32.totalorder %s266, %s267
      %p279 = scmp.eq.s32.totalorder %s42, 1
      %p280 = por %p278, %p279
      %p282 = scmp.ne.s32.totalorder %s267, %s281
      %p283 = scmp.eq.s32.totalorder %s42, 0
      %p284 = por %p282, %p283
      %s286 = sadd.s32 %s285, 1
      %p289 = scmp.eq.s32.totalorder %s36, 1
      %p290 = scmp.ne.s32.totalorder %s285, %s287
      %p291 = scmp.eq.s32.totalorder %s36, 0
      %p292 = por %p290, %p291
      %p293 = scmp.ne.s32.totalorder %s285, %s287
      %p294 = scmp.eq.s32.totalorder %s41, 1
      %p295 = por %p293, %p294
      %p296 = scmp.ne.s32.totalorder %s287, %s288
      %p297 = scmp.eq.s32.totalorder %s41, 0
      %p298 = por %p296, %p297
      %p299 = scmp.ne.s32.totalorder %s287, %s288
      %p300 = scmp.eq.s32.totalorder %s42, 1
      %p301 = por %p299, %p300
      %p303 = scmp.ne.s32.totalorder %s288, %s302
      %p304 = scmp.eq.s32.totalorder %s42, 0
      %p305 = por %p303, %p304
      %s307 = sadd.s32 %s306, 1
      %p310 = scmp.eq.s32.totalorder %s36, 1
      %p311 = scmp.ne.s32.totalorder %s306, %s308
      %p312 = scmp.eq.s32.totalorder %s36, 0
      %p313 = por %p311, %p312
      %p314 = scmp.ne.s32.totalorder %s306, %s308
      %p315 = scmp.eq.s32.totalorder %s41, 1
      %p316 = por %p314, %p315
      %p317 = scmp.ne.s32.totalorder %s308, %s309
      %p318 = scmp.eq.s32.totalorder %s41, 0
      %p319 = por %p317, %p318
      %p320 = scmp.ne.s32.totalorder %s308, %s309
      %p321 = scmp.eq.s32.totalorder %s42, 1
      %p322 = por %p320, %p321
      %p324 = scmp.ne.s32.totalorder %s309, %s323
      %p325 = scmp.eq.s32.totalorder %s42, 0
      %p326 = por %p324, %p325
      %s328 = sadd.s32 %s327, 1
      %p331 = scmp.eq.s32.totalorder %s36, 1
      %p332 = scmp.ne.s32.totalorder %s327, %s329
      %p333 = scmp.eq.s32.totalorder %s36, 0
      %p334 = por %p332, %p333
      %p335 = scmp.ne.s32.totalorder %s327, %s329
      %p336 = scmp.eq.s32.totalorder %s41, 1
      %p337 = por %p335, %p336
      %p338 = scmp.ne.s32.totalorder %s329, %s330
      %p339 = scmp.eq.s32.totalorder %s41, 0
      %p340 = por %p338, %p339
      %p341 = scmp.ne.s32.totalorder %s329, %s330
      %p342 = scmp.eq.s32.totalorder %s42, 1
      %p343 = por %p341, %p342
      %p345 = scmp.ne.s32.totalorder %s330, %s344
      %p346 = scmp.eq.s32.totalorder %s42, 0
      %p347 = por %p345, %p346
      %s349 = sadd.s32 %s348, 1
      %p352 = scmp.eq.s32.totalorder %s36, 1
      %p353 = scmp.ne.s32.totalorder %s348, %s350
      %p354 = scmp.eq.s32.totalorder %s36, 0
      %p355 = por %p353, %p354
      %p356 = scmp.ne.s32.totalorder %s348, %s350
      %p357 = scmp.eq.s32.totalorder %s41, 1
      %p358 = por %p356, %p357
      %p359 = scmp.ne.s32.totalorder %s350, %s351
      %p360 = scmp.eq.s32.totalorder %s41, 0
      %p361 = por %p359, %p360
      %p362 = scmp.ne.s32.totalorder %s350, %s351
      %p363 = scmp.eq.s32.totalorder %s42, 1
      %p364 = por %p362, %p363
      %p366 = scmp.ne.s32.totalorder %s351, %s365
      %p367 = scmp.eq.s32.totalorder %s42, 0
      %p368 = por %p366, %p367
      %s370 = sadd.s32 %s369, 1
      %p373 = scmp.eq.s32.totalorder %s36, 1
      %p374 = scmp.ne.s32.totalorder %s369, %s371
      %p375 = scmp.eq.s32.totalorder %s36, 0
      %p376 = por %p374, %p375
      %p377 = scmp.ne.s32.totalorder %s369, %s371
      %p378 = scmp.eq.s32.totalorder %s41, 1
      %p379 = por %p377, %p378
      %p380 = scmp.ne.s32.totalorder %s371, %s372
      %p381 = scmp.eq.s32.totalorder %s41, 0
      %p382 = por %p380, %p381
      %p383 = scmp.ne.s32.totalorder %s371, %s372
      %p384 = scmp.eq.s32.totalorder %s42, 1
      %p385 = por %p383, %p384
      %p387 = scmp.ne.s32.totalorder %s372, %s386
      %p388 = scmp.eq.s32.totalorder %s42, 0
      %p389 = por %p387, %p388
      %s391 = sadd.s32 %s390, 1
      %p394 = scmp.eq.s32.totalorder %s36, 1
      %p395 = scmp.ne.s32.totalorder %s390, %s392
      %p396 = scmp.eq.s32.totalorder %s36, 0
      %p397 = por %p395, %p396
      %p398 = scmp.ne.s32.totalorder %s390, %s392
      %p399 = scmp.eq.s32.totalorder %s41, 1
      %p400 = por %p398, %p399
      %p401 = scmp.ne.s32.totalorder %s392, %s393
      %p402 = scmp.eq.s32.totalorder %s41, 0
      %p403 = por %p401, %p402
      %p404 = scmp.ne.s32.totalorder %s392, %s393
      %p405 = scmp.eq.s32.totalorder %s42, 1
      %p406 = por %p404, %p405
      %p408 = scmp.ne.s32.totalorder %s393, %s407
      %p409 = scmp.eq.s32.totalorder %s42, 0
      %p410 = por %p408, %p409
      %s412 = sadd.s32 %s411, 1
      %p415 = scmp.eq.s32.totalorder %s36, 1
      %p416 = scmp.ne.s32.totalorder %s411, %s413
      %p417 = scmp.eq.s32.totalorder %s36, 0
      %p418 = por %p416, %p417
      %p419 = scmp.ne.s32.totalorder %s411, %s413
      %p420 = scmp.eq.s32.totalorder %s41, 1
      %p421 = por %p419, %p420
      %p422 = scmp.ne.s32.totalorder %s413, %s414
      %p423 = scmp.eq.s32.totalorder %s41, 0
      %p424 = por %p422, %p423
      %p425 = scmp.ne.s32.totalorder %s413, %s414
      %p426 = scmp.eq.s32.totalorder %s42, 1
      %p427 = por %p425, %p426
      %p429 = scmp.ne.s32.totalorder %s414, %s428
      %p430 = scmp.eq.s32.totalorder %s42, 0
      %p431 = por %p429, %p430
      %s433 = sadd.s32 %s432, 1
      %p436 = scmp.eq.s32.totalorder %s36, 1
      %p437 = scmp.ne.s32.totalorder %s432, %s434
      %p438 = scmp.eq.s32.totalorder %s36, 0
      %p439 = por %p437, %p438
      %p440 = scmp.ne.s32.totalorder %s432, %s434
      %p441 = scmp.eq.s32.totalorder %s41, 1
      %p442 = por %p440, %p441
      %p443 = scmp.ne.s32.totalorder %s434, %s435
      %p444 = scmp.eq.s32.totalorder %s41, 0
      %p445 = por %p443, %p444
      %p446 = scmp.ne.s32.totalorder %s434, %s435
      %p447 = scmp.eq.s32.totalorder %s42, 1
      %p448 = por %p446, %p447
      %p450 = scmp.ne.s32.totalorder %s435, %s449
      %p451 = scmp.eq.s32.totalorder %s42, 0
      %p452 = por %p450, %p451
      %s454 = sadd.s32 %s453, 1
      %p457 = scmp.eq.s32.totalorder %s36, 1
      %p458 = scmp.ne.s32.totalorder %s453, %s455
      %p459 = scmp.eq.s32.totalorder %s36, 0
      %p460 = por %p458, %p459
      %p461 = scmp.ne.s32.totalorder %s453, %s455
      %p462 = scmp.eq.s32.totalorder %s41, 1
      %p463 = por %p461, %p462
      %p464 = scmp.ne.s32.totalorder %s455, %s456
      %p465 = scmp.eq.s32.totalorder %s41, 0
      %p466 = por %p464, %p465
      %p467 = scmp.ne.s32.totalorder %s455, %s456
      %p468 = scmp.eq.s32.totalorder %s42, 1
      %p469 = por %p467, %p468
      %p471 = scmp.ne.s32.totalorder %s456, %s470
      %p472 = scmp.eq.s32.totalorder %s42, 0
      %p473 = por %p471, %p472
      %s475 = sadd.s32 %s474, 1
      %p478 = scmp.eq.s32.totalorder %s36, 1
      %p479 = scmp.ne.s32.totalorder %s474, %s476
      %p480 = scmp.eq.s32.totalorder %s36, 0
      %p481 = por %p479, %p480
      %p482 = scmp.ne.s32.totalorder %s474, %s476
      %p483 = scmp.eq.s32.totalorder %s41, 1
      %p484 = por %p482, %p483
      %p485 = scmp.ne.s32.totalorder %s476, %s477
      %p486 = scmp.eq.s32.totalorder %s41, 0
      %p487 = por %p485, %p486
      %p488 = scmp.ne.s32.totalorder %s476, %s477
      %p489 = scmp.eq.s32.totalorder %s42, 1
      %p490 = por %p488, %p489
      %p492 = scmp.ne.s32.totalorder %s477, %s491
      %p493 = scmp.eq.s32.totalorder %s42, 0
      %p494 = por %p492, %p493
      %s495 = ssub.s32 %s36, %s43
      %p496 = scmp.eq.s32.totalorder %s495, 0
      %s498 = sadd.s32 %s497, 1
      %s499 = scalar_select %p496, %s497, %s498
      %p502 = pneg %p496
      %p503 = scmp.eq.s32.totalorder %s36, 1
      %p504 = por %p502, %p503
      %p505 = scmp.ne.s32.totalorder %s497, %s500
      %p506 = scmp.eq.s32.totalorder %s36, 0
      %p507 = por %p505, %p506
      %p508 = scmp.ne.s32.totalorder %s497, %s500
      %p509 = scmp.eq.s32.totalorder %s41, 1
      %p510 = por %p508, %p509
      %p511 = scmp.ne.s32.totalorder %s500, %s501
      %p512 = scmp.eq.s32.totalorder %s41, 0
      %p513 = por %p511, %p512
      %p514 = scmp.ne.s32.totalorder %s500, %s501
      %p515 = scmp.eq.s32.totalorder %s42, 1
      %p516 = por %p514, %p515
      %p518 = scmp.ne.s32.totalorder %s501, %s517
      %p519 = scmp.eq.s32.totalorder %s42, 0
      %p520 = por %p518, %p519
      %p521 = scmp.le.s32.totalorder 1, %s36
      %p522 = scmp.lt.s32.totalorder %s36, 3
      %p523 = pnand %p521, %p522
      %p524 = pneg %p523
      // Predicated region
      $region9: #{tpu_custom_call.1} parent=5 // pred_check
        _
      $region10: #{tpu_custom_call.1} parent=5 // pred_check_branch
        %526 = sbr.rel (%p523) target = $region12
      $region11: #{tpu_custom_call.1} parent=5 // pred_region
        %s527 = ssub.s32 %s36, 1
        // Predicated region
        $region13: #{tpu_custom_call.1} parent=11 // pred_check
          %p528 = pneg %p109
        $region14: #{tpu_custom_call.1} parent=11 // pred_check_branch
          %530 = sbr.rel (%p528) target = $region16
        $region15: #{tpu_custom_call.1} parent=11 // pred_region
          %s532 = ssub.s32 64, 64
          %533 = vsyncadd [#allocation6], %s532
          %s534 = sshll.u32 [#allocation5], 4
          %s535 = int_to_ptr.vmem [resolvable:$true] %s534
          %540 = dma.hbm_to_vmem [thread:$0]  %s2, 64, %s535, [#allocation6], 16, 16, 1
        $region16: #{tpu_custom_call.1} parent=11 // pred_fallthru
          _
        // Predicated region
        $region17: #{tpu_custom_call.1} parent=11 // pred_check
          %p541 = pneg %p130
        $region18: #{tpu_custom_call.1} parent=11 // pred_check_branch
          %543 = sbr.rel (%p541) target = $region20
        $region19: #{tpu_custom_call.1} parent=11 // pred_region
          _
        $region20: #{tpu_custom_call.1} parent=11 // pred_fallthru
          _
        // Predicated region
        $region21: #{tpu_custom_call.1} parent=11 // pred_check
          %p544 = pneg %p151
        $region22: #{tpu_custom_call.1} parent=11 // pred_check_branch
          %546 = sbr.rel (%p544) target = $region24
        $region23: #{tpu_custom_call.1} parent=11 // pred_region
          %s548 = ssub.s32 48, 48
          %549 = vsyncadd [#allocation6], %s548
          %s550 = sshll.u32 [#allocation7], 4
          %s551 = int_to_ptr.vmem [resolvable:$true] %s550
          %556 = dma.hbm_to_vmem [thread:$0]  %s4, 48, %s551, [#allocation6], 16, 16, 1
        $region24: #{tpu_custom_call.1} parent=11 // pred_fallthru
          _
        // Predicated region
        $region25: #{tpu_custom_call.1} parent=11 // pred_check
          %p557 = pneg %p172
        $region26: #{tpu_custom_call.1} parent=11 // pred_check_branch
          %559 = sbr.rel (%p557) target = $region28
        $region27: #{tpu_custom_call.1} parent=11 // pred_region
          _
        $region28: #{tpu_custom_call.1} parent=11 // pred_fallthru
          _
        // Predicated region
        $region29: #{tpu_custom_call.1} parent=11 // pred_check
          %p560 = pneg %p193
        $region30: #{tpu_custom_call.1} parent=11 // pred_check_branch
          %562 = sbr.rel (%p560) target = $region32
        $region31: #{tpu_custom_call.1} parent=11 // pred_region
          %s564 = ssub.s32 16, 16
          %565 = vsyncadd [#allocation9], %s564
          %s567 = sshll.u32 [#allocation8], 4
          %s568 = int_to_ptr.vmem [resolvable:$true] %s567
          %570 = dma.hbm_to_vmem [thread:$0]  %s6, 16, %s568, [#allocation9]
        $region32: #{tpu_custom_call.1} parent=11 // pred_fallthru
          _
        // Predicated region
        $region33: #{tpu_custom_call.1} parent=11 // pred_check
          %p571 = pneg %p214
        $region34: #{tpu_custom_call.1} parent=11 // pred_check_branch
          %573 = sbr.rel (%p571) target = $region36
        $region35: #{tpu_custom_call.1} parent=11 // pred_region
          %s575 = ssub.s32 16, 16
          %576 = vsyncadd [#allocation9], %s575
          %s578 = sshll.u32 [#allocation10], 4
          %s579 = int_to_ptr.vmem [resolvable:$true] %s578
          %581 = dma.hbm_to_vmem [thread:$0]  %s7, 16, %s579, [#allocation9]
        $region36: #{tpu_custom_call.1} parent=11 // pred_fallthru
          _
        // Predicated region
        $region37: #{tpu_custom_call.1} parent=11 // pred_check
          %p582 = pneg %p235
        $region38: #{tpu_custom_call.1} parent=11 // pred_check_branch
          %584 = sbr.rel (%p582) target = $region40
        $region39: #{tpu_custom_call.1} parent=11 // pred_region
          _
        $region40: #{tpu_custom_call.1} parent=11 // pred_fallthru
          _
        // Predicated region
        $region41: #{tpu_custom_call.1} parent=11 // pred_check
          %p585 = pneg %p256
        $region42: #{tpu_custom_call.1} parent=11 // pred_check_branch
          %587 = sbr.rel (%p585) target = $region44
        $region43: #{tpu_custom_call.1} parent=11 // pred_region
          %s589 = ssub.s32 1536, 1536
          %590 = vsyncadd [#allocation12], %s589
          %s591 = sshll.u32 [#allocation11], 4
          %s592 = int_to_ptr.vmem [resolvable:$true] %s591
          %597 = dma.hbm_to_vmem [thread:$0]  %s9, 1536, %s592, [#allocation12], 128, 128, 8
        $region44: #{tpu_custom_call.1} parent=11 // pred_fallthru
          _
        // Predicated region
        $region45: #{tpu_custom_call.1} parent=11 // pred_check
          %p598 = pneg %p277
        $region46: #{tpu_custom_call.1} parent=11 // pred_check_branch
          %600 = sbr.rel (%p598) target = $region48
        $region47: #{tpu_custom_call.1} parent=11 // pred_region
          _
        $region48: #{tpu_custom_call.1} parent=11 // pred_fallthru
          _
        // Predicated region
        $region49: #{tpu_custom_call.1} parent=11 // pred_check
          %p601 = pneg %p298
        $region50: #{tpu_custom_call.1} parent=11 // pred_check_branch
          %603 = sbr.rel (%p601) target = $region52
        $region51: #{tpu_custom_call.1} parent=11 // pred_region
          _
        $region52: #{tpu_custom_call.1} parent=11 // pred_fallthru
          _
        // Predicated region
        $region53: #{tpu_custom_call.1} parent=11 // pred_check
          %p604 = pneg %p319
        $region54: #{tpu_custom_call.1} parent=11 // pred_check_branch
          %606 = sbr.rel (%p604) target = $region56
        $region55: #{tpu_custom_call.1} parent=11 // pred_region
          _
        $region56: #{tpu_custom_call.1} parent=11 // pred_fallthru
          _
        // Predicated region
        $region57: #{tpu_custom_call.1} parent=11 // pred_check
          %p607 = pneg %p340
        $region58: #{tpu_custom_call.1} parent=11 // pred_check_branch
          %609 = sbr.rel (%p607) target = $region60
        $region59: #{tpu_custom_call.1} parent=11 // pred_region
          _
        $region60: #{tpu_custom_call.1} parent=11 // pred_fallthru
          _
        // Predicated region
        $region61: #{tpu_custom_call.1} parent=11 // pred_check
          %p610 = pneg %p361
        $region62: #{tpu_custom_call.1} parent=11 // pred_check_branch
          %612 = sbr.rel (%p610) target = $region64
        $region63: #{tpu_custom_call.1} parent=11 // pred_region
          _
        $region64: #{tpu_custom_call.1} parent=11 // pred_fallthru
          _
        // Predicated region
        $region65: #{tpu_custom_call.1} parent=11 // pred_check
          %p613 = pneg %p382
        $region66: #{tpu_custom_call.1} parent=11 // pred_check_branch
          %615 = sbr.rel (%p613) target = $region68
        $region67: #{tpu_custom_call.1} parent=11 // pred_region
          %s617 = ssub.s32 512, 512
          %618 = vsyncadd [#allocation12], %s617
          %s619 = sshll.u32 [#allocation13], 4
          %s620 = int_to_ptr.vmem [resolvable:$true] %s619
          %625 = dma.hbm_to_vmem [thread:$0]  %s15, 512, %s620, [#allocation12], 128, 128, 8
        $region68: #{tpu_custom_call.1} parent=11 // pred_fallthru
          _
        // Predicated region
        $region69: #{tpu_custom_call.1} parent=11 // pred_check
          %p626 = pneg %p403
        $region70: #{tpu_custom_call.1} parent=11 // pred_check_branch
          %628 = sbr.rel (%p626) target = $region72
        $region71: #{tpu_custom_call.1} parent=11 // pred_region
          _
        $region72: #{tpu_custom_call.1} parent=11 // pred_fallthru
          _
        // Predicated region
        $region73: #{tpu_custom_call.1} parent=11 // pred_check
          %p629 = pneg %p424
        $region74: #{tpu_custom_call.1} parent=11 // pred_check_branch
          %631 = sbr.rel (%p629) target = $region76
        $region75: #{tpu_custom_call.1} parent=11 // pred_region
          _
        $region76: #{tpu_custom_call.1} parent=11 // pred_fallthru
          _
        // Predicated region
        $region77: #{tpu_custom_call.1} parent=11 // pred_check
          %p632 = pneg %p445
        $region78: #{tpu_custom_call.1} parent=11 // pred_check_branch
          %634 = sbr.rel (%p632) target = $region80
        $region79: #{tpu_custom_call.1} parent=11 // pred_region
          _
        $region80: #{tpu_custom_call.1} parent=11 // pred_fallthru
          _
        // Predicated region
        $region81: #{tpu_custom_call.1} parent=11 // pred_check
          %p635 = pneg %p466
        $region82: #{tpu_custom_call.1} parent=11 // pred_check_branch
          %637 = sbr.rel (%p635) target = $region84
        $region83: #{tpu_custom_call.1} parent=11 // pred_region
          _
        $region84: #{tpu_custom_call.1} parent=11 // pred_fallthru
          _
        // Predicated region
        $region85: #{tpu_custom_call.1} parent=11 // pred_check
          %p638 = pneg %p487
        $region86: #{tpu_custom_call.1} parent=11 // pred_check_branch
          %640 = sbr.rel (%p638) target = $region88
        $region87: #{tpu_custom_call.1} parent=11 // pred_region
          _
        $region88: #{tpu_custom_call.1} parent=11 // pred_fallthru
          _
      $region12: #{tpu_custom_call.1} parent=5 // pred_fallthru
        _
      %p641 = scmp.lt.s32.totalorder %s36, 2
      // Predicated region
      $region89: #{tpu_custom_call.1} parent=5 // pred_check
        %p642 = pneg %p641
      $region90: #{tpu_custom_call.1} parent=5 // pred_check_branch
        %644 = sbr.rel (%p642) target = $region92
      $region91: #{tpu_custom_call.1} parent=5 // pred_region
        // Predicated region
        $region93: #{tpu_custom_call.1} parent=91 // pred_check
          %p645 = pneg %p56
        $region94: #{tpu_custom_call.1} parent=91 // pred_check_branch
          %647 = sbr.rel (%p645) target = $region96
        $region95: #{tpu_custom_call.1} parent=91 // pred_region
          %s648 = sand.u32 %s46, 1
          %s649 = scalar_lea.sflag [#allocation3], %s648
          %s650 = sand.u32 %s46, 1
          %s651 = smul.addr %s650, 8
          %s652 = scalar_lea.vmem [#allocation2], %s651
          %s654 = ssub.s32 128, 128
          %655 = vsyncadd %s649, %s654
          %s656 = smul.addr %s36, 128
          %s657 = scalar_lea.hbm %s0, %s656
          %s659 = sshll.u32 %s652, 4
          %s660 = int_to_ptr.vmem [resolvable:$true] %s659
          %662 = dma.hbm_to_vmem [thread:$0]  %s657, 128, %s660, %s649
        $region96: #{tpu_custom_call.1} parent=91 // pred_fallthru
          _
        // Predicated region
        $region97: #{tpu_custom_call.1} parent=91 // pred_check
          %p663 = pneg %p82
        $region98: #{tpu_custom_call.1} parent=91 // pred_check_branch
          %665 = sbr.rel (%p663) target = $region100
        $region99: #{tpu_custom_call.1} parent=91 // pred_region
          %p666 = scmp.lt.s32.totalorder %s36, 1
          %s667 = scalar_select %p666, %s36, 1
          %s668 = smul.addr %s667, 2
          %s669 = smul.addr %s668, 8
          %s670 = scalar_lea.vmem %s1, %s669
        $region100: #{tpu_custom_call.1} parent=91 // pred_fallthru
          _
      $region92: #{tpu_custom_call.1} parent=5 // pred_fallthru
        _
      %p671 = scmp.le.s32.totalorder 1, %s36
      %p672 = scmp.lt.s32.totalorder %s36, 3
      %p673 = pnand %p671, %p672
      %p674 = pneg %p673
      // Predicated region
      $region101: #{tpu_custom_call.1} parent=5 // pred_check
        _
      $region102: #{tpu_custom_call.1} parent=5 // pred_check_branch
        %676 = sbr.rel (%p673) target = $region104
      $region103: #{tpu_custom_call.1} parent=5 // pred_region
        %s677 = ssub.s32 %s36, 1
        %s678 = sand.u32 %s49, 1
        %s679 = scalar_lea.sflag [#allocation3], %s678
        %s680 = sand.u32 %s49, 1
        %s681 = smul.addr %s680, 8
        %s682 = scalar_lea.vmem [#allocation2], %s681
        // Predicated region
        $region105: #{tpu_custom_call.1} parent=103 // pred_check
          %p683 = pneg %p62
        $region106: #{tpu_custom_call.1} parent=103 // pred_check_branch
          %685 = sbr.rel (%p683) target = $region108
        $region107: #{tpu_custom_call.1} parent=103 // pred_region
          %686 = dma.done %s679, 128
        $region108: #{tpu_custom_call.1} parent=103 // pred_fallthru
          _
        // Predicated region
        $region109: #{tpu_custom_call.1} parent=103 // pred_check
          %p687 = pneg %p109
        $region110: #{tpu_custom_call.1} parent=103 // pred_check_branch
          %689 = sbr.rel (%p687) target = $region112
        $region111: #{tpu_custom_call.1} parent=103 // pred_region
          %690 = dma.done [#allocation6], 64
        $region112: #{tpu_custom_call.1} parent=103 // pred_fallthru
          _
        // Predicated region
        $region113: #{tpu_custom_call.1} parent=103 // pred_check
          %p691 = pneg %p151
        $region114: #{tpu_custom_call.1} parent=103 // pred_check_branch
          %693 = sbr.rel (%p691) target = $region116
        $region115: #{tpu_custom_call.1} parent=103 // pred_region
          %694 = dma.done [#allocation6], 48
        $region116: #{tpu_custom_call.1} parent=103 // pred_fallthru
          _
        // Predicated region
        $region117: #{tpu_custom_call.1} parent=103 // pred_check
          %p695 = pneg %p193
        $region118: #{tpu_custom_call.1} parent=103 // pred_check_branch
          %697 = sbr.rel (%p695) target = $region120
        $region119: #{tpu_custom_call.1} parent=103 // pred_region
          %698 = dma.done [#allocation9], 16
        $region120: #{tpu_custom_call.1} parent=103 // pred_fallthru
          _
        // Predicated region
        $region121: #{tpu_custom_call.1} parent=103 // pred_check
          %p699 = pneg %p214
        $region122: #{tpu_custom_call.1} parent=103 // pred_check_branch
          %701 = sbr.rel (%p699) target = $region124
        $region123: #{tpu_custom_call.1} parent=103 // pred_region
          %702 = dma.done [#allocation9], 16
        $region124: #{tpu_custom_call.1} parent=103 // pred_fallthru
          _
        // Predicated region
        $region125: #{tpu_custom_call.1} parent=103 // pred_check
          %p703 = pneg %p256
        $region126: #{tpu_custom_call.1} parent=103 // pred_check_branch
          %705 = sbr.rel (%p703) target = $region128
        $region127: #{tpu_custom_call.1} parent=103 // pred_region
          %706 = dma.done [#allocation12], 1536
        $region128: #{tpu_custom_call.1} parent=103 // pred_fallthru
          _
        // Predicated region
        $region129: #{tpu_custom_call.1} parent=103 // pred_check
          %p707 = pneg %p382
        $region130: #{tpu_custom_call.1} parent=103 // pred_check_branch
          %709 = sbr.rel (%p707) target = $region132
        $region131: #{tpu_custom_call.1} parent=103 // pred_region
          %710 = dma.done [#allocation12], 512
        $region132: #{tpu_custom_call.1} parent=103 // pred_fallthru
          _
        %s711 = sand.u32 %s49, 1
        %s712 = scalar_lea.sflag [#allocation3], %s711
        %s713 = sand.u32 %s49, 1
        %s714 = smul.addr %s713, 8
        %s715 = scalar_lea.vmem [#allocation2], %s714
        %p716 = pneg %p62
        %p717 = pneg %p59
        %p718 = scmp.lt.s32.totalorder %s41, 1
        %s719 = scalar_select %p718, %s41, 1
        %s720 = smul.addr %s719, 2
        %s721 = smul.addr %s720, 8
        %s722 = scalar_lea.vmem %s1, %s721
        %p723 = pneg %p88
        %p724 = pneg %p85
        %p725 = pneg %p109
        %p726 = pneg %p106
        %p727 = pneg %p130
        %p728 = pneg %p127
        %p729 = pneg %p151
        %p730 = pneg %p148
        %p731 = pneg %p172
        %p732 = pneg %p169
        %p733 = pneg %p193
        %p734 = pneg %p190
        %p735 = pneg %p214
        %p736 = pneg %p211
        %p737 = pneg %p235
        %p738 = pneg %p232
        %p739 = pneg %p256
        %p740 = pneg %p253
        %p741 = pneg %p277
        %p742 = pneg %p274
        %p743 = pneg %p298
        %p744 = pneg %p295
        %p745 = pneg %p319
        %p746 = pneg %p316
        %p747 = pneg %p340
        %p748 = pneg %p337
        %p749 = pneg %p361
        %p750 = pneg %p358
        %p751 = pneg %p382
        %p752 = pneg %p379
        %p753 = pneg %p403
        %p754 = pneg %p400
        %p755 = pneg %p424
        %p756 = pneg %p421
        %p757 = pneg %p445
        %p758 = pneg %p442
        %p759 = pneg %p466
        %p760 = pneg %p463
        %p761 = pneg %p487
        %p762 = pneg %p484
        %p763 = pneg %p513
        %p764 = pneg %p510
        %s765 = sand.u32 %s500, 1
        %s766 = scalar_lea.sflag [#allocation4], %s765
        %s767 = sand.u32 %s500, 1
        %s768 = smul.addr %s767, 8
        %s769 = scalar_lea.vmem [#allocation14], %s768
        %p770 = scmp.lt.s32.totalorder %s41, 1
        %s771 = scalar_select %p770, %s41, 1
        %s772 = smul.addr %s771, 2
        %s773 = smul.addr %s772, 8
        %s774 = scalar_lea.vmem %s1, %s773
        %v775 = vld [vmem:[%s682] sm:$0xff]
        %v776 = vld [vmem:[%s774] sm:$0xff]
        %v777 = vld [vmem:[%s774 + $0x8] sm:$0x3]
        %v778 = vld [vmem:[%s3] sm:$0xff]
        %v779 = vld [vmem:[%s3 + $0x8] sm:$0xff]
        %v780 = vld [vmem:[%s3 + $0x10] sm:$0xff]
        %v781 = vld [vmem:[%s3 + $0x18] sm:$0xff]
        %v782 = vld [vmem:[#allocation7] sm:$0x1]
        %v784 = vlaneseq
        %v785 = vshrl.u32 %v784, 7
        %v786 = vsub.s32 0, %v785
        %v787 = vrot.slane %v782, %v786
        %vm789 = vcmask 261120
        %v791 = vsel %vm789, %v775, 0
        %793 = vmatprep.subr.mxu0 0.0
        %794 = vmatpush1.msra.mxu0 0.0
        %795 = vmatprep.subr.mxu0 0.0
        %796 = vmatpush1.msra.mxu0 0.0
        %797 = vmatprep.subr.mxu0 0.0
        %798 = vmatpush1.msra.mxu0 0.0
        %799 = vmatprep.subr.mxu0 0.0
        %800 = vmatpush1.msra.mxu0 0.0
        %801 = vmatprep.subr.mxu0 0.0
        %802 = vmatpush1.msra.mxu0 0.0
        %803 = vmatprep.subr.mxu0 0.0
        %804 = vmatpush1.msra.mxu0 0.0
        %805 = vmatprep.subr.mxu0 0.0
        %806 = vmatpush1.msra.mxu0 0.0
        %807 = vmatprep.subr.mxu0 0.0
        %808 = vmatpush1.msra.mxu0 0.0
        %809 = vmatprep.subr.mxu0 0.0
        %810 = vmatpush1.msra.mxu0 0.0
        %811 = vmatprep.subr.mxu0 0.0
        %812 = vmatpush1.msra.mxu0 0.0
        %813 = vmatprep.subr.mxu0 0.0
        %814 = vmatpush1.msra.mxu0 0.0
        %815 = vmatprep.subr.mxu0 0.0
        %816 = vmatpush1.msra.mxu0 0.0
        %817 = vmatprep.subr.mxu0 0.0
        %818 = vmatpush1.msra.mxu0 %v781
        %819 = vmatprep.subr.mxu0 0.0
        %820 = vmatpush1.msra.mxu0 %v780
        %821 = vmatprep.subr.mxu0 0.0
        %822 = vmatpush1.msra.mxu0 %v779
        %823 = vmatprep.subr.mxu0 0.0
        %824 = vmatpush1.msra.mxu0 %v778
        %825 = vmatprep.subr.mxu0 0.0
        %826 = vmatpush2.msra.mxu0 0.0
        %827 = vmatprep.subr.mxu0 0.0
        %828 = vmatpush2.msra.mxu0 0.0
        %829 = vmatprep.subr.mxu0 0.0
        %830 = vmatpush2.msra.mxu0 0.0
        %831 = vmatprep.subr.mxu0 0.0
        %832 = vmatpush2.msra.mxu0 0.0
        %833 = vmatprep.subr.mxu0 0.0
        %834 = vmatpush2.msra.mxu0 0.0
        %835 = vmatprep.subr.mxu0 0.0
        %836 = vmatpush2.msra.mxu0 0.0
        %837 = vmatprep.subr.mxu0 0.0
        %838 = vmatpush2.msra.mxu0 0.0
        %839 = vmatprep.subr.mxu0 0.0
        %840 = vmatpush2.msra.mxu0 0.0
        %841 = vmatprep.subr.mxu0 0.0
        %842 = vmatpush2.msra.mxu0 0.0
        %843 = vmatprep.subr.mxu0 0.0
        %844 = vmatpush2.msra.mxu0 0.0
        %845 = vmatprep.subr.mxu0 0.0
        %846 = vmatpush2.msra.mxu0 0.0
        %847 = vmatprep.subr.mxu0 0.0
        %848 = vmatpush2.msra.mxu0 0.0
        %849 = vmatprep.subr.mxu0 0.0
        %850 = vmatpush2.msra.mxu0 0.0
        %851 = vmatprep.subr.mxu0 0.0
        %852 = vmatpush2.msra.mxu0 0.0
        %853 = vmatprep.subr.mxu0 0.0
        %854 = vmatpush2.msra.mxu0 0.0
        %855 = vmatprep.subr.mxu0 0.0
        %856 = vmatpush2.msra.mxu0 0.0
        %857 = vmatprep.mubr.f32.mxu0 0.0
        %858 = vmatmul.mubr.f32.gmra.mxu0 %v791
        %v859 = vpop.f32.mrf.mxu0
        %v860 = vadd.f32 %v787, %v859
        %v861 = vpop.f32.mrf.mxu0
        %862 = vdwg.mxu0
        %s863 = scalar_lea.vmem %s3, 32
        %v864 = vld [vmem:[%s863] sm:$0xff]
        %v865 = vld [vmem:[%s863 + $0x8] sm:$0xff]
        %v866 = vld [vmem:[%s863 + $0x10] sm:$0xff]
        %v867 = vld [vmem:[%s863 + $0x18] sm:$0xff]
        %s868 = scalar_lea.vmem [#allocation7], 1
        %v869 = vld [vmem:[%s868] sm:$0x1]
        %v871 = vlaneseq
        %v872 = vshrl.u32 %v871, 7
        %v873 = vsub.s32 0, %v872
        %v874 = vrot.slane %v869, %v873
        %876 = vmatprep.subr.mxu0 0.0
        %877 = vmatpush1.msra.mxu0 0.0
        %878 = vmatprep.subr.mxu0 0.0
        %879 = vmatpush1.msra.mxu0 0.0
        %880 = vmatprep.subr.mxu0 0.0
        %881 = vmatpush1.msra.mxu0 0.0
        %882 = vmatprep.subr.mxu0 0.0
        %883 = vmatpush1.msra.mxu0 0.0
        %884 = vmatprep.subr.mxu0 0.0
        %885 = vmatpush1.msra.mxu0 0.0
        %886 = vmatprep.subr.mxu0 0.0
        %887 = vmatpush1.msra.mxu0 0.0
        %888 = vmatprep.subr.mxu0 0.0
        %889 = vmatpush1.msra.mxu0 0.0
        %890 = vmatprep.subr.mxu0 0.0
        %891 = vmatpush1.msra.mxu0 0.0
        %892 = vmatprep.subr.mxu0 0.0
        %893 = vmatpush1.msra.mxu0 0.0
        %894 = vmatprep.subr.mxu0 0.0
        %895 = vmatpush1.msra.mxu0 0.0
        %896 = vmatprep.subr.mxu0 0.0
        %897 = vmatpush1.msra.mxu0 0.0
        %898 = vmatprep.subr.mxu0 0.0
        %899 = vmatpush1.msra.mxu0 0.0
        %900 = vmatprep.subr.mxu0 0.0
        %901 = vmatpush1.msra.mxu0 %v867
        %902 = vmatprep.subr.mxu0 0.0
        %903 = vmatpush1.msra.mxu0 %v866
        %904 = vmatprep.subr.mxu0 0.0
        %905 = vmatpush1.msra.mxu0 %v865
        %906 = vmatprep.subr.mxu0 0.0
        %907 = vmatpush1.msra.mxu0 %v864
        %908 = vmatprep.subr.mxu0 0.0
        %909 = vmatpush2.msra.mxu0 0.0
        %910 = vmatprep.subr.mxu0 0.0
        %911 = vmatpush2.msra.mxu0 0.0
        %912 = vmatprep.subr.mxu0 0.0
        %913 = vmatpush2.msra.mxu0 0.0
        %914 = vmatprep.subr.mxu0 0.0
        %915 = vmatpush2.msra.mxu0 0.0
        %916 = vmatprep.subr.mxu0 0.0
        %917 = vmatpush2.msra.mxu0 0.0
        %918 = vmatprep.subr.mxu0 0.0
        %919 = vmatpush2.msra.mxu0 0.0
        %920 = vmatprep.subr.mxu0 0.0
        %921 = vmatpush2.msra.mxu0 0.0
        %922 = vmatprep.subr.mxu0 0.0
        %923 = vmatpush2.msra.mxu0 0.0
        %924 = vmatprep.subr.mxu0 0.0
        %925 = vmatpush2.msra.mxu0 0.0
        %926 = vmatprep.subr.mxu0 0.0
        %927 = vmatpush2.msra.mxu0 0.0
        %928 = vmatprep.subr.mxu0 0.0
        %929 = vmatpush2.msra.mxu0 0.0
        %930 = vmatprep.subr.mxu0 0.0
        %931 = vmatpush2.msra.mxu0 0.0
        %932 = vmatprep.subr.mxu0 0.0
        %933 = vmatpush2.msra.mxu0 0.0
        %934 = vmatprep.subr.mxu0 0.0
        %935 = vmatpush2.msra.mxu0 0.0
        %936 = vmatprep.subr.mxu0 0.0
        %937 = vmatpush2.msra.mxu0 0.0
        %938 = vmatprep.subr.mxu0 0.0
        %939 = vmatpush2.msra.mxu0 0.0
        %940 = vmatprep.mubr.f32.mxu0 0.0
        %941 = vmatmul.mubr.f32.gmra.mxu0 %v791
        %v942 = vpop.f32.mrf.mxu0
        %v943 = vadd.f32 %v874, %v942
        %v944 = vpop.f32.mrf.mxu0
        %945 = vdwg.mxu0
        %s946 = scalar_lea.vmem %s3, 64
        %v947 = vld [vmem:[%s946] sm:$0xff]
        %v948 = vld [vmem:[%s946 + $0x8] sm:$0xff]
        %v949 = vld [vmem:[%s946 + $0x10] sm:$0xff]
        %v950 = vld [vmem:[%s946 + $0x18] sm:$0xff]
        %s951 = scalar_lea.vmem [#allocation7], 2
        %v952 = vld [vmem:[%s951] sm:$0x1]
        %v954 = vlaneseq
        %v955 = vshrl.u32 %v954, 7
        %v956 = vsub.s32 0, %v955
        %v957 = vrot.slane %v952, %v956
        %959 = vmatprep.subr.mxu0 0.0
        %960 = vmatpush1.msra.mxu0 0.0
        %961 = vmatprep.subr.mxu0 0.0
        %962 = vmatpush1.msra.mxu0 0.0
        %963 = vmatprep.subr.mxu0 0.0
        %964 = vmatpush1.msra.mxu0 0.0
        %965 = vmatprep.subr.mxu0 0.0
        %966 = vmatpush1.msra.mxu0 0.0
        %967 = vmatprep.subr.mxu0 0.0
        %968 = vmatpush1.msra.mxu0 0.0
        %969 = vmatprep.subr.mxu0 0.0
        %970 = vmatpush1.msra.mxu0 0.0
        %971 = vmatprep.subr.mxu0 0.0
        %972 = vmatpush1.msra.mxu0 0.0
        %973 = vmatprep.subr.mxu0 0.0
        %974 = vmatpush1.msra.mxu0 0.0
        %975 = vmatprep.subr.mxu0 0.0
        %976 = vmatpush1.msra.mxu0 0.0
        %977 = vmatprep.subr.mxu0 0.0
        %978 = vmatpush1.msra.mxu0 0.0
        %979 = vmatprep.subr.mxu0 0.0
        %980 = vmatpush1.msra.mxu0 0.0
        %981 = vmatprep.subr.mxu0 0.0
        %982 = vmatpush1.msra.mxu0 0.0
        %983 = vmatprep.subr.mxu0 0.0
        %984 = vmatpush1.msra.mxu0 %v950
        %985 = vmatprep.subr.mxu0 0.0
        %986 = vmatpush1.msra.mxu0 %v949
        %987 = vmatprep.subr.mxu0 0.0
        %988 = vmatpush1.msra.mxu0 %v948
        %989 = vmatprep.subr.mxu0 0.0
        %990 = vmatpush1.msra.mxu0 %v947
        %991 = vmatprep.subr.mxu0 0.0
        %992 = vmatpush2.msra.mxu0 0.0
        %993 = vmatprep.subr.mxu0 0.0
        %994 = vmatpush2.msra.mxu0 0.0
        %995 = vmatprep.subr.mxu0 0.0
        %996 = vmatpush2.msra.mxu0 0.0
        %997 = vmatprep.subr.mxu0 0.0
        %998 = vmatpush2.msra.mxu0 0.0
        %999 = vmatprep.subr.mxu0 0.0
        %1000 = vmatpush2.msra.mxu0 0.0
        %1001 = vmatprep.subr.mxu0 0.0
        %1002 = vmatpush2.msra.mxu0 0.0
        %1003 = vmatprep.subr.mxu0 0.0
        %1004 = vmatpush2.msra.mxu0 0.0
        %1005 = vmatprep.subr.mxu0 0.0
        %1006 = vmatpush2.msra.mxu0 0.0
        %1007 = vmatprep.subr.mxu0 0.0
        %1008 = vmatpush2.msra.mxu0 0.0
        %1009 = vmatprep.subr.mxu0 0.0
        %1010 = vmatpush2.msra.mxu0 0.0
        %1011 = vmatprep.subr.mxu0 0.0
        %1012 = vmatpush2.msra.mxu0 0.0
        %1013 = vmatprep.subr.mxu0 0.0
        %1014 = vmatpush2.msra.mxu0 0.0
        %1015 = vmatprep.subr.mxu0 0.0
        %1016 = vmatpush2.msra.mxu0 0.0
        %1017 = vmatprep.subr.mxu0 0.0
        %1018 = vmatpush2.msra.mxu0 0.0
        %1019 = vmatprep.subr.mxu0 0.0
        %1020 = vmatpush2.msra.mxu0 0.0
        %1021 = vmatprep.subr.mxu0 0.0
        %1022 = vmatpush2.msra.mxu0 0.0
        %1023 = vmatprep.mubr.f32.mxu0 0.0
        %1024 = vmatmul.mubr.f32.gmra.mxu0 %v791
        %v1025 = vpop.f32.mrf.mxu0
        %v1026 = vadd.f32 %v957, %v1025
        %v1027 = vpop.f32.mrf.mxu0
        %1028 = vdwg.mxu0
        %v1029 = vld [vmem:[#allocation5] sm:$0x1]
        %v1031 = vlaneseq
        %v1032 = vshrl.u32 %v1031, 7
        %v1033 = vsub.s32 0, %v1032
        %v1034 = vrot.slane %v1029, %v1033
        %v1036 = vmul.f32 %v943, %v1034
        %v1037 = vmul.f32 %v1026, %v1034
        %v1039 = vsel %vm789, %v860, 0
        %v1042 = vsel %vm789, %v1036, 0
        %1044 = vmatprep.subr.mxu0 0.0
        %1045 = vmatpush1.xpose.msra.mxu0 0.0
        %1046 = vmatprep.subr.mxu0 0.0
        %1047 = vmatpush1.xpose.msra.mxu0 0.0
        %1048 = vmatprep.subr.mxu0 0.0
        %1049 = vmatpush1.xpose.msra.mxu0 0.0
        %1050 = vmatprep.subr.mxu0 0.0
        %1051 = vmatpush1.xpose.msra.mxu0 0.0
        %1052 = vmatprep.subr.mxu0 0.0
        %1053 = vmatpush1.xpose.msra.mxu0 0.0
        %1054 = vmatprep.subr.mxu0 0.0
        %1055 = vmatpush1.xpose.msra.mxu0 0.0
        %1056 = vmatprep.subr.mxu0 0.0
        %1057 = vmatpush1.xpose.msra.mxu0 0.0
        %1058 = vmatprep.subr.mxu0 0.0
        %1059 = vmatpush1.xpose.msra.mxu0 0.0
        %1060 = vmatprep.subr.mxu0 0.0
        %1061 = vmatpush1.xpose.msra.mxu0 0.0
        %1062 = vmatprep.subr.mxu0 0.0
        %1063 = vmatpush1.xpose.msra.mxu0 0.0
        %1064 = vmatprep.subr.mxu0 0.0
        %1065 = vmatpush1.xpose.msra.mxu0 0.0
        %1066 = vmatprep.subr.mxu0 0.0
        %1067 = vmatpush1.xpose.msra.mxu0 0.0
        %1068 = vmatprep.subr.mxu0 0.0
        %1069 = vmatpush1.xpose.msra.mxu0 0.0
        %1070 = vmatprep.subr.mxu0 0.0
        %1071 = vmatpush1.xpose.msra.mxu0 0.0
        %1072 = vmatprep.subr.mxu0 0.0
        %1073 = vmatpush1.xpose.msra.mxu0 0.0
        %1074 = vmatprep.subr.mxu0 0.0
        %1075 = vmatpush1.xpose.msra.mxu0 %v1042
        %1076 = vmatprep.subr.mxu0 0.0
        %1077 = vmatpush2.xpose.msra.mxu0 0.0
        %1078 = vmatprep.subr.mxu0 0.0
        %1079 = vmatpush2.xpose.msra.mxu0 0.0
        %1080 = vmatprep.subr.mxu0 0.0
        %1081 = vmatpush2.xpose.msra.mxu0 0.0
        %1082 = vmatprep.subr.mxu0 0.0
        %1083 = vmatpush2.xpose.msra.mxu0 0.0
        %1084 = vmatprep.subr.mxu0 0.0
        %1085 = vmatpush2.xpose.msra.mxu0 0.0
        %1086 = vmatprep.subr.mxu0 0.0
        %1087 = vmatpush2.xpose.msra.mxu0 0.0
        %1088 = vmatprep.subr.mxu0 0.0
        %1089 = vmatpush2.xpose.msra.mxu0 0.0
        %1090 = vmatprep.subr.mxu0 0.0
        %1091 = vmatpush2.xpose.msra.mxu0 0.0
        %1092 = vmatprep.subr.mxu0 0.0
        %1093 = vmatpush2.xpose.msra.mxu0 0.0
        %1094 = vmatprep.subr.mxu0 0.0
        %1095 = vmatpush2.xpose.msra.mxu0 0.0
        %1096 = vmatprep.subr.mxu0 0.0
        %1097 = vmatpush2.xpose.msra.mxu0 0.0
        %1098 = vmatprep.subr.mxu0 0.0
        %1099 = vmatpush2.xpose.msra.mxu0 0.0
        %1100 = vmatprep.subr.mxu0 0.0
        %1101 = vmatpush2.xpose.msra.mxu0 0.0
        %1102 = vmatprep.subr.mxu0 0.0
        %1103 = vmatpush2.xpose.msra.mxu0 0.0
        %1104 = vmatprep.subr.mxu0 0.0
        %1105 = vmatpush2.xpose.msra.mxu0 0.0
        %1106 = vmatprep.subr.mxu0 0.0
        %1107 = vmatpush2.xpose.msra.mxu0 0.0
        %1108 = vmatprep.mubr.f32.mxu0 0.0
        %1109 = vmatmul.mubr.f32.gmra.mxu0 %v1039
        %v1110 = vpop.f32.mrf.mxu0
        %v1111 = vadd.f32 0.0, %v1110
        %v1112 = vpop.f32.mrf.mxu0
        %1113 = vdwg.mxu0
        %vm1114 = vcmask 64512
        %v1115 = vsel %vm1114, %v1111, -inf
        %1116 = vmax.xlane.f32.xlu0 %v1115
        %v1117 = vpop.xlane.xlu0 %1116
        %v1118 = vsub.f32 %v1111, %v1117
        %v1119 = vmul.f32 %v1118, 1.442695
        %v1120 = vpow.pop %v1119
        %v1121 = vsel %vm1114, %v1120, 0.0
        %1122 = vadd.xlane.f32.xlu0 %v1121
        %v1123 = vpop.xlane.xlu0 %1122
        %v1124 = vrcp.pop %v1123
        %v1125 = vmul.f32 %v1123, %v1124
        %v1126 = vsub.f32 2.0, %v1125
        %v1127 = vmul.f32 %v1124, %v1126
        %v1128 = vmul.f32 %v1120, %v1127
        %s1129 = scalar_lea.vmem [#allocation5], 1
        %v1130 = vld [vmem:[%s1129] sm:$0x1]
        %v1132 = vlaneseq
        %v1133 = vshrl.u32 %v1132, 7
        %v1134 = vsub.s32 0, %v1133
        %v1135 = vrot.slane %v1130, %v1134
        %v1137 = vmul.f32 %v943, %v1135
        %v1138 = vmul.f32 %v1026, %v1135
        %v1140 = vsel %vm789, %v1137, 0
        %1142 = vmatprep.subr.mxu0 0.0
        %1143 = vmatpush1.xpose.msra.mxu0 0.0
        %1144 = vmatprep.subr.mxu0 0.0
        %1145 = vmatpush1.xpose.msra.mxu0 0.0
        %1146 = vmatprep.subr.mxu0 0.0
        %1147 = vmatpush1.xpose.msra.mxu0 0.0
        %1148 = vmatprep.subr.mxu0 0.0
        %1149 = vmatpush1.xpose.msra.mxu0 0.0
        %1150 = vmatprep.subr.mxu0 0.0
        %1151 = vmatpush1.xpose.msra.mxu0 0.0
        %1152 = vmatprep.subr.mxu0 0.0
        %1153 = vmatpush1.xpose.msra.mxu0 0.0
        %1154 = vmatprep.subr.mxu0 0.0
        %1155 = vmatpush1.xpose.msra.mxu0 0.0
        %1156 = vmatprep.subr.mxu0 0.0
        %1157 = vmatpush1.xpose.msra.mxu0 0.0
        %1158 = vmatprep.subr.mxu0 0.0
        %1159 = vmatpush1.xpose.msra.mxu0 0.0
        %1160 = vmatprep.subr.mxu0 0.0
        %1161 = vmatpush1.xpose.msra.mxu0 0.0
        %1162 = vmatprep.subr.mxu0 0.0
        %1163 = vmatpush1.xpose.msra.mxu0 0.0
        %1164 = vmatprep.subr.mxu0 0.0
        %1165 = vmatpush1.xpose.msra.mxu0 0.0
        %1166 = vmatprep.subr.mxu0 0.0
        %1167 = vmatpush1.xpose.msra.mxu0 0.0
        %1168 = vmatprep.subr.mxu0 0.0
        %1169 = vmatpush1.xpose.msra.mxu0 0.0
        %1170 = vmatprep.subr.mxu0 0.0
        %1171 = vmatpush1.xpose.msra.mxu0 0.0
        %1172 = vmatprep.subr.mxu0 0.0
        %1173 = vmatpush1.xpose.msra.mxu0 %v1140
        %1174 = vmatprep.subr.mxu0 0.0
        %1175 = vmatpush2.xpose.msra.mxu0 0.0
        %1176 = vmatprep.subr.mxu0 0.0
        %1177 = vmatpush2.xpose.msra.mxu0 0.0
        %1178 = vmatprep.subr.mxu0 0.0
        %1179 = vmatpush2.xpose.msra.mxu0 0.0
        %1180 = vmatprep.subr.mxu0 0.0
        %1181 = vmatpush2.xpose.msra.mxu0 0.0
        %1182 = vmatprep.subr.mxu0 0.0
        %1183 = vmatpush2.xpose.msra.mxu0 0.0
        %1184 = vmatprep.subr.mxu0 0.0
        %1185 = vmatpush2.xpose.msra.mxu0 0.0
        %1186 = vmatprep.subr.mxu0 0.0
        %1187 = vmatpush2.xpose.msra.mxu0 0.0
        %1188 = vmatprep.subr.mxu0 0.0
        %1189 = vmatpush2.xpose.msra.mxu0 0.0
        %1190 = vmatprep.subr.mxu0 0.0
        %1191 = vmatpush2.xpose.msra.mxu0 0.0
        %1192 = vmatprep.subr.mxu0 0.0
        %1193 = vmatpush2.xpose.msra.mxu0 0.0
        %1194 = vmatprep.subr.mxu0 0.0
        %1195 = vmatpush2.xpose.msra.mxu0 0.0
        %1196 = vmatprep.subr.mxu0 0.0
        %1197 = vmatpush2.xpose.msra.mxu0 0.0
        %1198 = vmatprep.subr.mxu0 0.0
        %1199 = vmatpush2.xpose.msra.mxu0 0.0
        %1200 = vmatprep.subr.mxu0 0.0
        %1201 = vmatpush2.xpose.msra.mxu0 0.0
        %1202 = vmatprep.subr.mxu0 0.0
        %1203 = vmatpush2.xpose.msra.mxu0 0.0
        %1204 = vmatprep.subr.mxu0 0.0
        %1205 = vmatpush2.xpose.msra.mxu0 0.0
        %1206 = vmatprep.mubr.f32.mxu0 0.0
        %1207 = vmatmul.mubr.f32.gmra.mxu0 %v1039
        %v1208 = vpop.f32.mrf.mxu0
        %v1209 = vadd.f32 0.0, %v1208
        %v1210 = vpop.f32.mrf.mxu0
        %1211 = vdwg.mxu0
        %v1212 = vsel %vm1114, %v1209, -inf
        %1213 = vmax.xlane.f32.xlu0 %v1212
        %v1214 = vpop.xlane.xlu0 %1213
        %v1215 = vsub.f32 %v1209, %v1214
        %v1216 = vmul.f32 %v1215, 1.442695
        %v1217 = vpow.pop %v1216
        %v1218 = vsel %vm1114, %v1217, 0.0
        %1219 = vadd.xlane.f32.xlu0 %v1218
        %v1220 = vpop.xlane.xlu0 %1219
        %v1221 = vrcp.pop %v1220
        %v1222 = vmul.f32 %v1220, %v1221
        %v1223 = vsub.f32 2.0, %v1222
        %v1224 = vmul.f32 %v1221, %v1223
        %v1225 = vmul.f32 %v1217, %v1224
        %v1227 = vsel %vm1114, %v1225, 0
        %1229 = vmatprep.subr.mxu0 0.0
        %1230 = vmatpush1.msra.mxu0 0.0
        %1231 = vmatprep.subr.mxu0 0.0
        %1232 = vmatpush1.msra.mxu0 0.0
        %1233 = vmatprep.subr.mxu0 0.0
        %1234 = vmatpush1.msra.mxu0 0.0
        %1235 = vmatprep.subr.mxu0 0.0
        %1236 = vmatpush1.msra.mxu0 0.0
        %1237 = vmatprep.subr.mxu0 0.0
        %1238 = vmatpush1.msra.mxu0 0.0
        %1239 = vmatprep.subr.mxu0 0.0
        %1240 = vmatpush1.msra.mxu0 0.0
        %1241 = vmatprep.subr.mxu0 0.0
        %1242 = vmatpush1.msra.mxu0 0.0
        %1243 = vmatprep.subr.mxu0 0.0
        %1244 = vmatpush1.msra.mxu0 0.0
        %1245 = vmatprep.subr.mxu0 0.0
        %1246 = vmatpush1.msra.mxu0 0.0
        %1247 = vmatprep.subr.mxu0 0.0
        %1248 = vmatpush1.msra.mxu0 0.0
        %1249 = vmatprep.subr.mxu0 0.0
        %1250 = vmatpush1.msra.mxu0 0.0
        %1251 = vmatprep.subr.mxu0 0.0
        %1252 = vmatpush1.msra.mxu0 0.0
        %1253 = vmatprep.subr.mxu0 0.0
        %1254 = vmatpush1.msra.mxu0 0.0
        %1255 = vmatprep.subr.mxu0 0.0
        %1256 = vmatpush1.msra.mxu0 0.0
        %1257 = vmatprep.subr.mxu0 0.0
        %1258 = vmatpush1.msra.mxu0 0.0
        %1259 = vmatprep.subr.mxu0 0.0
        %1260 = vmatpush1.msra.mxu0 %v1138
        %1261 = vmatprep.subr.mxu0 0.0
        %1262 = vmatpush2.msra.mxu0 0.0
        %1263 = vmatprep.subr.mxu0 0.0
        %1264 = vmatpush2.msra.mxu0 0.0
        %1265 = vmatprep.subr.mxu0 0.0
        %1266 = vmatpush2.msra.mxu0 0.0
        %1267 = vmatprep.subr.mxu0 0.0
        %1268 = vmatpush2.msra.mxu0 0.0
        %1269 = vmatprep.subr.mxu0 0.0
        %1270 = vmatpush2.msra.mxu0 0.0
        %1271 = vmatprep.subr.mxu0 0.0
        %1272 = vmatpush2.msra.mxu0 0.0
        %1273 = vmatprep.subr.mxu0 0.0
        %1274 = vmatpush2.msra.mxu0 0.0
        %1275 = vmatprep.subr.mxu0 0.0
        %1276 = vmatpush2.msra.mxu0 0.0
        %1277 = vmatprep.subr.mxu0 0.0
        %1278 = vmatpush2.msra.mxu0 0.0
        %1279 = vmatprep.subr.mxu0 0.0
        %1280 = vmatpush2.msra.mxu0 0.0
        %1281 = vmatprep.subr.mxu0 0.0
        %1282 = vmatpush2.msra.mxu0 0.0
        %1283 = vmatprep.subr.mxu0 0.0
        %1284 = vmatpush2.msra.mxu0 0.0
        %1285 = vmatprep.subr.mxu0 0.0
        %1286 = vmatpush2.msra.mxu0 0.0
        %1287 = vmatprep.subr.mxu0 0.0
        %1288 = vmatpush2.msra.mxu0 0.0
        %1289 = vmatprep.subr.mxu0 0.0
        %1290 = vmatpush2.msra.mxu0 0.0
        %1291 = vmatprep.subr.mxu0 0.0
        %1292 = vmatpush2.msra.mxu0 0.0
        %1293 = vmatprep.mubr.f32.mxu0 0.0
        %1294 = vmatmul.mubr.f32.gmra.mxu0 %v1227
        %v1295 = vpop.f32.mrf.mxu0
        %v1296 = vadd.f32 0.0, %v1295
        %v1297 = vpop.f32.mrf.mxu0
        %1298 = vdwg.mxu0
        %v1300 = vsel %vm1114, %v1128, 0
        %1302 = vmatprep.subr.mxu0 0.0
        %1303 = vmatpush1.msra.mxu0 0.0
        %1304 = vmatprep.subr.mxu0 0.0
        %1305 = vmatpush1.msra.mxu0 0.0
        %1306 = vmatprep.subr.mxu0 0.0
        %1307 = vmatpush1.msra.mxu0 0.0
        %1308 = vmatprep.subr.mxu0 0.0
        %1309 = vmatpush1.msra.mxu0 0.0
        %1310 = vmatprep.subr.mxu0 0.0
        %1311 = vmatpush1.msra.mxu0 0.0
        %1312 = vmatprep.subr.mxu0 0.0
        %1313 = vmatpush1.msra.mxu0 0.0
        %1314 = vmatprep.subr.mxu0 0.0
        %1315 = vmatpush1.msra.mxu0 0.0
        %1316 = vmatprep.subr.mxu0 0.0
        %1317 = vmatpush1.msra.mxu0 0.0
        %1318 = vmatprep.subr.mxu0 0.0
        %1319 = vmatpush1.msra.mxu0 0.0
        %1320 = vmatprep.subr.mxu0 0.0
        %1321 = vmatpush1.msra.mxu0 0.0
        %1322 = vmatprep.subr.mxu0 0.0
        %1323 = vmatpush1.msra.mxu0 0.0
        %1324 = vmatprep.subr.mxu0 0.0
        %1325 = vmatpush1.msra.mxu0 0.0
        %1326 = vmatprep.subr.mxu0 0.0
        %1327 = vmatpush1.msra.mxu0 0.0
        %1328 = vmatprep.subr.mxu0 0.0
        %1329 = vmatpush1.msra.mxu0 0.0
        %1330 = vmatprep.subr.mxu0 0.0
        %1331 = vmatpush1.msra.mxu0 0.0
        %1332 = vmatprep.subr.mxu0 0.0
        %1333 = vmatpush1.msra.mxu0 %v1037
        %1334 = vmatprep.subr.mxu0 0.0
        %1335 = vmatpush2.msra.mxu0 0.0
        %1336 = vmatprep.subr.mxu0 0.0
        %1337 = vmatpush2.msra.mxu0 0.0
        %1338 = vmatprep.subr.mxu0 0.0
        %1339 = vmatpush2.msra.mxu0 0.0
        %1340 = vmatprep.subr.mxu0 0.0
        %1341 = vmatpush2.msra.mxu0 0.0
        %1342 = vmatprep.subr.mxu0 0.0
        %1343 = vmatpush2.msra.mxu0 0.0
        %1344 = vmatprep.subr.mxu0 0.0
        %1345 = vmatpush2.msra.mxu0 0.0
        %1346 = vmatprep.subr.mxu0 0.0
        %1347 = vmatpush2.msra.mxu0 0.0
        %1348 = vmatprep.subr.mxu0 0.0
        %1349 = vmatpush2.msra.mxu0 0.0
        %1350 = vmatprep.subr.mxu0 0.0
        %1351 = vmatpush2.msra.mxu0 0.0
        %1352 = vmatprep.subr.mxu0 0.0
        %1353 = vmatpush2.msra.mxu0 0.0
        %1354 = vmatprep.subr.mxu0 0.0
        %1355 = vmatpush2.msra.mxu0 0.0
        %1356 = vmatprep.subr.mxu0 0.0
        %1357 = vmatpush2.msra.mxu0 0.0
        %1358 = vmatprep.subr.mxu0 0.0
        %1359 = vmatpush2.msra.mxu0 0.0
        %1360 = vmatprep.subr.mxu0 0.0
        %1361 = vmatpush2.msra.mxu0 0.0
        %1362 = vmatprep.subr.mxu0 0.0
        %1363 = vmatpush2.msra.mxu0 0.0
        %1364 = vmatprep.subr.mxu0 0.0
        %1365 = vmatpush2.msra.mxu0 0.0
        %1366 = vmatprep.mubr.f32.mxu0 0.0
        %1367 = vmatmul.mubr.f32.gmra.mxu0 %v1300
        %v1368 = vpop.f32.mrf.mxu0
        %v1369 = vadd.f32 %v1296, %v1368
        %v1370 = vpop.f32.mrf.mxu0
        %1371 = vdwg.mxu0
        %s1372 = scalar_lea.vmem [#allocation5], 2
        %v1373 = vld [vmem:[%s1372] sm:$0x1]
        %v1375 = vlaneseq
        %v1376 = vshrl.u32 %v1375, 7
        %v1377 = vsub.s32 0, %v1376
        %v1378 = vrot.slane %v1373, %v1377
        %v1380 = vmul.f32 %v943, %v1378
        %v1381 = vmul.f32 %v1026, %v1378
        %v1383 = vsel %vm789, %v1380, 0
        %1385 = vmatprep.subr.mxu0 0.0
        %1386 = vmatpush1.xpose.msra.mxu0 0.0
        %1387 = vmatprep.subr.mxu0 0.0
        %1388 = vmatpush1.xpose.msra.mxu0 0.0
        %1389 = vmatprep.subr.mxu0 0.0
        %1390 = vmatpush1.xpose.msra.mxu0 0.0
        %1391 = vmatprep.subr.mxu0 0.0
        %1392 = vmatpush1.xpose.msra.mxu0 0.0
        %1393 = vmatprep.subr.mxu0 0.0
        %1394 = vmatpush1.xpose.msra.mxu0 0.0
        %1395 = vmatprep.subr.mxu0 0.0
        %1396 = vmatpush1.xpose.msra.mxu0 0.0
        %1397 = vmatprep.subr.mxu0 0.0
        %1398 = vmatpush1.xpose.msra.mxu0 0.0
        %1399 = vmatprep.subr.mxu0 0.0
        %1400 = vmatpush1.xpose.msra.mxu0 0.0
        %1401 = vmatprep.subr.mxu0 0.0
        %1402 = vmatpush1.xpose.msra.mxu0 0.0
        %1403 = vmatprep.subr.mxu0 0.0
        %1404 = vmatpush1.xpose.msra.mxu0 0.0
        %1405 = vmatprep.subr.mxu0 0.0
        %1406 = vmatpush1.xpose.msra.mxu0 0.0
        %1407 = vmatprep.subr.mxu0 0.0
        %1408 = vmatpush1.xpose.msra.mxu0 0.0
        %1409 = vmatprep.subr.mxu0 0.0
        %1410 = vmatpush1.xpose.msra.mxu0 0.0
        %1411 = vmatprep.subr.mxu0 0.0
        %1412 = vmatpush1.xpose.msra.mxu0 0.0
        %1413 = vmatprep.subr.mxu0 0.0
        %1414 = vmatpush1.xpose.msra.mxu0 0.0
        %1415 = vmatprep.subr.mxu0 0.0
        %1416 = vmatpush1.xpose.msra.mxu0 %v1383
        %1417 = vmatprep.subr.mxu0 0.0
        %1418 = vmatpush2.xpose.msra.mxu0 0.0
        %1419 = vmatprep.subr.mxu0 0.0
        %1420 = vmatpush2.xpose.msra.mxu0 0.0
        %1421 = vmatprep.subr.mxu0 0.0
        %1422 = vmatpush2.xpose.msra.mxu0 0.0
        %1423 = vmatprep.subr.mxu0 0.0
        %1424 = vmatpush2.xpose.msra.mxu0 0.0
        %1425 = vmatprep.subr.mxu0 0.0
        %1426 = vmatpush2.xpose.msra.mxu0 0.0
        %1427 = vmatprep.subr.mxu0 0.0
        %1428 = vmatpush2.xpose.msra.mxu0 0.0
        %1429 = vmatprep.subr.mxu0 0.0
        %1430 = vmatpush2.xpose.msra.mxu0 0.0
        %1431 = vmatprep.subr.mxu0 0.0
        %1432 = vmatpush2.xpose.msra.mxu0 0.0
        %1433 = vmatprep.subr.mxu0 0.0
        %1434 = vmatpush2.xpose.msra.mxu0 0.0
        %1435 = vmatprep.subr.mxu0 0.0
        %1436 = vmatpush2.xpose.msra.mxu0 0.0
        %1437 = vmatprep.subr.mxu0 0.0
        %1438 = vmatpush2.xpose.msra.mxu0 0.0
        %1439 = vmatprep.subr.mxu0 0.0
        %1440 = vmatpush2.xpose.msra.mxu0 0.0
        %1441 = vmatprep.subr.mxu0 0.0
        %1442 = vmatpush2.xpose.msra.mxu0 0.0
        %1443 = vmatprep.subr.mxu0 0.0
        %1444 = vmatpush2.xpose.msra.mxu0 0.0
        %1445 = vmatprep.subr.mxu0 0.0
        %1446 = vmatpush2.xpose.msra.mxu0 0.0
        %1447 = vmatprep.subr.mxu0 0.0
        %1448 = vmatpush2.xpose.msra.mxu0 0.0
        %1449 = vmatprep.mubr.f32.mxu0 0.0
        %1450 = vmatmul.mubr.f32.gmra.mxu0 %v1039
        %v1451 = vpop.f32.mrf.mxu0
        %v1452 = vadd.f32 0.0, %v1451
        %v1453 = vpop.f32.mrf.mxu0
        %1454 = vdwg.mxu0
        %v1455 = vsel %vm1114, %v1452, -inf
        %1456 = vmax.xlane.f32.xlu0 %v1455
        %v1457 = vpop.xlane.xlu0 %1456
        %v1458 = vsub.f32 %v1452, %v1457
        %v1459 = vmul.f32 %v1458, 1.442695
        %v1460 = vpow.pop %v1459
        %v1461 = vsel %vm1114, %v1460, 0.0
        %1462 = vadd.xlane.f32.xlu0 %v1461
        %v1463 = vpop.xlane.xlu0 %1462
        %v1464 = vrcp.pop %v1463
        %v1465 = vmul.f32 %v1463, %v1464
        %v1466 = vsub.f32 2.0, %v1465
        %v1467 = vmul.f32 %v1464, %v1466
        %v1468 = vmul.f32 %v1460, %v1467
        %v1470 = vsel %vm1114, %v1468, 0
        %1472 = vmatprep.subr.mxu0 0.0
        %1473 = vmatpush1.msra.mxu0 0.0
        %1474 = vmatprep.subr.mxu0 0.0
        %1475 = vmatpush1.msra.mxu0 0.0
        %1476 = vmatprep.subr.mxu0 0.0
        %1477 = vmatpush1.msra.mxu0 0.0
        %1478 = vmatprep.subr.mxu0 0.0
        %1479 = vmatpush1.msra.mxu0 0.0
        %1480 = vmatprep.subr.mxu0 0.0
        %1481 = vmatpush1.msra.mxu0 0.0
        %1482 = vmatprep.subr.mxu0 0.0
        %1483 = vmatpush1.msra.mxu0 0.0
        %1484 = vmatprep.subr.mxu0 0.0
        %1485 = vmatpush1.msra.mxu0 0.0
        %1486 = vmatprep.subr.mxu0 0.0
        %1487 = vmatpush1.msra.mxu0 0.0
        %1488 = vmatprep.subr.mxu0 0.0
        %1489 = vmatpush1.msra.mxu0 0.0
        %1490 = vmatprep.subr.mxu0 0.0
        %1491 = vmatpush1.msra.mxu0 0.0
        %1492 = vmatprep.subr.mxu0 0.0
        %1493 = vmatpush1.msra.mxu0 0.0
        %1494 = vmatprep.subr.mxu0 0.0
        %1495 = vmatpush1.msra.mxu0 0.0
        %1496 = vmatprep.subr.mxu0 0.0
        %1497 = vmatpush1.msra.mxu0 0.0
        %1498 = vmatprep.subr.mxu0 0.0
        %1499 = vmatpush1.msra.mxu0 0.0
        %1500 = vmatprep.subr.mxu0 0.0
        %1501 = vmatpush1.msra.mxu0 0.0
        %1502 = vmatprep.subr.mxu0 0.0
        %1503 = vmatpush1.msra.mxu0 %v1381
        %1504 = vmatprep.subr.mxu0 0.0
        %1505 = vmatpush2.msra.mxu0 0.0
        %1506 = vmatprep.subr.mxu0 0.0
        %1507 = vmatpush2.msra.mxu0 0.0
        %1508 = vmatprep.subr.mxu0 0.0
        %1509 = vmatpush2.msra.mxu0 0.0
        %1510 = vmatprep.subr.mxu0 0.0
        %1511 = vmatpush2.msra.mxu0 0.0
        %1512 = vmatprep.subr.mxu0 0.0
        %1513 = vmatpush2.msra.mxu0 0.0
        %1514 = vmatprep.subr.mxu0 0.0
        %1515 = vmatpush2.msra.mxu0 0.0
        %1516 = vmatprep.subr.mxu0 0.0
        %1517 = vmatpush2.msra.mxu0 0.0
        %1518 = vmatprep.subr.mxu0 0.0
        %1519 = vmatpush2.msra.mxu0 0.0
        %1520 = vmatprep.subr.mxu0 0.0
        %1521 = vmatpush2.msra.mxu0 0.0
        %1522 = vmatprep.subr.mxu0 0.0
        %1523 = vmatpush2.msra.mxu0 0.0
        %1524 = vmatprep.subr.mxu0 0.0
        %1525 = vmatpush2.msra.mxu0 0.0
        %1526 = vmatprep.subr.mxu0 0.0
        %1527 = vmatpush2.msra.mxu0 0.0
        %1528 = vmatprep.subr.mxu0 0.0
        %1529 = vmatpush2.msra.mxu0 0.0
        %1530 = vmatprep.subr.mxu0 0.0
        %1531 = vmatpush2.msra.mxu0 0.0
        %1532 = vmatprep.subr.mxu0 0.0
        %1533 = vmatpush2.msra.mxu0 0.0
        %1534 = vmatprep.subr.mxu0 0.0
        %1535 = vmatpush2.msra.mxu0 0.0
        %1536 = vmatprep.mubr.f32.mxu0 0.0
        %1537 = vmatmul.mubr.f32.gmra.mxu0 %v1470
        %v1538 = vpop.f32.mrf.mxu0
        %v1539 = vadd.f32 0.0, %v1538
        %v1540 = vpop.f32.mrf.mxu0
        %1541 = vdwg.mxu0
        %v1542 = vadd.f32 %v1369, %v1539
        %s1543 = scalar_lea.vmem [#allocation5], 3
        %v1544 = vld [vmem:[%s1543] sm:$0x1]
        %v1546 = vlaneseq
        %v1547 = vshrl.u32 %v1546, 7
        %v1548 = vsub.s32 0, %v1547
        %v1549 = vrot.slane %v1544, %v1548
        %v1551 = vmul.f32 %v943, %v1549
        %v1552 = vmul.f32 %v1026, %v1549
        %v1554 = vsel %vm789, %v1551, 0
        %1556 = vmatprep.subr.mxu0 0.0
        %1557 = vmatpush1.xpose.msra.mxu0 0.0
        %1558 = vmatprep.subr.mxu0 0.0
        %1559 = vmatpush1.xpose.msra.mxu0 0.0
        %1560 = vmatprep.subr.mxu0 0.0
        %1561 = vmatpush1.xpose.msra.mxu0 0.0
        %1562 = vmatprep.subr.mxu0 0.0
        %1563 = vmatpush1.xpose.msra.mxu0 0.0
        %1564 = vmatprep.subr.mxu0 0.0
        %1565 = vmatpush1.xpose.msra.mxu0 0.0
        %1566 = vmatprep.subr.mxu0 0.0
        %1567 = vmatpush1.xpose.msra.mxu0 0.0
        %1568 = vmatprep.subr.mxu0 0.0
        %1569 = vmatpush1.xpose.msra.mxu0 0.0
        %1570 = vmatprep.subr.mxu0 0.0
        %1571 = vmatpush1.xpose.msra.mxu0 0.0
        %1572 = vmatprep.subr.mxu0 0.0
        %1573 = vmatpush1.xpose.msra.mxu0 0.0
        %1574 = vmatprep.subr.mxu0 0.0
        %1575 = vmatpush1.xpose.msra.mxu0 0.0
        %1576 = vmatprep.subr.mxu0 0.0
        %1577 = vmatpush1.xpose.msra.mxu0 0.0
        %1578 = vmatprep.subr.mxu0 0.0
        %1579 = vmatpush1.xpose.msra.mxu0 0.0
        %1580 = vmatprep.subr.mxu0 0.0
        %1581 = vmatpush1.xpose.msra.mxu0 0.0
        %1582 = vmatprep.subr.mxu0 0.0
        %1583 = vmatpush1.xpose.msra.mxu0 0.0
        %1584 = vmatprep.subr.mxu0 0.0
        %1585 = vmatpush1.xpose.msra.mxu0 0.0
        %1586 = vmatprep.subr.mxu0 0.0
        %1587 = vmatpush1.xpose.msra.mxu0 %v1554
        %1588 = vmatprep.subr.mxu0 0.0
        %1589 = vmatpush2.xpose.msra.mxu0 0.0
        %1590 = vmatprep.subr.mxu0 0.0
        %1591 = vmatpush2.xpose.msra.mxu0 0.0
        %1592 = vmatprep.subr.mxu0 0.0
        %1593 = vmatpush2.xpose.msra.mxu0 0.0
        %1594 = vmatprep.subr.mxu0 0.0
        %1595 = vmatpush2.xpose.msra.mxu0 0.0
        %1596 = vmatprep.subr.mxu0 0.0
        %1597 = vmatpush2.xpose.msra.mxu0 0.0
        %1598 = vmatprep.subr.mxu0 0.0
        %1599 = vmatpush2.xpose.msra.mxu0 0.0
        %1600 = vmatprep.subr.mxu0 0.0
        %1601 = vmatpush2.xpose.msra.mxu0 0.0
        %1602 = vmatprep.subr.mxu0 0.0
        %1603 = vmatpush2.xpose.msra.mxu0 0.0
        %1604 = vmatprep.subr.mxu0 0.0
        %1605 = vmatpush2.xpose.msra.mxu0 0.0
        %1606 = vmatprep.subr.mxu0 0.0
        %1607 = vmatpush2.xpose.msra.mxu0 0.0
        %1608 = vmatprep.subr.mxu0 0.0
        %1609 = vmatpush2.xpose.msra.mxu0 0.0
        %1610 = vmatprep.subr.mxu0 0.0
        %1611 = vmatpush2.xpose.msra.mxu0 0.0
        %1612 = vmatprep.subr.mxu0 0.0
        %1613 = vmatpush2.xpose.msra.mxu0 0.0
        %1614 = vmatprep.subr.mxu0 0.0
        %1615 = vmatpush2.xpose.msra.mxu0 0.0
        %1616 = vmatprep.subr.mxu0 0.0
        %1617 = vmatpush2.xpose.msra.mxu0 0.0
        %1618 = vmatprep.subr.mxu0 0.0
        %1619 = vmatpush2.xpose.msra.mxu0 0.0
        %1620 = vmatprep.mubr.f32.mxu0 0.0
        %1621 = vmatmul.mubr.f32.gmra.mxu0 %v1039
        %v1622 = vpop.f32.mrf.mxu0
        %v1623 = vadd.f32 0.0, %v1622
        %v1624 = vpop.f32.mrf.mxu0
        %1625 = vdwg.mxu0
        %v1626 = vsel %vm1114, %v1623, -inf
        %1627 = vmax.xlane.f32.xlu0 %v1626
        %v1628 = vpop.xlane.xlu0 %1627
        %v1629 = vsub.f32 %v1623, %v1628
        %v1630 = vmul.f32 %v1629, 1.442695
        %v1631 = vpow.pop %v1630
        %v1632 = vsel %vm1114, %v1631, 0.0
        %1633 = vadd.xlane.f32.xlu0 %v1632
        %v1634 = vpop.xlane.xlu0 %1633
        %v1635 = vrcp.pop %v1634
        %v1636 = vmul.f32 %v1634, %v1635
        %v1637 = vsub.f32 2.0, %v1636
        %v1638 = vmul.f32 %v1635, %v1637
        %v1639 = vmul.f32 %v1631, %v1638
        %v1641 = vsel %vm1114, %v1639, 0
        %1643 = vmatprep.subr.mxu0 0.0
        %1644 = vmatpush1.msra.mxu0 0.0
        %1645 = vmatprep.subr.mxu0 0.0
        %1646 = vmatpush1.msra.mxu0 0.0
        %1647 = vmatprep.subr.mxu0 0.0
        %1648 = vmatpush1.msra.mxu0 0.0
        %1649 = vmatprep.subr.mxu0 0.0
        %1650 = vmatpush1.msra.mxu0 0.0
        %1651 = vmatprep.subr.mxu0 0.0
        %1652 = vmatpush1.msra.mxu0 0.0
        %1653 = vmatprep.subr.mxu0 0.0
        %1654 = vmatpush1.msra.mxu0 0.0
        %1655 = vmatprep.subr.mxu0 0.0
        %1656 = vmatpush1.msra.mxu0 0.0
        %1657 = vmatprep.subr.mxu0 0.0
        %1658 = vmatpush1.msra.mxu0 0.0
        %1659 = vmatprep.subr.mxu0 0.0
        %1660 = vmatpush1.msra.mxu0 0.0
        %1661 = vmatprep.subr.mxu0 0.0
        %1662 = vmatpush1.msra.mxu0 0.0
        %1663 = vmatprep.subr.mxu0 0.0
        %1664 = vmatpush1.msra.mxu0 0.0
        %1665 = vmatprep.subr.mxu0 0.0
        %1666 = vmatpush1.msra.mxu0 0.0
        %1667 = vmatprep.subr.mxu0 0.0
        %1668 = vmatpush1.msra.mxu0 0.0
        %1669 = vmatprep.subr.mxu0 0.0
        %1670 = vmatpush1.msra.mxu0 0.0
        %1671 = vmatprep.subr.mxu0 0.0
        %1672 = vmatpush1.msra.mxu0 0.0
        %1673 = vmatprep.subr.mxu0 0.0
        %1674 = vmatpush1.msra.mxu0 %v1552
        %1675 = vmatprep.subr.mxu0 0.0
        %1676 = vmatpush2.msra.mxu0 0.0
        %1677 = vmatprep.subr.mxu0 0.0
        %1678 = vmatpush2.msra.mxu0 0.0
        %1679 = vmatprep.subr.mxu0 0.0
        %1680 = vmatpush2.msra.mxu0 0.0
        %1681 = vmatprep.subr.mxu0 0.0
        %1682 = vmatpush2.msra.mxu0 0.0
        %1683 = vmatprep.subr.mxu0 0.0
        %1684 = vmatpush2.msra.mxu0 0.0
        %1685 = vmatprep.subr.mxu0 0.0
        %1686 = vmatpush2.msra.mxu0 0.0
        %1687 = vmatprep.subr.mxu0 0.0
        %1688 = vmatpush2.msra.mxu0 0.0
        %1689 = vmatprep.subr.mxu0 0.0
        %1690 = vmatpush2.msra.mxu0 0.0
        %1691 = vmatprep.subr.mxu0 0.0
        %1692 = vmatpush2.msra.mxu0 0.0
        %1693 = vmatprep.subr.mxu0 0.0
        %1694 = vmatpush2.msra.mxu0 0.0
        %1695 = vmatprep.subr.mxu0 0.0
        %1696 = vmatpush2.msra.mxu0 0.0
        %1697 = vmatprep.subr.mxu0 0.0
        %1698 = vmatpush2.msra.mxu0 0.0
        %1699 = vmatprep.subr.mxu0 0.0
        %1700 = vmatpush2.msra.mxu0 0.0
        %1701 = vmatprep.subr.mxu0 0.0
        %1702 = vmatpush2.msra.mxu0 0.0
        %1703 = vmatprep.subr.mxu0 0.0
        %1704 = vmatpush2.msra.mxu0 0.0
        %1705 = vmatprep.subr.mxu0 0.0
        %1706 = vmatpush2.msra.mxu0 0.0
        %1707 = vmatprep.mubr.f32.mxu0 0.0
        %1708 = vmatmul.mubr.f32.gmra.mxu0 %v1641
        %v1709 = vpop.f32.mrf.mxu0
        %v1710 = vadd.f32 0.0, %v1709
        %v1711 = vpop.f32.mrf.mxu0
        %1712 = vdwg.mxu0
        %v1713 = vadd.f32 %v1542, %v1710
        %v1714 = vld [vmem:[%s5] sm:$0xff]
        %v1715 = vld [vmem:[%s5 + $0x8] sm:$0xff]
        %v1716 = vld [vmem:[%s5 + $0x10] sm:$0xff]
        %v1717 = vld [vmem:[%s5 + $0x18] sm:$0xff]
        %v1718 = vld [vmem:[#allocation8] sm:$0x1]
        %v1720 = vlaneseq
        %v1721 = vshrl.u32 %v1720, 7
        %v1722 = vsub.s32 0, %v1721
        %v1723 = vrot.slane %v1718, %v1722
        %v1726 = vsel %vm789, %v1713, 0
        %1728 = vmatprep.subr.mxu0 0.0
        %1729 = vmatpush1.msra.mxu0 0.0
        %1730 = vmatprep.subr.mxu0 0.0
        %1731 = vmatpush1.msra.mxu0 0.0
        %1732 = vmatprep.subr.mxu0 0.0
        %1733 = vmatpush1.msra.mxu0 0.0
        %1734 = vmatprep.subr.mxu0 0.0
        %1735 = vmatpush1.msra.mxu0 0.0
        %1736 = vmatprep.subr.mxu0 0.0
        %1737 = vmatpush1.msra.mxu0 0.0
        %1738 = vmatprep.subr.mxu0 0.0
        %1739 = vmatpush1.msra.mxu0 0.0
        %1740 = vmatprep.subr.mxu0 0.0
        %1741 = vmatpush1.msra.mxu0 0.0
        %1742 = vmatprep.subr.mxu0 0.0
        %1743 = vmatpush1.msra.mxu0 0.0
        %1744 = vmatprep.subr.mxu0 0.0
        %1745 = vmatpush1.msra.mxu0 0.0
        %1746 = vmatprep.subr.mxu0 0.0
        %1747 = vmatpush1.msra.mxu0 0.0
        %1748 = vmatprep.subr.mxu0 0.0
        %1749 = vmatpush1.msra.mxu0 0.0
        %1750 = vmatprep.subr.mxu0 0.0
        %1751 = vmatpush1.msra.mxu0 0.0
        %1752 = vmatprep.subr.mxu0 0.0
        %1753 = vmatpush1.msra.mxu0 %v1717
        %1754 = vmatprep.subr.mxu0 0.0
        %1755 = vmatpush1.msra.mxu0 %v1716
        %1756 = vmatprep.subr.mxu0 0.0
        %1757 = vmatpush1.msra.mxu0 %v1715
        %1758 = vmatprep.subr.mxu0 0.0
        %1759 = vmatpush1.msra.mxu0 %v1714
        %1760 = vmatprep.subr.mxu0 0.0
        %1761 = vmatpush2.msra.mxu0 0.0
        %1762 = vmatprep.subr.mxu0 0.0
        %1763 = vmatpush2.msra.mxu0 0.0
        %1764 = vmatprep.subr.mxu0 0.0
        %1765 = vmatpush2.msra.mxu0 0.0
        %1766 = vmatprep.subr.mxu0 0.0
        %1767 = vmatpush2.msra.mxu0 0.0
        %1768 = vmatprep.subr.mxu0 0.0
        %1769 = vmatpush2.msra.mxu0 0.0
        %1770 = vmatprep.subr.mxu0 0.0
        %1771 = vmatpush2.msra.mxu0 0.0
        %1772 = vmatprep.subr.mxu0 0.0
        %1773 = vmatpush2.msra.mxu0 0.0
        %1774 = vmatprep.subr.mxu0 0.0
        %1775 = vmatpush2.msra.mxu0 0.0
        %1776 = vmatprep.subr.mxu0 0.0
        %1777 = vmatpush2.msra.mxu0 0.0
        %1778 = vmatprep.subr.mxu0 0.0
        %1779 = vmatpush2.msra.mxu0 0.0
        %1780 = vmatprep.subr.mxu0 0.0
        %1781 = vmatpush2.msra.mxu0 0.0
        %1782 = vmatprep.subr.mxu0 0.0
        %1783 = vmatpush2.msra.mxu0 0.0
        %1784 = vmatprep.subr.mxu0 0.0
        %1785 = vmatpush2.msra.mxu0 0.0
        %1786 = vmatprep.subr.mxu0 0.0
        %1787 = vmatpush2.msra.mxu0 0.0
        %1788 = vmatprep.subr.mxu0 0.0
        %1789 = vmatpush2.msra.mxu0 0.0
        %1790 = vmatprep.subr.mxu0 0.0
        %1791 = vmatpush2.msra.mxu0 0.0
        %1792 = vmatprep.mubr.f32.mxu0 0.0
        %1793 = vmatmul.mubr.f32.gmra.mxu0 %v1726
        %v1794 = vpop.f32.mrf.mxu0
        %v1795 = vadd.f32 %v1723, %v1794
        %v1796 = vpop.f32.mrf.mxu0
        %1797 = vdwg.mxu0
        %v1798 = vadd.f32 %v775, %v1795
        %v1799 = vsel %vm789, %v1798, 0.0
        %1800 = vadd.xlane.f32.xlu0 %v1799
        %v1801 = vpop.xlane.xlu0 %1800
        %v1802 = vrcp.pop 32.0
        %v1803 = vmul.f32 %v1801, %v1802
        %v1804 = vsub.f32 %v1798, %v1803
        %v1805 = vmul.f32 %v1804, %v1804
        %v1806 = vsel %vm789, %v1805, 0.0
        %1807 = vadd.xlane.f32.xlu0 %v1806
        %v1808 = vpop.xlane.xlu0 %1807
        %v1809 = vmul.f32 %v1808, %v1802
        %v1810 = vadd.f32 %v1809, 1e-05
        %v1811 = vrsqrt.pop %v1810
        %v1812 = vmul.f32 %v1804, %v1811
        %v1813 = vld [vmem:[#allocation10] sm:$0x1]
        %v1815 = vlaneseq
        %v1816 = vshrl.u32 %v1815, 7
        %v1817 = vsub.s32 0, %v1816
        %v1818 = vrot.slane %v1813, %v1817
        %v1820 = vmul.f32 %v1812, %v1818
        %v1821 = vld [vmem:[%s8] sm:$0x1]
        %v1823 = vlaneseq
        %v1824 = vshrl.u32 %v1823, 7
        %v1825 = vsub.s32 0, %v1824
        %v1826 = vrot.slane %v1821, %v1825
        %v1828 = vadd.f32 %v1820, %v1826
        %v1829 = vld [vmem:[#allocation11] sm:$0xff]
        %v1830 = vld [vmem:[#allocation11 + $0x8] sm:$0xff]
        %v1831 = vld [vmem:[#allocation11 + $0x10] sm:$0xff]
        %v1832 = vld [vmem:[#allocation11 + $0x18] sm:$0xff]
        %v1833 = vld [vmem:[%s10] sm:$0x1]
        %v1835 = vlaneseq
        %v1836 = vshrl.u32 %v1835, 7
        %v1837 = vsub.s32 0, %v1836
        %v1838 = vrot.slane %v1833, %v1837
        %v1841 = vsel %vm789, %v1828, 0
        %1843 = vmatprep.subr.mxu0 0.0
        %1844 = vmatpush1.msra.mxu0 0.0
        %1845 = vmatprep.subr.mxu0 0.0
        %1846 = vmatpush1.msra.mxu0 0.0
        %1847 = vmatprep.subr.mxu0 0.0
        %1848 = vmatpush1.msra.mxu0 0.0
        %1849 = vmatprep.subr.mxu0 0.0
        %1850 = vmatpush1.msra.mxu0 0.0
        %1851 = vmatprep.subr.mxu0 0.0
        %1852 = vmatpush1.msra.mxu0 0.0
        %1853 = vmatprep.subr.mxu0 0.0
        %1854 = vmatpush1.msra.mxu0 0.0
        %1855 = vmatprep.subr.mxu0 0.0
        %1856 = vmatpush1.msra.mxu0 0.0
        %1857 = vmatprep.subr.mxu0 0.0
        %1858 = vmatpush1.msra.mxu0 0.0
        %1859 = vmatprep.subr.mxu0 0.0
        %1860 = vmatpush1.msra.mxu0 0.0
        %1861 = vmatprep.subr.mxu0 0.0
        %1862 = vmatpush1.msra.mxu0 0.0
        %1863 = vmatprep.subr.mxu0 0.0
        %1864 = vmatpush1.msra.mxu0 0.0
        %1865 = vmatprep.subr.mxu0 0.0
        %1866 = vmatpush1.msra.mxu0 0.0
        %1867 = vmatprep.subr.mxu0 0.0
        %1868 = vmatpush1.msra.mxu0 %v1832
        %1869 = vmatprep.subr.mxu0 0.0
        %1870 = vmatpush1.msra.mxu0 %v1831
        %1871 = vmatprep.subr.mxu0 0.0
        %1872 = vmatpush1.msra.mxu0 %v1830
        %1873 = vmatprep.subr.mxu0 0.0
        %1874 = vmatpush1.msra.mxu0 %v1829
        %1875 = vmatprep.subr.mxu0 0.0
        %1876 = vmatpush2.msra.mxu0 0.0
        %1877 = vmatprep.subr.mxu0 0.0
        %1878 = vmatpush2.msra.mxu0 0.0
        %1879 = vmatprep.subr.mxu0 0.0
        %1880 = vmatpush2.msra.mxu0 0.0
        %1881 = vmatprep.subr.mxu0 0.0
        %1882 = vmatpush2.msra.mxu0 0.0
        %1883 = vmatprep.subr.mxu0 0.0
        %1884 = vmatpush2.msra.mxu0 0.0
        %1885 = vmatprep.subr.mxu0 0.0
        %1886 = vmatpush2.msra.mxu0 0.0
        %1887 = vmatprep.subr.mxu0 0.0
        %1888 = vmatpush2.msra.mxu0 0.0
        %1889 = vmatprep.subr.mxu0 0.0
        %1890 = vmatpush2.msra.mxu0 0.0
        %1891 = vmatprep.subr.mxu0 0.0
        %1892 = vmatpush2.msra.mxu0 0.0
        %1893 = vmatprep.subr.mxu0 0.0
        %1894 = vmatpush2.msra.mxu0 0.0
        %1895 = vmatprep.subr.mxu0 0.0
        %1896 = vmatpush2.msra.mxu0 0.0
        %1897 = vmatprep.subr.mxu0 0.0
        %1898 = vmatpush2.msra.mxu0 0.0
        %1899 = vmatprep.subr.mxu0 0.0
        %1900 = vmatpush2.msra.mxu0 0.0
        %1901 = vmatprep.subr.mxu0 0.0
        %1902 = vmatpush2.msra.mxu0 0.0
        %1903 = vmatprep.subr.mxu0 0.0
        %1904 = vmatpush2.msra.mxu0 0.0
        %1905 = vmatprep.subr.mxu0 0.0
        %1906 = vmatpush2.msra.mxu0 0.0
        %1907 = vmatprep.mubr.f32.mxu0 0.0
        %1908 = vmatmul.mubr.f32.gmra.mxu0 %v1841
        %v1909 = vpop.f32.mrf.mxu0
        %v1910 = vadd.f32 %v1838, %v1909
        %v1911 = vpop.f32.mrf.mxu0
        %1912 = vdwg.mxu0
        %s1913 = scalar_lea.vmem [#allocation11], 32
        %v1914 = vld [vmem:[%s1913] sm:$0xff]
        %v1915 = vld [vmem:[%s1913 + $0x8] sm:$0xff]
        %v1916 = vld [vmem:[%s1913 + $0x10] sm:$0xff]
        %v1917 = vld [vmem:[%s1913 + $0x18] sm:$0xff]
        %s1918 = scalar_lea.vmem %s10, 1
        %v1919 = vld [vmem:[%s1918] sm:$0x1]
        %v1921 = vlaneseq
        %v1922 = vshrl.u32 %v1921, 7
        %v1923 = vsub.s32 0, %v1922
        %v1924 = vrot.slane %v1919, %v1923
        %v1927 = vsel %vm789, %v776, 0
        %v1930 = vsel %vm789, %v777, 0
        %1932 = vmatprep.subr.mxu0 0.0
        %1933 = vmatpush1.msra.mxu0 0.0
        %1934 = vmatprep.subr.mxu0 0.0
        %1935 = vmatpush1.msra.mxu0 0.0
        %1936 = vmatprep.subr.mxu0 0.0
        %1937 = vmatpush1.msra.mxu0 0.0
        %1938 = vmatprep.subr.mxu0 0.0
        %1939 = vmatpush1.msra.mxu0 0.0
        %1940 = vmatprep.subr.mxu0 0.0
        %1941 = vmatpush1.msra.mxu0 0.0
        %1942 = vmatprep.subr.mxu0 0.0
        %1943 = vmatpush1.msra.mxu0 0.0
        %1944 = vmatprep.subr.mxu0 0.0
        %1945 = vmatpush1.msra.mxu0 0.0
        %1946 = vmatprep.subr.mxu0 0.0
        %1947 = vmatpush1.msra.mxu0 0.0
        %1948 = vmatprep.subr.mxu0 0.0
        %1949 = vmatpush1.msra.mxu0 0.0
        %1950 = vmatprep.subr.mxu0 0.0
        %1951 = vmatpush1.msra.mxu0 0.0
        %1952 = vmatprep.subr.mxu0 0.0
        %1953 = vmatpush1.msra.mxu0 0.0
        %1954 = vmatprep.subr.mxu0 0.0
        %1955 = vmatpush1.msra.mxu0 0.0
        %1956 = vmatprep.subr.mxu0 0.0
        %1957 = vmatpush1.msra.mxu0 %v1917
        %1958 = vmatprep.subr.mxu0 0.0
        %1959 = vmatpush1.msra.mxu0 %v1916
        %1960 = vmatprep.subr.mxu0 0.0
        %1961 = vmatpush1.msra.mxu0 %v1915
        %1962 = vmatprep.subr.mxu0 0.0
        %1963 = vmatpush1.msra.mxu0 %v1914
        %1964 = vmatprep.subr.mxu0 0.0
        %1965 = vmatpush2.msra.mxu0 0.0
        %1966 = vmatprep.subr.mxu0 0.0
        %1967 = vmatpush2.msra.mxu0 0.0
        %1968 = vmatprep.subr.mxu0 0.0
        %1969 = vmatpush2.msra.mxu0 0.0
        %1970 = vmatprep.subr.mxu0 0.0
        %1971 = vmatpush2.msra.mxu0 0.0
        %1972 = vmatprep.subr.mxu0 0.0
        %1973 = vmatpush2.msra.mxu0 0.0
        %1974 = vmatprep.subr.mxu0 0.0
        %1975 = vmatpush2.msra.mxu0 0.0
        %1976 = vmatprep.subr.mxu0 0.0
        %1977 = vmatpush2.msra.mxu0 0.0
        %1978 = vmatprep.subr.mxu0 0.0
        %1979 = vmatpush2.msra.mxu0 0.0
        %1980 = vmatprep.subr.mxu0 0.0
        %1981 = vmatpush2.msra.mxu0 0.0
        %1982 = vmatprep.subr.mxu0 0.0
        %1983 = vmatpush2.msra.mxu0 0.0
        %1984 = vmatprep.subr.mxu0 0.0
        %1985 = vmatpush2.msra.mxu0 0.0
        %1986 = vmatprep.subr.mxu0 0.0
        %1987 = vmatpush2.msra.mxu0 0.0
        %1988 = vmatprep.subr.mxu0 0.0
        %1989 = vmatpush2.msra.mxu0 0.0
        %1990 = vmatprep.subr.mxu0 0.0
        %1991 = vmatpush2.msra.mxu0 0.0
        %1992 = vmatprep.subr.mxu0 0.0
        %1993 = vmatpush2.msra.mxu0 0.0
        %1994 = vmatprep.subr.mxu0 0.0
        %1995 = vmatpush2.msra.mxu0 0.0
        %1996 = vmatprep.mubr.f32.mxu0 0.0
        %1997 = vmatmul.mubr.f32.gmra.mxu0 %v1927
        %v1998 = vpop.f32.mrf.mxu0
        %v1999 = vadd.f32 %v1924, %v1998
        %v2000 = vpop.f32.mrf.mxu0
        %2001 = vmatprep.mubr.f32.mxu0 0.0
        %2002 = vmatmul.mubr.f32.gmra.mxu0 %v1930
        %v2003 = vpop.f32.mrf.mxu0
        %v2004 = vadd.f32 %v1924, %v2003
        %v2005 = vpop.f32.mrf.mxu0
        %2006 = vdwg.mxu0
        %s2007 = scalar_lea.vmem [#allocation11], 64
        %v2008 = vld [vmem:[%s2007] sm:$0xff]
        %v2009 = vld [vmem:[%s2007 + $0x8] sm:$0xff]
        %v2010 = vld [vmem:[%s2007 + $0x10] sm:$0xff]
        %v2011 = vld [vmem:[%s2007 + $0x18] sm:$0xff]
        %s2012 = scalar_lea.vmem %s10, 2
        %v2013 = vld [vmem:[%s2012] sm:$0x1]
        %v2015 = vlaneseq
        %v2016 = vshrl.u32 %v2015, 7
        %v2017 = vsub.s32 0, %v2016
        %v2018 = vrot.slane %v2013, %v2017
        %2020 = vmatprep.subr.mxu0 0.0
        %2021 = vmatpush1.msra.mxu0 0.0
        %2022 = vmatprep.subr.mxu0 0.0
        %2023 = vmatpush1.msra.mxu0 0.0
        %2024 = vmatprep.subr.mxu0 0.0
        %2025 = vmatpush1.msra.mxu0 0.0
        %2026 = vmatprep.subr.mxu0 0.0
        %2027 = vmatpush1.msra.mxu0 0.0
        %2028 = vmatprep.subr.mxu0 0.0
        %2029 = vmatpush1.msra.mxu0 0.0
        %2030 = vmatprep.subr.mxu0 0.0
        %2031 = vmatpush1.msra.mxu0 0.0
        %2032 = vmatprep.subr.mxu0 0.0
        %2033 = vmatpush1.msra.mxu0 0.0
        %2034 = vmatprep.subr.mxu0 0.0
        %2035 = vmatpush1.msra.mxu0 0.0
        %2036 = vmatprep.subr.mxu0 0.0
        %2037 = vmatpush1.msra.mxu0 0.0
        %2038 = vmatprep.subr.mxu0 0.0
        %2039 = vmatpush1.msra.mxu0 0.0
        %2040 = vmatprep.subr.mxu0 0.0
        %2041 = vmatpush1.msra.mxu0 0.0
        %2042 = vmatprep.subr.mxu0 0.0
        %2043 = vmatpush1.msra.mxu0 0.0
        %2044 = vmatprep.subr.mxu0 0.0
        %2045 = vmatpush1.msra.mxu0 %v2011
        %2046 = vmatprep.subr.mxu0 0.0
        %2047 = vmatpush1.msra.mxu0 %v2010
        %2048 = vmatprep.subr.mxu0 0.0
        %2049 = vmatpush1.msra.mxu0 %v2009
        %2050 = vmatprep.subr.mxu0 0.0
        %2051 = vmatpush1.msra.mxu0 %v2008
        %2052 = vmatprep.subr.mxu0 0.0
        %2053 = vmatpush2.msra.mxu0 0.0
        %2054 = vmatprep.subr.mxu0 0.0
        %2055 = vmatpush2.msra.mxu0 0.0
        %2056 = vmatprep.subr.mxu0 0.0
        %2057 = vmatpush2.msra.mxu0 0.0
        %2058 = vmatprep.subr.mxu0 0.0
        %2059 = vmatpush2.msra.mxu0 0.0
        %2060 = vmatprep.subr.mxu0 0.0
        %2061 = vmatpush2.msra.mxu0 0.0
        %2062 = vmatprep.subr.mxu0 0.0
        %2063 = vmatpush2.msra.mxu0 0.0
        %2064 = vmatprep.subr.mxu0 0.0
        %2065 = vmatpush2.msra.mxu0 0.0
        %2066 = vmatprep.subr.mxu0 0.0
        %2067 = vmatpush2.msra.mxu0 0.0
        %2068 = vmatprep.subr.mxu0 0.0
        %2069 = vmatpush2.msra.mxu0 0.0
        %2070 = vmatprep.subr.mxu0 0.0
        %2071 = vmatpush2.msra.mxu0 0.0
        %2072 = vmatprep.subr.mxu0 0.0
        %2073 = vmatpush2.msra.mxu0 0.0
        %2074 = vmatprep.subr.mxu0 0.0
        %2075 = vmatpush2.msra.mxu0 0.0
        %2076 = vmatprep.subr.mxu0 0.0
        %2077 = vmatpush2.msra.mxu0 0.0
        %2078 = vmatprep.subr.mxu0 0.0
        %2079 = vmatpush2.msra.mxu0 0.0
        %2080 = vmatprep.subr.mxu0 0.0
        %2081 = vmatpush2.msra.mxu0 0.0
        %2082 = vmatprep.subr.mxu0 0.0
        %2083 = vmatpush2.msra.mxu0 0.0
        %2084 = vmatprep.mubr.f32.mxu0 0.0
        %2085 = vmatmul.mubr.f32.gmra.mxu0 %v1927
        %v2086 = vpop.f32.mrf.mxu0
        %v2087 = vadd.f32 %v2018, %v2086
        %v2088 = vpop.f32.mrf.mxu0
        %2089 = vmatprep.mubr.f32.mxu0 0.0
        %2090 = vmatmul.mubr.f32.gmra.mxu0 %v1930
        %v2091 = vpop.f32.mrf.mxu0
        %v2092 = vadd.f32 %v2018, %v2091
        %v2093 = vpop.f32.mrf.mxu0
        %2094 = vdwg.mxu0
        %v2095 = vmul.f32 %v1999, %v1034
        %v2096 = vmul.f32 %v2004, %v1034
        %v2097 = vmul.f32 %v2087, %v1034
        %v2098 = vmul.f32 %v2092, %v1034
        %v2100 = vsel %vm789, %v1910, 0
        %v2103 = vsel %vm789, %v2095, 0
        %v2106 = vsel %vm789, %v2096, 0
        %2108 = vmatprep.subr.mxu0 0.0
        %2109 = vmatpush1.xpose.msra.mxu0 0.0
        %2110 = vmatprep.subr.mxu0 0.0
        %2111 = vmatpush1.xpose.msra.mxu0 0.0
        %2112 = vmatprep.subr.mxu0 0.0
        %2113 = vmatpush1.xpose.msra.mxu0 0.0
        %2114 = vmatprep.subr.mxu0 0.0
        %2115 = vmatpush1.xpose.msra.mxu0 0.0
        %2116 = vmatprep.subr.mxu0 0.0
        %2117 = vmatpush1.xpose.msra.mxu0 0.0
        %2118 = vmatprep.subr.mxu0 0.0
        %2119 = vmatpush1.xpose.msra.mxu0 0.0
        %2120 = vmatprep.subr.mxu0 0.0
        %2121 = vmatpush1.xpose.msra.mxu0 0.0
        %2122 = vmatprep.subr.mxu0 0.0
        %2123 = vmatpush1.xpose.msra.mxu0 0.0
        %2124 = vmatprep.subr.mxu0 0.0
        %2125 = vmatpush1.xpose.msra.mxu0 0.0
        %2126 = vmatprep.subr.mxu0 0.0
        %2127 = vmatpush1.xpose.msra.mxu0 0.0
        %2128 = vmatprep.subr.mxu0 0.0
        %2129 = vmatpush1.xpose.msra.mxu0 0.0
        %2130 = vmatprep.subr.mxu0 0.0
        %2131 = vmatpush1.xpose.msra.mxu0 0.0
        %2132 = vmatprep.subr.mxu0 0.0
        %2133 = vmatpush1.xpose.msra.mxu0 0.0
        %2134 = vmatprep.subr.mxu0 0.0
        %2135 = vmatpush1.xpose.msra.mxu0 0.0
        %2136 = vmatprep.subr.mxu0 0.0
        %2137 = vmatpush1.xpose.msra.mxu0 %v2106
        %2138 = vmatprep.subr.mxu0 0.0
        %2139 = vmatpush1.xpose.msra.mxu0 %v2103
        %2140 = vmatprep.subr.mxu0 0.0
        %2141 = vmatpush2.xpose.msra.mxu0 0.0
        %2142 = vmatprep.subr.mxu0 0.0
        %2143 = vmatpush2.xpose.msra.mxu0 0.0
        %2144 = vmatprep.subr.mxu0 0.0
        %2145 = vmatpush2.xpose.msra.mxu0 0.0
        %2146 = vmatprep.subr.mxu0 0.0
        %2147 = vmatpush2.xpose.msra.mxu0 0.0
        %2148 = vmatprep.subr.mxu0 0.0
        %2149 = vmatpush2.xpose.msra.mxu0 0.0
        %2150 = vmatprep.subr.mxu0 0.0
        %2151 = vmatpush2.xpose.msra.mxu0 0.0
        %2152 = vmatprep.subr.mxu0 0.0
        %2153 = vmatpush2.xpose.msra.mxu0 0.0
        %2154 = vmatprep.subr.mxu0 0.0
        %2155 = vmatpush2.xpose.msra.mxu0 0.0
        %2156 = vmatprep.subr.mxu0 0.0
        %2157 = vmatpush2.xpose.msra.mxu0 0.0
        %2158 = vmatprep.subr.mxu0 0.0
        %2159 = vmatpush2.xpose.msra.mxu0 0.0
        %2160 = vmatprep.subr.mxu0 0.0
        %2161 = vmatpush2.xpose.msra.mxu0 0.0
        %2162 = vmatprep.subr.mxu0 0.0
        %2163 = vmatpush2.xpose.msra.mxu0 0.0
        %2164 = vmatprep.subr.mxu0 0.0
        %2165 = vmatpush2.xpose.msra.mxu0 0.0
        %2166 = vmatprep.subr.mxu0 0.0
        %2167 = vmatpush2.xpose.msra.mxu0 0.0
        %2168 = vmatprep.subr.mxu0 0.0
        %2169 = vmatpush2.xpose.msra.mxu0 0.0
        %2170 = vmatprep.subr.mxu0 0.0
        %2171 = vmatpush2.xpose.msra.mxu0 0.0
        %2172 = vmatprep.mubr.f32.mxu0 0.0
        %2173 = vmatmul.mubr.f32.gmra.mxu0 %v2100
        %v2174 = vpop.f32.mrf.mxu0
        %v2175 = vadd.f32 0.0, %v2174
        %v2176 = vpop.f32.mrf.mxu0
        %2177 = vdwg.mxu0
        %vm2178 = vcmask 80896
        %v2179 = vsel %vm2178, %v2175, -inf
        %2180 = vmax.xlane.f32.xlu0 %v2179
        %v2181 = vpop.xlane.xlu0 %2180
        %v2182 = vsub.f32 %v2175, %v2181
        %v2183 = vmul.f32 %v2182, 1.442695
        %v2184 = vpow.pop %v2183
        %v2185 = vsel %vm2178, %v2184, 0.0
        %2186 = vadd.xlane.f32.xlu0 %v2185
        %v2187 = vpop.xlane.xlu0 %2186
        %v2188 = vrcp.pop %v2187
        %v2189 = vmul.f32 %v2187, %v2188
        %v2190 = vsub.f32 2.0, %v2189
        %v2191 = vmul.f32 %v2188, %v2190
        %v2192 = vmul.f32 %v2184, %v2191
        %v2193 = vmul.f32 %v1999, %v1135
        %v2194 = vmul.f32 %v2004, %v1135
        %v2195 = vmul.f32 %v2087, %v1135
        %v2196 = vmul.f32 %v2092, %v1135
        %v2198 = vsel %vm789, %v2193, 0
        %v2201 = vsel %vm789, %v2194, 0
        %2203 = vmatprep.subr.mxu0 0.0
        %2204 = vmatpush1.xpose.msra.mxu0 0.0
        %2205 = vmatprep.subr.mxu0 0.0
        %2206 = vmatpush1.xpose.msra.mxu0 0.0
        %2207 = vmatprep.subr.mxu0 0.0
        %2208 = vmatpush1.xpose.msra.mxu0 0.0
        %2209 = vmatprep.subr.mxu0 0.0
        %2210 = vmatpush1.xpose.msra.mxu0 0.0
        %2211 = vmatprep.subr.mxu0 0.0
        %2212 = vmatpush1.xpose.msra.mxu0 0.0
        %2213 = vmatprep.subr.mxu0 0.0
        %2214 = vmatpush1.xpose.msra.mxu0 0.0
        %2215 = vmatprep.subr.mxu0 0.0
        %2216 = vmatpush1.xpose.msra.mxu0 0.0
        %2217 = vmatprep.subr.mxu0 0.0
        %2218 = vmatpush1.xpose.msra.mxu0 0.0
        %2219 = vmatprep.subr.mxu0 0.0
        %2220 = vmatpush1.xpose.msra.mxu0 0.0
        %2221 = vmatprep.subr.mxu0 0.0
        %2222 = vmatpush1.xpose.msra.mxu0 0.0
        %2223 = vmatprep.subr.mxu0 0.0
        %2224 = vmatpush1.xpose.msra.mxu0 0.0
        %2225 = vmatprep.subr.mxu0 0.0
        %2226 = vmatpush1.xpose.msra.mxu0 0.0
        %2227 = vmatprep.subr.mxu0 0.0
        %2228 = vmatpush1.xpose.msra.mxu0 0.0
        %2229 = vmatprep.subr.mxu0 0.0
        %2230 = vmatpush1.xpose.msra.mxu0 0.0
        %2231 = vmatprep.subr.mxu0 0.0
        %2232 = vmatpush1.xpose.msra.mxu0 %v2201
        %2233 = vmatprep.subr.mxu0 0.0
        %2234 = vmatpush1.xpose.msra.mxu0 %v2198
        %2235 = vmatprep.subr.mxu0 0.0
        %2236 = vmatpush2.xpose.msra.mxu0 0.0
        %2237 = vmatprep.subr.mxu0 0.0
        %2238 = vmatpush2.xpose.msra.mxu0 0.0
        %2239 = vmatprep.subr.mxu0 0.0
        %2240 = vmatpush2.xpose.msra.mxu0 0.0
        %2241 = vmatprep.subr.mxu0 0.0
        %2242 = vmatpush2.xpose.msra.mxu0 0.0
        %2243 = vmatprep.subr.mxu0 0.0
        %2244 = vmatpush2.xpose.msra.mxu0 0.0
        %2245 = vmatprep.subr.mxu0 0.0
        %2246 = vmatpush2.xpose.msra.mxu0 0.0
        %2247 = vmatprep.subr.mxu0 0.0
        %2248 = vmatpush2.xpose.msra.mxu0 0.0
        %2249 = vmatprep.subr.mxu0 0.0
        %2250 = vmatpush2.xpose.msra.mxu0 0.0
        %2251 = vmatprep.subr.mxu0 0.0
        %2252 = vmatpush2.xpose.msra.mxu0 0.0
        %2253 = vmatprep.subr.mxu0 0.0
        %2254 = vmatpush2.xpose.msra.mxu0 0.0
        %2255 = vmatprep.subr.mxu0 0.0
        %2256 = vmatpush2.xpose.msra.mxu0 0.0
        %2257 = vmatprep.subr.mxu0 0.0
        %2258 = vmatpush2.xpose.msra.mxu0 0.0
        %2259 = vmatprep.subr.mxu0 0.0
        %2260 = vmatpush2.xpose.msra.mxu0 0.0
        %2261 = vmatprep.subr.mxu0 0.0
        %2262 = vmatpush2.xpose.msra.mxu0 0.0
        %2263 = vmatprep.subr.mxu0 0.0
        %2264 = vmatpush2.xpose.msra.mxu0 0.0
        %2265 = vmatprep.subr.mxu0 0.0
        %2266 = vmatpush2.xpose.msra.mxu0 0.0
        %2267 = vmatprep.mubr.f32.mxu0 0.0
        %2268 = vmatmul.mubr.f32.gmra.mxu0 %v2100
        %v2269 = vpop.f32.mrf.mxu0
        %v2270 = vadd.f32 0.0, %v2269
        %v2271 = vpop.f32.mrf.mxu0
        %2272 = vdwg.mxu0
        %v2273 = vsel %vm2178, %v2270, -inf
        %2274 = vmax.xlane.f32.xlu0 %v2273
        %v2275 = vpop.xlane.xlu0 %2274
        %v2276 = vsub.f32 %v2270, %v2275
        %v2277 = vmul.f32 %v2276, 1.442695
        %v2278 = vpow.pop %v2277
        %v2279 = vsel %vm2178, %v2278, 0.0
        %2280 = vadd.xlane.f32.xlu0 %v2279
        %v2281 = vpop.xlane.xlu0 %2280
        %v2282 = vrcp.pop %v2281
        %v2283 = vmul.f32 %v2281, %v2282
        %v2284 = vsub.f32 2.0, %v2283
        %v2285 = vmul.f32 %v2282, %v2284
        %v2286 = vmul.f32 %v2278, %v2285
        %v2288 = vsel %vm2178, %v2286, 0
        %vm2290 = vcmask 1041408
        %v2292 = vsel %vm2290, %v2196, 0
        %2294 = vmatprep.subr.mxu0 0.0
        %2295 = vmatpush1.msra.mxu0 0.0
        %2296 = vmatprep.subr.mxu0 0.0
        %2297 = vmatpush1.msra.mxu0 0.0
        %2298 = vmatprep.subr.mxu0 0.0
        %2299 = vmatpush1.msra.mxu0 0.0
        %2300 = vmatprep.subr.mxu0 0.0
        %2301 = vmatpush1.msra.mxu0 0.0
        %2302 = vmatprep.subr.mxu0 0.0
        %2303 = vmatpush1.msra.mxu0 0.0
        %2304 = vmatprep.subr.mxu0 0.0
        %2305 = vmatpush1.msra.mxu0 0.0
        %2306 = vmatprep.subr.mxu0 0.0
        %2307 = vmatpush1.msra.mxu0 0.0
        %2308 = vmatprep.subr.mxu0 0.0
        %2309 = vmatpush1.msra.mxu0 0.0
        %2310 = vmatprep.subr.mxu0 0.0
        %2311 = vmatpush1.msra.mxu0 0.0
        %2312 = vmatprep.subr.mxu0 0.0
        %2313 = vmatpush1.msra.mxu0 0.0
        %2314 = vmatprep.subr.mxu0 0.0
        %2315 = vmatpush1.msra.mxu0 0.0
        %2316 = vmatprep.subr.mxu0 0.0
        %2317 = vmatpush1.msra.mxu0 0.0
        %2318 = vmatprep.subr.mxu0 0.0
        %2319 = vmatpush1.msra.mxu0 0.0
        %2320 = vmatprep.subr.mxu0 0.0
        %2321 = vmatpush1.msra.mxu0 0.0
        %2322 = vmatprep.subr.mxu0 0.0
        %2323 = vmatpush1.msra.mxu0 %v2292
        %2324 = vmatprep.subr.mxu0 0.0
        %2325 = vmatpush1.msra.mxu0 %v2195
        %2326 = vmatprep.subr.mxu0 0.0
        %2327 = vmatpush2.msra.mxu0 0.0
        %2328 = vmatprep.subr.mxu0 0.0
        %2329 = vmatpush2.msra.mxu0 0.0
        %2330 = vmatprep.subr.mxu0 0.0
        %2331 = vmatpush2.msra.mxu0 0.0
        %2332 = vmatprep.subr.mxu0 0.0
        %2333 = vmatpush2.msra.mxu0 0.0
        %2334 = vmatprep.subr.mxu0 0.0
        %2335 = vmatpush2.msra.mxu0 0.0
        %2336 = vmatprep.subr.mxu0 0.0
        %2337 = vmatpush2.msra.mxu0 0.0
        %2338 = vmatprep.subr.mxu0 0.0
        %2339 = vmatpush2.msra.mxu0 0.0
        %2340 = vmatprep.subr.mxu0 0.0
        %2341 = vmatpush2.msra.mxu0 0.0
        %2342 = vmatprep.subr.mxu0 0.0
        %2343 = vmatpush2.msra.mxu0 0.0
        %2344 = vmatprep.subr.mxu0 0.0
        %2345 = vmatpush2.msra.mxu0 0.0
        %2346 = vmatprep.subr.mxu0 0.0
        %2347 = vmatpush2.msra.mxu0 0.0
        %2348 = vmatprep.subr.mxu0 0.0
        %2349 = vmatpush2.msra.mxu0 0.0
        %2350 = vmatprep.subr.mxu0 0.0
        %2351 = vmatpush2.msra.mxu0 0.0
        %2352 = vmatprep.subr.mxu0 0.0
        %2353 = vmatpush2.msra.mxu0 0.0
        %2354 = vmatprep.subr.mxu0 0.0
        %2355 = vmatpush2.msra.mxu0 0.0
        %2356 = vmatprep.subr.mxu0 0.0
        %2357 = vmatpush2.msra.mxu0 0.0
        %2358 = vmatprep.mubr.f32.mxu0 0.0
        %2359 = vmatmul.mubr.f32.gmra.mxu0 %v2288
        %v2360 = vpop.f32.mrf.mxu0
        %v2361 = vadd.f32 0.0, %v2360
        %v2362 = vpop.f32.mrf.mxu0
        %2363 = vdwg.mxu0
        %v2365 = vsel %vm2178, %v2192, 0
        %v2368 = vsel %vm2290, %v2098, 0
        %2370 = vmatprep.subr.mxu0 0.0
        %2371 = vmatpush1.msra.mxu0 0.0
        %2372 = vmatprep.subr.mxu0 0.0
        %2373 = vmatpush1.msra.mxu0 0.0
        %2374 = vmatprep.subr.mxu0 0.0
        %2375 = vmatpush1.msra.mxu0 0.0
        %2376 = vmatprep.subr.mxu0 0.0
        %2377 = vmatpush1.msra.mxu0 0.0
        %2378 = vmatprep.subr.mxu0 0.0
        %2379 = vmatpush1.msra.mxu0 0.0
        %2380 = vmatprep.subr.mxu0 0.0
        %2381 = vmatpush1.msra.mxu0 0.0
        %2382 = vmatprep.subr.mxu0 0.0
        %2383 = vmatpush1.msra.mxu0 0.0
        %2384 = vmatprep.subr.mxu0 0.0
        %2385 = vmatpush1.msra.mxu0 0.0
        %2386 = vmatprep.subr.mxu0 0.0
        %2387 = vmatpush1.msra.mxu0 0.0
        %2388 = vmatprep.subr.mxu0 0.0
        %2389 = vmatpush1.msra.mxu0 0.0
        %2390 = vmatprep.subr.mxu0 0.0
        %2391 = vmatpush1.msra.mxu0 0.0
        %2392 = vmatprep.subr.mxu0 0.0
        %2393 = vmatpush1.msra.mxu0 0.0
        %2394 = vmatprep.subr.mxu0 0.0
        %2395 = vmatpush1.msra.mxu0 0.0
        %2396 = vmatprep.subr.mxu0 0.0
        %2397 = vmatpush1.msra.mxu0 0.0
        %2398 = vmatprep.subr.mxu0 0.0
        %2399 = vmatpush1.msra.mxu0 %v2368
        %2400 = vmatprep.subr.mxu0 0.0
        %2401 = vmatpush1.msra.mxu0 %v2097
        %2402 = vmatprep.subr.mxu0 0.0
        %2403 = vmatpush2.msra.mxu0 0.0
        %2404 = vmatprep.subr.mxu0 0.0
        %2405 = vmatpush2.msra.mxu0 0.0
        %2406 = vmatprep.subr.mxu0 0.0
        %2407 = vmatpush2.msra.mxu0 0.0
        %2408 = vmatprep.subr.mxu0 0.0
        %2409 = vmatpush2.msra.mxu0 0.0
        %2410 = vmatprep.subr.mxu0 0.0
        %2411 = vmatpush2.msra.mxu0 0.0
        %2412 = vmatprep.subr.mxu0 0.0
        %2413 = vmatpush2.msra.mxu0 0.0
        %2414 = vmatprep.subr.mxu0 0.0
        %2415 = vmatpush2.msra.mxu0 0.0
        %2416 = vmatprep.subr.mxu0 0.0
        %2417 = vmatpush2.msra.mxu0 0.0
        %2418 = vmatprep.subr.mxu0 0.0
        %2419 = vmatpush2.msra.mxu0 0.0
        %2420 = vmatprep.subr.mxu0 0.0
        %2421 = vmatpush2.msra.mxu0 0.0
        %2422 = vmatprep.subr.mxu0 0.0
        %2423 = vmatpush2.msra.mxu0 0.0
        %2424 = vmatprep.subr.mxu0 0.0
        %2425 = vmatpush2.msra.mxu0 0.0
        %2426 = vmatprep.subr.mxu0 0.0
        %2427 = vmatpush2.msra.mxu0 0.0
        %2428 = vmatprep.subr.mxu0 0.0
        %2429 = vmatpush2.msra.mxu0 0.0
        %2430 = vmatprep.subr.mxu0 0.0
        %2431 = vmatpush2.msra.mxu0 0.0
        %2432 = vmatprep.subr.mxu0 0.0
        %2433 = vmatpush2.msra.mxu0 0.0
        %2434 = vmatprep.mubr.f32.mxu0 0.0
        %2435 = vmatmul.mubr.f32.gmra.mxu0 %v2365
        %v2436 = vpop.f32.mrf.mxu0
        %v2437 = vadd.f32 %v2361, %v2436
        %v2438 = vpop.f32.mrf.mxu0
        %2439 = vdwg.mxu0
        %v2440 = vmul.f32 %v1999, %v1378
        %v2441 = vmul.f32 %v2004, %v1378
        %v2442 = vmul.f32 %v2087, %v1378
        %v2443 = vmul.f32 %v2092, %v1378
        %v2445 = vsel %vm789, %v2440, 0
        %v2448 = vsel %vm789, %v2441, 0
        %2450 = vmatprep.subr.mxu0 0.0
        %2451 = vmatpush1.xpose.msra.mxu0 0.0
        %2452 = vmatprep.subr.mxu0 0.0
        %2453 = vmatpush1.xpose.msra.mxu0 0.0
        %2454 = vmatprep.subr.mxu0 0.0
        %2455 = vmatpush1.xpose.msra.mxu0 0.0
        %2456 = vmatprep.subr.mxu0 0.0
        %2457 = vmatpush1.xpose.msra.mxu0 0.0
        %2458 = vmatprep.subr.mxu0 0.0
        %2459 = vmatpush1.xpose.msra.mxu0 0.0
        %2460 = vmatprep.subr.mxu0 0.0
        %2461 = vmatpush1.xpose.msra.mxu0 0.0
        %2462 = vmatprep.subr.mxu0 0.0
        %2463 = vmatpush1.xpose.msra.mxu0 0.0
        %2464 = vmatprep.subr.mxu0 0.0
        %2465 = vmatpush1.xpose.msra.mxu0 0.0
        %2466 = vmatprep.subr.mxu0 0.0
        %2467 = vmatpush1.xpose.msra.mxu0 0.0
        %2468 = vmatprep.subr.mxu0 0.0
        %2469 = vmatpush1.xpose.msra.mxu0 0.0
        %2470 = vmatprep.subr.mxu0 0.0
        %2471 = vmatpush1.xpose.msra.mxu0 0.0
        %2472 = vmatprep.subr.mxu0 0.0
        %2473 = vmatpush1.xpose.msra.mxu0 0.0
        %2474 = vmatprep.subr.mxu0 0.0
        %2475 = vmatpush1.xpose.msra.mxu0 0.0
        %2476 = vmatprep.subr.mxu0 0.0
        %2477 = vmatpush1.xpose.msra.mxu0 0.0
        %2478 = vmatprep.subr.mxu0 0.0
        %2479 = vmatpush1.xpose.msra.mxu0 %v2448
        %2480 = vmatprep.subr.mxu0 0.0
        %2481 = vmatpush1.xpose.msra.mxu0 %v2445
        %2482 = vmatprep.subr.mxu0 0.0
        %2483 = vmatpush2.xpose.msra.mxu0 0.0
        %2484 = vmatprep.subr.mxu0 0.0
        %2485 = vmatpush2.xpose.msra.mxu0 0.0
        %2486 = vmatprep.subr.mxu0 0.0
        %2487 = vmatpush2.xpose.msra.mxu0 0.0
        %2488 = vmatprep.subr.mxu0 0.0
        %2489 = vmatpush2.xpose.msra.mxu0 0.0
        %2490 = vmatprep.subr.mxu0 0.0
        %2491 = vmatpush2.xpose.msra.mxu0 0.0
        %2492 = vmatprep.subr.mxu0 0.0
        %2493 = vmatpush2.xpose.msra.mxu0 0.0
        %2494 = vmatprep.subr.mxu0 0.0
        %2495 = vmatpush2.xpose.msra.mxu0 0.0
        %2496 = vmatprep.subr.mxu0 0.0
        %2497 = vmatpush2.xpose.msra.mxu0 0.0
        %2498 = vmatprep.subr.mxu0 0.0
        %2499 = vmatpush2.xpose.msra.mxu0 0.0
        %2500 = vmatprep.subr.mxu0 0.0
        %2501 = vmatpush2.xpose.msra.mxu0 0.0
        %2502 = vmatprep.subr.mxu0 0.0
        %2503 = vmatpush2.xpose.msra.mxu0 0.0
        %2504 = vmatprep.subr.mxu0 0.0
        %2505 = vmatpush2.xpose.msra.mxu0 0.0
        %2506 = vmatprep.subr.mxu0 0.0
        %2507 = vmatpush2.xpose.msra.mxu0 0.0
        %2508 = vmatprep.subr.mxu0 0.0
        %2509 = vmatpush2.xpose.msra.mxu0 0.0
        %2510 = vmatprep.subr.mxu0 0.0
        %2511 = vmatpush2.xpose.msra.mxu0 0.0
        %2512 = vmatprep.subr.mxu0 0.0
        %2513 = vmatpush2.xpose.msra.mxu0 0.0
        %2514 = vmatprep.mubr.f32.mxu0 0.0
        %2515 = vmatmul.mubr.f32.gmra.mxu0 %v2100
        %v2516 = vpop.f32.mrf.mxu0
        %v2517 = vadd.f32 0.0, %v2516
        %v2518 = vpop.f32.mrf.mxu0
        %2519 = vdwg.mxu0
        %v2520 = vsel %vm2178, %v2517, -inf
        %2521 = vmax.xlane.f32.xlu0 %v2520
        %v2522 = vpop.xlane.xlu0 %2521
        %v2523 = vsub.f32 %v2517, %v2522
        %v2524 = vmul.f32 %v2523, 1.442695
        %v2525 = vpow.pop %v2524
        %v2526 = vsel %vm2178, %v2525, 0.0
        %2527 = vadd.xlane.f32.xlu0 %v2526
        %v2528 = vpop.xlane.xlu0 %2527
        %v2529 = vrcp.pop %v2528
        %v2530 = vmul.f32 %v2528, %v2529
        %v2531 = vsub.f32 2.0, %v2530
        %v2532 = vmul.f32 %v2529, %v2531
        %v2533 = vmul.f32 %v2525, %v2532
        %v2535 = vsel %vm2178, %v2533, 0
        %v2538 = vsel %vm2290, %v2443, 0
        %2540 = vmatprep.subr.mxu0 0.0
        %2541 = vmatpush1.msra.mxu0 0.0
        %2542 = vmatprep.subr.mxu0 0.0
        %2543 = vmatpush1.msra.mxu0 0.0
        %2544 = vmatprep.subr.mxu0 0.0
        %2545 = vmatpush1.msra.mxu0 0.0
        %2546 = vmatprep.subr.mxu0 0.0
        %2547 = vmatpush1.msra.mxu0 0.0
        %2548 = vmatprep.subr.mxu0 0.0
        %2549 = vmatpush1.msra.mxu0 0.0
        %2550 = vmatprep.subr.mxu0 0.0
        %2551 = vmatpush1.msra.mxu0 0.0
        %2552 = vmatprep.subr.mxu0 0.0
        %2553 = vmatpush1.msra.mxu0 0.0
        %2554 = vmatprep.subr.mxu0 0.0
        %2555 = vmatpush1.msra.mxu0 0.0
        %2556 = vmatprep.subr.mxu0 0.0
        %2557 = vmatpush1.msra.mxu0 0.0
        %2558 = vmatprep.subr.mxu0 0.0
        %2559 = vmatpush1.msra.mxu0 0.0
        %2560 = vmatprep.subr.mxu0 0.0
        %2561 = vmatpush1.msra.mxu0 0.0
        %2562 = vmatprep.subr.mxu0 0.0
        %2563 = vmatpush1.msra.mxu0 0.0
        %2564 = vmatprep.subr.mxu0 0.0
        %2565 = vmatpush1.msra.mxu0 0.0
        %2566 = vmatprep.subr.mxu0 0.0
        %2567 = vmatpush1.msra.mxu0 0.0
        %2568 = vmatprep.subr.mxu0 0.0
        %2569 = vmatpush1.msra.mxu0 %v2538
        %2570 = vmatprep.subr.mxu0 0.0
        %2571 = vmatpush1.msra.mxu0 %v2442
        %2572 = vmatprep.subr.mxu0 0.0
        %2573 = vmatpush2.msra.mxu0 0.0
        %2574 = vmatprep.subr.mxu0 0.0
        %2575 = vmatpush2.msra.mxu0 0.0
        %2576 = vmatprep.subr.mxu0 0.0
        %2577 = vmatpush2.msra.mxu0 0.0
        %2578 = vmatprep.subr.mxu0 0.0
        %2579 = vmatpush2.msra.mxu0 0.0
        %2580 = vmatprep.subr.mxu0 0.0
        %2581 = vmatpush2.msra.mxu0 0.0
        %2582 = vmatprep.subr.mxu0 0.0
        %2583 = vmatpush2.msra.mxu0 0.0
        %2584 = vmatprep.subr.mxu0 0.0
        %2585 = vmatpush2.msra.mxu0 0.0
        %2586 = vmatprep.subr.mxu0 0.0
        %2587 = vmatpush2.msra.mxu0 0.0
        %2588 = vmatprep.subr.mxu0 0.0
        %2589 = vmatpush2.msra.mxu0 0.0
        %2590 = vmatprep.subr.mxu0 0.0
        %2591 = vmatpush2.msra.mxu0 0.0
        %2592 = vmatprep.subr.mxu0 0.0
        %2593 = vmatpush2.msra.mxu0 0.0
        %2594 = vmatprep.subr.mxu0 0.0
        %2595 = vmatpush2.msra.mxu0 0.0
        %2596 = vmatprep.subr.mxu0 0.0
        %2597 = vmatpush2.msra.mxu0 0.0
        %2598 = vmatprep.subr.mxu0 0.0
        %2599 = vmatpush2.msra.mxu0 0.0
        %2600 = vmatprep.subr.mxu0 0.0
        %2601 = vmatpush2.msra.mxu0 0.0
        %2602 = vmatprep.subr.mxu0 0.0
        %2603 = vmatpush2.msra.mxu0 0.0
        %2604 = vmatprep.mubr.f32.mxu0 0.0
        %2605 = vmatmul.mubr.f32.gmra.mxu0 %v2535
        %v2606 = vpop.f32.mrf.mxu0
        %v2607 = vadd.f32 0.0, %v2606
        %v2608 = vpop.f32.mrf.mxu0
        %2609 = vdwg.mxu0
        %v2610 = vadd.f32 %v2437, %v2607
        %v2611 = vmul.f32 %v1999, %v1549
        %v2612 = vmul.f32 %v2004, %v1549
        %v2613 = vmul.f32 %v2087, %v1549
        %v2614 = vmul.f32 %v2092, %v1549
        %v2616 = vsel %vm789, %v2611, 0
        %v2619 = vsel %vm789, %v2612, 0
        %2621 = vmatprep.subr.mxu0 0.0
        %2622 = vmatpush1.xpose.msra.mxu0 0.0
        %2623 = vmatprep.subr.mxu0 0.0
        %2624 = vmatpush1.xpose.msra.mxu0 0.0
        %2625 = vmatprep.subr.mxu0 0.0
        %2626 = vmatpush1.xpose.msra.mxu0 0.0
        %2627 = vmatprep.subr.mxu0 0.0
        %2628 = vmatpush1.xpose.msra.mxu0 0.0
        %2629 = vmatprep.subr.mxu0 0.0
        %2630 = vmatpush1.xpose.msra.mxu0 0.0
        %2631 = vmatprep.subr.mxu0 0.0
        %2632 = vmatpush1.xpose.msra.mxu0 0.0
        %2633 = vmatprep.subr.mxu0 0.0
        %2634 = vmatpush1.xpose.msra.mxu0 0.0
        %2635 = vmatprep.subr.mxu0 0.0
        %2636 = vmatpush1.xpose.msra.mxu0 0.0
        %2637 = vmatprep.subr.mxu0 0.0
        %2638 = vmatpush1.xpose.msra.mxu0 0.0
        %2639 = vmatprep.subr.mxu0 0.0
        %2640 = vmatpush1.xpose.msra.mxu0 0.0
        %2641 = vmatprep.subr.mxu0 0.0
        %2642 = vmatpush1.xpose.msra.mxu0 0.0
        %2643 = vmatprep.subr.mxu0 0.0
        %2644 = vmatpush1.xpose.msra.mxu0 0.0
        %2645 = vmatprep.subr.mxu0 0.0
        %2646 = vmatpush1.xpose.msra.mxu0 0.0
        %2647 = vmatprep.subr.mxu0 0.0
        %2648 = vmatpush1.xpose.msra.mxu0 0.0
        %2649 = vmatprep.subr.mxu0 0.0
        %2650 = vmatpush1.xpose.msra.mxu0 %v2619
        %2651 = vmatprep.subr.mxu0 0.0
        %2652 = vmatpush1.xpose.msra.mxu0 %v2616
        %2653 = vmatprep.subr.mxu0 0.0
        %2654 = vmatpush2.xpose.msra.mxu0 0.0
        %2655 = vmatprep.subr.mxu0 0.0
        %2656 = vmatpush2.xpose.msra.mxu0 0.0
        %2657 = vmatprep.subr.mxu0 0.0
        %2658 = vmatpush2.xpose.msra.mxu0 0.0
        %2659 = vmatprep.subr.mxu0 0.0
        %2660 = vmatpush2.xpose.msra.mxu0 0.0
        %2661 = vmatprep.subr.mxu0 0.0
        %2662 = vmatpush2.xpose.msra.mxu0 0.0
        %2663 = vmatprep.subr.mxu0 0.0
        %2664 = vmatpush2.xpose.msra.mxu0 0.0
        %2665 = vmatprep.subr.mxu0 0.0
        %2666 = vmatpush2.xpose.msra.mxu0 0.0
        %2667 = vmatprep.subr.mxu0 0.0
        %2668 = vmatpush2.xpose.msra.mxu0 0.0
        %2669 = vmatprep.subr.mxu0 0.0
        %2670 = vmatpush2.xpose.msra.mxu0 0.0
        %2671 = vmatprep.subr.mxu0 0.0
        %2672 = vmatpush2.xpose.msra.mxu0 0.0
        %2673 = vmatprep.subr.mxu0 0.0
        %2674 = vmatpush2.xpose.msra.mxu0 0.0
        %2675 = vmatprep.subr.mxu0 0.0
        %2676 = vmatpush2.xpose.msra.mxu0 0.0
        %2677 = vmatprep.subr.mxu0 0.0
        %2678 = vmatpush2.xpose.msra.mxu0 0.0
        %2679 = vmatprep.subr.mxu0 0.0
        %2680 = vmatpush2.xpose.msra.mxu0 0.0
        %2681 = vmatprep.subr.mxu0 0.0
        %2682 = vmatpush2.xpose.msra.mxu0 0.0
        %2683 = vmatprep.subr.mxu0 0.0
        %2684 = vmatpush2.xpose.msra.mxu0 0.0
        %2685 = vmatprep.mubr.f32.mxu0 0.0
        %2686 = vmatmul.mubr.f32.gmra.mxu0 %v2100
        %v2687 = vpop.f32.mrf.mxu0
        %v2688 = vadd.f32 0.0, %v2687
        %v2689 = vpop.f32.mrf.mxu0
        %2690 = vdwg.mxu0
        %v2691 = vsel %vm2178, %v2688, -inf
        %2692 = vmax.xlane.f32.xlu0 %v2691
        %v2693 = vpop.xlane.xlu0 %2692
        %v2694 = vsub.f32 %v2688, %v2693
        %v2695 = vmul.f32 %v2694, 1.442695
        %v2696 = vpow.pop %v2695
        %v2697 = vsel %vm2178, %v2696, 0.0
        %2698 = vadd.xlane.f32.xlu0 %v2697
        %v2699 = vpop.xlane.xlu0 %2698
        %v2700 = vrcp.pop %v2699
        %v2701 = vmul.f32 %v2699, %v2700
        %v2702 = vsub.f32 2.0, %v2701
        %v2703 = vmul.f32 %v2700, %v2702
        %v2704 = vmul.f32 %v2696, %v2703
        %v2706 = vsel %vm2178, %v2704, 0
        %v2709 = vsel %vm2290, %v2614, 0
        %2711 = vmatprep.subr.mxu0 0.0
        %2712 = vmatpush1.msra.mxu0 0.0
        %2713 = vmatprep.subr.mxu0 0.0
        %2714 = vmatpush1.msra.mxu0 0.0
        %2715 = vmatprep.subr.mxu0 0.0
        %2716 = vmatpush1.msra.mxu0 0.0
        %2717 = vmatprep.subr.mxu0 0.0
        %2718 = vmatpush1.msra.mxu0 0.0
        %2719 = vmatprep.subr.mxu0 0.0
        %2720 = vmatpush1.msra.mxu0 0.0
        %2721 = vmatprep.subr.mxu0 0.0
        %2722 = vmatpush1.msra.mxu0 0.0
        %2723 = vmatprep.subr.mxu0 0.0
        %2724 = vmatpush1.msra.mxu0 0.0
        %2725 = vmatprep.subr.mxu0 0.0
        %2726 = vmatpush1.msra.mxu0 0.0
        %2727 = vmatprep.subr.mxu0 0.0
        %2728 = vmatpush1.msra.mxu0 0.0
        %2729 = vmatprep.subr.mxu0 0.0
        %2730 = vmatpush1.msra.mxu0 0.0
        %2731 = vmatprep.subr.mxu0 0.0
        %2732 = vmatpush1.msra.mxu0 0.0
        %2733 = vmatprep.subr.mxu0 0.0
        %2734 = vmatpush1.msra.mxu0 0.0
        %2735 = vmatprep.subr.mxu0 0.0
        %2736 = vmatpush1.msra.mxu0 0.0
        %2737 = vmatprep.subr.mxu0 0.0
        %2738 = vmatpush1.msra.mxu0 0.0
        %2739 = vmatprep.subr.mxu0 0.0
        %2740 = vmatpush1.msra.mxu0 %v2709
        %2741 = vmatprep.subr.mxu0 0.0
        %2742 = vmatpush1.msra.mxu0 %v2613
        %2743 = vmatprep.subr.mxu0 0.0
        %2744 = vmatpush2.msra.mxu0 0.0
        %2745 = vmatprep.subr.mxu0 0.0
        %2746 = vmatpush2.msra.mxu0 0.0
        %2747 = vmatprep.subr.mxu0 0.0
        %2748 = vmatpush2.msra.mxu0 0.0
        %2749 = vmatprep.subr.mxu0 0.0
        %2750 = vmatpush2.msra.mxu0 0.0
        %2751 = vmatprep.subr.mxu0 0.0
        %2752 = vmatpush2.msra.mxu0 0.0
        %2753 = vmatprep.subr.mxu0 0.0
        %2754 = vmatpush2.msra.mxu0 0.0
        %2755 = vmatprep.subr.mxu0 0.0
        %2756 = vmatpush2.msra.mxu0 0.0
        %2757 = vmatprep.subr.mxu0 0.0
        %2758 = vmatpush2.msra.mxu0 0.0
        %2759 = vmatprep.subr.mxu0 0.0
        %2760 = vmatpush2.msra.mxu0 0.0
        %2761 = vmatprep.subr.mxu0 0.0
        %2762 = vmatpush2.msra.mxu0 0.0
        %2763 = vmatprep.subr.mxu0 0.0
        %2764 = vmatpush2.msra.mxu0 0.0
        %2765 = vmatprep.subr.mxu0 0.0
        %2766 = vmatpush2.msra.mxu0 0.0
        %2767 = vmatprep.subr.mxu0 0.0
        %2768 = vmatpush2.msra.mxu0 0.0
        %2769 = vmatprep.subr.mxu0 0.0
        %2770 = vmatpush2.msra.mxu0 0.0
        %2771 = vmatprep.subr.mxu0 0.0
        %2772 = vmatpush2.msra.mxu0 0.0
        %2773 = vmatprep.subr.mxu0 0.0
        %2774 = vmatpush2.msra.mxu0 0.0
        %2775 = vmatprep.mubr.f32.mxu0 0.0
        %2776 = vmatmul.mubr.f32.gmra.mxu0 %v2706
        %v2777 = vpop.f32.mrf.mxu0
        %v2778 = vadd.f32 0.0, %v2777
        %v2779 = vpop.f32.mrf.mxu0
        %2780 = vdwg.mxu0
        %v2781 = vadd.f32 %v2610, %v2778
        %v2782 = vld [vmem:[%s11] sm:$0xff]
        %v2783 = vld [vmem:[%s11 + $0x8] sm:$0xff]
        %v2784 = vld [vmem:[%s11 + $0x10] sm:$0xff]
        %v2785 = vld [vmem:[%s11 + $0x18] sm:$0xff]
        %v2786 = vld [vmem:[%s12] sm:$0x1]
        %v2788 = vlaneseq
        %v2789 = vshrl.u32 %v2788, 7
        %v2790 = vsub.s32 0, %v2789
        %v2791 = vrot.slane %v2786, %v2790
        %v2794 = vsel %vm789, %v2781, 0
        %2796 = vmatprep.subr.mxu0 0.0
        %2797 = vmatpush1.msra.mxu0 0.0
        %2798 = vmatprep.subr.mxu0 0.0
        %2799 = vmatpush1.msra.mxu0 0.0
        %2800 = vmatprep.subr.mxu0 0.0
        %2801 = vmatpush1.msra.mxu0 0.0
        %2802 = vmatprep.subr.mxu0 0.0
        %2803 = vmatpush1.msra.mxu0 0.0
        %2804 = vmatprep.subr.mxu0 0.0
        %2805 = vmatpush1.msra.mxu0 0.0
        %2806 = vmatprep.subr.mxu0 0.0
        %2807 = vmatpush1.msra.mxu0 0.0
        %2808 = vmatprep.subr.mxu0 0.0
        %2809 = vmatpush1.msra.mxu0 0.0
        %2810 = vmatprep.subr.mxu0 0.0
        %2811 = vmatpush1.msra.mxu0 0.0
        %2812 = vmatprep.subr.mxu0 0.0
        %2813 = vmatpush1.msra.mxu0 0.0
        %2814 = vmatprep.subr.mxu0 0.0
        %2815 = vmatpush1.msra.mxu0 0.0
        %2816 = vmatprep.subr.mxu0 0.0
        %2817 = vmatpush1.msra.mxu0 0.0
        %2818 = vmatprep.subr.mxu0 0.0
        %2819 = vmatpush1.msra.mxu0 0.0
        %2820 = vmatprep.subr.mxu0 0.0
        %2821 = vmatpush1.msra.mxu0 %v2785
        %2822 = vmatprep.subr.mxu0 0.0
        %2823 = vmatpush1.msra.mxu0 %v2784
        %2824 = vmatprep.subr.mxu0 0.0
        %2825 = vmatpush1.msra.mxu0 %v2783
        %2826 = vmatprep.subr.mxu0 0.0
        %2827 = vmatpush1.msra.mxu0 %v2782
        %2828 = vmatprep.subr.mxu0 0.0
        %2829 = vmatpush2.msra.mxu0 0.0
        %2830 = vmatprep.subr.mxu0 0.0
        %2831 = vmatpush2.msra.mxu0 0.0
        %2832 = vmatprep.subr.mxu0 0.0
        %2833 = vmatpush2.msra.mxu0 0.0
        %2834 = vmatprep.subr.mxu0 0.0
        %2835 = vmatpush2.msra.mxu0 0.0
        %2836 = vmatprep.subr.mxu0 0.0
        %2837 = vmatpush2.msra.mxu0 0.0
        %2838 = vmatprep.subr.mxu0 0.0
        %2839 = vmatpush2.msra.mxu0 0.0
        %2840 = vmatprep.subr.mxu0 0.0
        %2841 = vmatpush2.msra.mxu0 0.0
        %2842 = vmatprep.subr.mxu0 0.0
        %2843 = vmatpush2.msra.mxu0 0.0
        %2844 = vmatprep.subr.mxu0 0.0
        %2845 = vmatpush2.msra.mxu0 0.0
        %2846 = vmatprep.subr.mxu0 0.0
        %2847 = vmatpush2.msra.mxu0 0.0
        %2848 = vmatprep.subr.mxu0 0.0
        %2849 = vmatpush2.msra.mxu0 0.0
        %2850 = vmatprep.subr.mxu0 0.0
        %2851 = vmatpush2.msra.mxu0 0.0
        %2852 = vmatprep.subr.mxu0 0.0
        %2853 = vmatpush2.msra.mxu0 0.0
        %2854 = vmatprep.subr.mxu0 0.0
        %2855 = vmatpush2.msra.mxu0 0.0
        %2856 = vmatprep.subr.mxu0 0.0
        %2857 = vmatpush2.msra.mxu0 0.0
        %2858 = vmatprep.subr.mxu0 0.0
        %2859 = vmatpush2.msra.mxu0 0.0
        %2860 = vmatprep.mubr.f32.mxu0 0.0
        %2861 = vmatmul.mubr.f32.gmra.mxu0 %v2794
        %v2862 = vpop.f32.mrf.mxu0
        %v2863 = vadd.f32 %v2791, %v2862
        %v2864 = vpop.f32.mrf.mxu0
        %2865 = vdwg.mxu0
        %v2866 = vadd.f32 %v1828, %v2863
        %v2867 = vsel %vm789, %v2866, 0.0
        %2868 = vadd.xlane.f32.xlu0 %v2867
        %v2869 = vpop.xlane.xlu0 %2868
        %v2870 = vmul.f32 %v2869, %v1802
        %v2871 = vsub.f32 %v2866, %v2870
        %v2872 = vmul.f32 %v2871, %v2871
        %v2873 = vsel %vm789, %v2872, 0.0
        %2874 = vadd.xlane.f32.xlu0 %v2873
        %v2875 = vpop.xlane.xlu0 %2874
        %v2876 = vmul.f32 %v2875, %v1802
        %v2877 = vadd.f32 %v2876, 1e-05
        %v2878 = vrsqrt.pop %v2877
        %v2879 = vmul.f32 %v2871, %v2878
        %v2880 = vld [vmem:[%s13] sm:$0x1]
        %v2882 = vlaneseq
        %v2883 = vshrl.u32 %v2882, 7
        %v2884 = vsub.s32 0, %v2883
        %v2885 = vrot.slane %v2880, %v2884
        %v2887 = vmul.f32 %v2879, %v2885
        %v2888 = vld [vmem:[%s14] sm:$0x1]
        %v2890 = vlaneseq
        %v2891 = vshrl.u32 %v2890, 7
        %v2892 = vsub.s32 0, %v2891
        %v2893 = vrot.slane %v2888, %v2892
        %v2895 = vadd.f32 %v2887, %v2893
        %v2896 = vld [vmem:[#allocation13] sm:$0xff]
        %v2897 = vld [vmem:[#allocation13 + $0x8] sm:$0xff]
        %v2898 = vld [vmem:[#allocation13 + $0x10] sm:$0xff]
        %v2899 = vld [vmem:[#allocation13 + $0x18] sm:$0xff]
        %v2900 = vld [vmem:[%s16] sm:$0x1]
        %v2902 = vlaneseq
        %v2903 = vshrl.u32 %v2902, 7
        %v2904 = vsub.s32 0, %v2903
        %v2905 = vrot.slane %v2900, %v2904
        %v2908 = vsel %vm789, %v2895, 0
        %2910 = vmatprep.subr.mxu0 0.0
        %2911 = vmatpush1.msra.mxu0 0.0
        %2912 = vmatprep.subr.mxu0 0.0
        %2913 = vmatpush1.msra.mxu0 0.0
        %2914 = vmatprep.subr.mxu0 0.0
        %2915 = vmatpush1.msra.mxu0 0.0
        %2916 = vmatprep.subr.mxu0 0.0
        %2917 = vmatpush1.msra.mxu0 0.0
        %2918 = vmatprep.subr.mxu0 0.0
        %2919 = vmatpush1.msra.mxu0 0.0
        %2920 = vmatprep.subr.mxu0 0.0
        %2921 = vmatpush1.msra.mxu0 0.0
        %2922 = vmatprep.subr.mxu0 0.0
        %2923 = vmatpush1.msra.mxu0 0.0
        %2924 = vmatprep.subr.mxu0 0.0
        %2925 = vmatpush1.msra.mxu0 0.0
        %2926 = vmatprep.subr.mxu0 0.0
        %2927 = vmatpush1.msra.mxu0 0.0
        %2928 = vmatprep.subr.mxu0 0.0
        %2929 = vmatpush1.msra.mxu0 0.0
        %2930 = vmatprep.subr.mxu0 0.0
        %2931 = vmatpush1.msra.mxu0 0.0
        %2932 = vmatprep.subr.mxu0 0.0
        %2933 = vmatpush1.msra.mxu0 0.0
        %2934 = vmatprep.subr.mxu0 0.0
        %2935 = vmatpush1.msra.mxu0 %v2899
        %2936 = vmatprep.subr.mxu0 0.0
        %2937 = vmatpush1.msra.mxu0 %v2898
        %2938 = vmatprep.subr.mxu0 0.0
        %2939 = vmatpush1.msra.mxu0 %v2897
        %2940 = vmatprep.subr.mxu0 0.0
        %2941 = vmatpush1.msra.mxu0 %v2896
        %2942 = vmatprep.subr.mxu0 0.0
        %2943 = vmatpush2.msra.mxu0 0.0
        %2944 = vmatprep.subr.mxu0 0.0
        %2945 = vmatpush2.msra.mxu0 0.0
        %2946 = vmatprep.subr.mxu0 0.0
        %2947 = vmatpush2.msra.mxu0 0.0
        %2948 = vmatprep.subr.mxu0 0.0
        %2949 = vmatpush2.msra.mxu0 0.0
        %2950 = vmatprep.subr.mxu0 0.0
        %2951 = vmatpush2.msra.mxu0 0.0
        %2952 = vmatprep.subr.mxu0 0.0
        %2953 = vmatpush2.msra.mxu0 0.0
        %2954 = vmatprep.subr.mxu0 0.0
        %2955 = vmatpush2.msra.mxu0 0.0
        %2956 = vmatprep.subr.mxu0 0.0
        %2957 = vmatpush2.msra.mxu0 0.0
        %2958 = vmatprep.subr.mxu0 0.0
        %2959 = vmatpush2.msra.mxu0 0.0
        %2960 = vmatprep.subr.mxu0 0.0
        %2961 = vmatpush2.msra.mxu0 0.0
        %2962 = vmatprep.subr.mxu0 0.0
        %2963 = vmatpush2.msra.mxu0 0.0
        %2964 = vmatprep.subr.mxu0 0.0
        %2965 = vmatpush2.msra.mxu0 0.0
        %2966 = vmatprep.subr.mxu0 0.0
        %2967 = vmatpush2.msra.mxu0 0.0
        %2968 = vmatprep.subr.mxu0 0.0
        %2969 = vmatpush2.msra.mxu0 0.0
        %2970 = vmatprep.subr.mxu0 0.0
        %2971 = vmatpush2.msra.mxu0 0.0
        %2972 = vmatprep.subr.mxu0 0.0
        %2973 = vmatpush2.msra.mxu0 0.0
        %2974 = vmatprep.mubr.f32.mxu0 0.0
        %2975 = vmatmul.mubr.f32.gmra.mxu0 %v2908
        %v2976 = vpop.f32.mrf.mxu0
        %v2977 = vadd.f32 %v2905, %v2976
        %v2978 = vpop.f32.mrf.mxu0
        %2979 = vdwg.mxu0
        %v2980 = vmax.f32 %v2977, 0.0
        %v2981 = vld [vmem:[%s17] sm:$0xff]
        %v2982 = vld [vmem:[%s17 + $0x8] sm:$0xff]
        %v2983 = vld [vmem:[%s17 + $0x10] sm:$0xff]
        %v2984 = vld [vmem:[%s17 + $0x18] sm:$0xff]
        %v2985 = vld [vmem:[%s17 + $0x20] sm:$0xff]
        %v2986 = vld [vmem:[%s17 + $0x28] sm:$0xff]
        %v2987 = vld [vmem:[%s17 + $0x30] sm:$0xff]
        %v2988 = vld [vmem:[%s17 + $0x38] sm:$0xff]
        %v2989 = vld [vmem:[%s18] sm:$0x1]
        %v2991 = vlaneseq
        %v2992 = vshrl.u32 %v2991, 7
        %v2993 = vsub.s32 0, %v2992
        %v2994 = vrot.slane %v2989, %v2993
        %vm2996 = vcmask 523264
        %v2998 = vsel %vm2996, %v2980, 0
        %3000 = vmatprep.subr.mxu0 0.0
        %3001 = vmatpush1.msra.mxu0 0.0
        %3002 = vmatprep.subr.mxu0 0.0
        %3003 = vmatpush1.msra.mxu0 0.0
        %3004 = vmatprep.subr.mxu0 0.0
        %3005 = vmatpush1.msra.mxu0 0.0
        %3006 = vmatprep.subr.mxu0 0.0
        %3007 = vmatpush1.msra.mxu0 0.0
        %3008 = vmatprep.subr.mxu0 0.0
        %3009 = vmatpush1.msra.mxu0 0.0
        %3010 = vmatprep.subr.mxu0 0.0
        %3011 = vmatpush1.msra.mxu0 0.0
        %3012 = vmatprep.subr.mxu0 0.0
        %3013 = vmatpush1.msra.mxu0 0.0
        %3014 = vmatprep.subr.mxu0 0.0
        %3015 = vmatpush1.msra.mxu0 0.0
        %3016 = vmatprep.subr.mxu0 0.0
        %3017 = vmatpush1.msra.mxu0 %v2988
        %3018 = vmatprep.subr.mxu0 0.0
        %3019 = vmatpush1.msra.mxu0 %v2987
        %3020 = vmatprep.subr.mxu0 0.0
        %3021 = vmatpush1.msra.mxu0 %v2986
        %3022 = vmatprep.subr.mxu0 0.0
        %3023 = vmatpush1.msra.mxu0 %v2985
        %3024 = vmatprep.subr.mxu0 0.0
        %3025 = vmatpush1.msra.mxu0 %v2984
        %3026 = vmatprep.subr.mxu0 0.0
        %3027 = vmatpush1.msra.mxu0 %v2983
        %3028 = vmatprep.subr.mxu0 0.0
        %3029 = vmatpush1.msra.mxu0 %v2982
        %3030 = vmatprep.subr.mxu0 0.0
        %3031 = vmatpush1.msra.mxu0 %v2981
        %3032 = vmatprep.subr.mxu0 0.0
        %3033 = vmatpush2.msra.mxu0 0.0
        %3034 = vmatprep.subr.mxu0 0.0
        %3035 = vmatpush2.msra.mxu0 0.0
        %3036 = vmatprep.subr.mxu0 0.0
        %3037 = vmatpush2.msra.mxu0 0.0
        %3038 = vmatprep.subr.mxu0 0.0
        %3039 = vmatpush2.msra.mxu0 0.0
        %3040 = vmatprep.subr.mxu0 0.0
        %3041 = vmatpush2.msra.mxu0 0.0
        %3042 = vmatprep.subr.mxu0 0.0
        %3043 = vmatpush2.msra.mxu0 0.0
        %3044 = vmatprep.subr.mxu0 0.0
        %3045 = vmatpush2.msra.mxu0 0.0
        %3046 = vmatprep.subr.mxu0 0.0
        %3047 = vmatpush2.msra.mxu0 0.0
        %3048 = vmatprep.subr.mxu0 0.0
        %3049 = vmatpush2.msra.mxu0 0.0
        %3050 = vmatprep.subr.mxu0 0.0
        %3051 = vmatpush2.msra.mxu0 0.0
        %3052 = vmatprep.subr.mxu0 0.0
        %3053 = vmatpush2.msra.mxu0 0.0
        %3054 = vmatprep.subr.mxu0 0.0
        %3055 = vmatpush2.msra.mxu0 0.0
        %3056 = vmatprep.subr.mxu0 0.0
        %3057 = vmatpush2.msra.mxu0 0.0
        %3058 = vmatprep.subr.mxu0 0.0
        %3059 = vmatpush2.msra.mxu0 0.0
        %3060 = vmatprep.subr.mxu0 0.0
        %3061 = vmatpush2.msra.mxu0 0.0
        %3062 = vmatprep.subr.mxu0 0.0
        %3063 = vmatpush2.msra.mxu0 0.0
        %3064 = vmatprep.mubr.f32.mxu0 0.0
        %3065 = vmatmul.mubr.f32.gmra.mxu0 %v2998
        %v3066 = vpop.f32.mrf.mxu0
        %v3067 = vadd.f32 %v2994, %v3066
        %v3068 = vpop.f32.mrf.mxu0
        %3069 = vdwg.mxu0
        %v3070 = vadd.f32 %v2895, %v3067
        %v3071 = vsel %vm789, %v3070, 0.0
        %3072 = vadd.xlane.f32.xlu0 %v3071
        %v3073 = vpop.xlane.xlu0 %3072
        %v3074 = vmul.f32 %v3073, %v1802
        %v3075 = vsub.f32 %v3070, %v3074
        %v3076 = vmul.f32 %v3075, %v3075
        %v3077 = vsel %vm789, %v3076, 0.0
        %3078 = vadd.xlane.f32.xlu0 %v3077
        %v3079 = vpop.xlane.xlu0 %3078
        %v3080 = vmul.f32 %v3079, %v1802
        %v3081 = vadd.f32 %v3080, 1e-05
        %v3082 = vrsqrt.pop %v3081
        %v3083 = vmul.f32 %v3075, %v3082
        %v3084 = vld [vmem:[%s19] sm:$0x1]
        %v3086 = vlaneseq
        %v3087 = vshrl.u32 %v3086, 7
        %v3088 = vsub.s32 0, %v3087
        %v3089 = vrot.slane %v3084, %v3088
        %v3091 = vmul.f32 %v3083, %v3089
        %v3092 = vld [vmem:[%s20] sm:$0x1]
        %v3094 = vlaneseq
        %v3095 = vshrl.u32 %v3094, 7
        %v3096 = vsub.s32 0, %v3095
        %v3097 = vrot.slane %v3092, %v3096
        %v3099 = vadd.f32 %v3091, %v3097
        %3100 = vst.msk [vmem:[%s769] sm:$0xff] %vm789, %v3099
        %s3101 = sand.u32 %s500, 1
        %s3102 = scalar_lea.sflag [#allocation4], %s3101
        %s3103 = sand.u32 %s500, 1
        %s3104 = smul.addr %s3103, 8
        %s3105 = scalar_lea.vmem [#allocation14], %s3104
        // Predicated region
        $region133: #{tpu_custom_call.1} parent=103 // pred_check
          %p3106 = pneg %p510
        $region134: #{tpu_custom_call.1} parent=103 // pred_check_branch
          %3108 = sbr.rel (%p3106) target = $region136
        $region135: #{tpu_custom_call.1} parent=103 // pred_region
          %s3110 = ssub.s32 128, 128
          %3111 = vsyncadd %s3102, %s3110
          %s3112 = smul.addr %s41, 128
          %s3113 = scalar_lea.hbm %s21, %s3112
          %s3115 = sshll.u32 %s3105, 4
          %s3116 = int_to_ptr.vmem [resolvable:$true] %s3115
          %3118 = dma.vmem_to_hbm [thread:$0]  %s3116, 128, %s3113, %s3102
        $region136: #{tpu_custom_call.1} parent=103 // pred_fallthru
          _
      $region104: #{tpu_custom_call.1} parent=5 // pred_fallthru
        _
      %p3119 = scmp.le.s32.totalorder 2, %s36
      // Predicated region
      $region137: #{tpu_custom_call.1} parent=5 // pred_check
        %p3120 = pneg %p3119
      $region138: #{tpu_custom_call.1} parent=5 // pred_check_branch
        %3122 = sbr.rel (%p3120) target = $region140
      $region139: #{tpu_custom_call.1} parent=5 // pred_region
        %s3123 = ssub.s32 %s36, 2
        // Predicated region
        $region141: #{tpu_custom_call.1} parent=139 // pred_check
          %p3124 = pneg %p516
        $region142: #{tpu_custom_call.1} parent=139 // pred_check_branch
          %3126 = sbr.rel (%p3124) target = $region144
        $region143: #{tpu_custom_call.1} parent=139 // pred_region
          %s3127 = sand.u32 %s501, 1
          %s3128 = scalar_lea.sflag [#allocation4], %s3127
          %s3129 = sand.u32 %s501, 1
          %s3130 = smul.addr %s3129, 8
          %s3131 = scalar_lea.vmem [#allocation14], %s3130
          %3132 = dma.done %s3128, 128
        $region144: #{tpu_custom_call.1} parent=139 // pred_fallthru
          _
      $region140: #{tpu_custom_call.1} parent=5 // pred_fallthru
        _
    $region6: #{tpu_custom_call.1} parent=1 // loop_footer
      %s40 = sadd.s32 1, %s36
    $region7: #{tpu_custom_call.1} parent=1 // loop_footer_branch
      %35 = sbr.rel target = $region3
    $region8: #{tpu_custom_call.1} parent=1 // loop_exit
      _
    %3133 = vsyncpa [#allocation3], 1
    %s3134 = scalar_lea.sflag [#allocation3], 1
    %3135 = vsyncpa %s3134, 1
    %3136 = vsyncpa [#allocation6], 1
    %3137 = vsyncpa [#allocation9], 1
    %3138 = vsyncpa [#allocation12], 1
    %3139 = vsyncpa [#allocation4], 1
    %s3140 = scalar_lea.sflag [#allocation4], 1
    %3141 = vsyncpa %s3140, 1

</llo_original>
